<compile_context>
chip_gen: v6e
topology: v6e:2x2x1
jax: 0.10.0
libtpu: 0.0.40
codegen_flags: <defaults>
</compile_context>

<pallas_src>
import functools

import jax
import jax.numpy as jnp
from jax import lax
from jax.experimental import pallas as pl
from jax.experimental.pallas import tpu as pltpu

MIDDLE = 20  # middle_plane in the PyTorch module
EPS = 1e-5


def _round_up(a, b):
    return (a + b - 1) // b * b


def rblock_kernel(x_ref, s1_ref, t1_ref, w1_ref, s2_ref, t2_ref, w2_ref,
                  b2_ref, m_ref, o_ref, *, taps, cout):
    """One grid step = Nb images, channel-major / spatial-flat layout.

    x_ref : (K1, L)       input slab (channels zero-padded to K1), L = Nb*HWp
    s1/t1 : (K1, 1)       bn1 affine (pad rows are 0 -> pad rows of y stay 0)
    w1    : (9, K2, K1)   conv1 weights, one (K2, K1) matrix per 3x3 tap
    s2/t2 : (K2, 1)       bn2 affine with the conv1 bias folded in
    w2    : (9, Cout, K2) conv2 weights per tap
    b2    : (Cout, 1)     conv2 bias
    m_ref : (9, 1, L)     precomputed boundary masks (1.0 valid, 0.0 at pads)
    o_ref : (Cout, L)     output slab
    `taps` is a static tuple of (lane_shift, needs_mask) per 3x3 tap.
    """
    x = x_ref[...]                                            # (K1, L)

    # ---- bn1 (inference affine) + relu ---------------------------------
    y = jnp.maximum(x * s1_ref[...] + t1_ref[...], 0.0)      # (K1, L)

    # ---- conv1: 9 accumulating MXU matmuls, no scratch round-trip -------
    # Boundary mask applied on the K1 side (fewer rows than K2).
    acc1 = None
    for t, (shift, need_mask) in enumerate(taps):
        s = y if shift == 0 else pltpu.roll(y, shift=shift, axis=1)
        if need_mask:
            s = s * m_ref[t]                                  # (1, L) bcast
        d = jnp.dot(w1_ref[t], s, preferred_element_type=jnp.float32)
        acc1 = d if acc1 is None else acc1 + d                # (K2, L)

    # ---- bn2 + relu (conv1 bias already folded into t2) -----------------
    z = jnp.maximum(acc1 * s2_ref[...] + t2_ref[...], 0.0)   # (K2, L)

    # ---- conv2: boundary mask applied after the dot (Cout rows < K2) ----
    acc2 = None
    for t, (shift, need_mask) in enumerate(taps):
        s = z if shift == 0 else pltpu.roll(z, shift=shift, axis=1)
        d = jnp.dot(w2_ref[t], s, preferred_element_type=jnp.float32)
        if need_mask:
            d = d * m_ref[t]
        acc2 = d if acc2 is None else acc2 + d                # (Cout, L)

    # ---- conv2 bias + residual; lane-dense (L-wide) store ----------------
    o_ref[...] = acc2 + b2_ref[...] + x[:cout, :]


def _pack_taps(w_hwio, k_in, k_out):
    """(3,3,Ci,Co) HWIO -> (9, k_out, k_in); taps in (dy,dx) row-major order."""
    kh, kw, ci, co = w_hwio.shape
    w = jnp.transpose(w_hwio, (0, 1, 3, 2)).reshape(kh * kw, co, ci)
    return jnp.pad(w, ((0, 0), (0, k_out - co), (0, k_in - ci)))


def _boundary_masks(H, W, HWp, nb):
    """(9, 1, nb*HWp) float mask: 1.0 where the tap's source pixel is inside
    the image (conv zero-padding), 0.0 at image borders and HW->HWp pad lanes."""
    pos = jnp.arange(HWp)
    in_img = pos < H * W
    row, col = pos // W, pos % W
    ms = []
    for dy in (-1, 0, 1):
        for dx in (-1, 0, 1):
            m = in_img
            if dy == -1:
                m = m & (row >= 1)
            if dy == 1:
                m = m & (row <= H - 2)
            if dx == -1:
                m = m & (col >= 1)
            if dx == 1:
                m = m & (col <= W - 2)
            ms.append(m)
    m = jnp.stack(ms).astype(jnp.float32)                      # (9, HWp)
    return jnp.tile(m[:, None, :], (1, nb, 1)).reshape(9, 1, nb * HWp)


def _make_taps(H, W, L):
    """Static (lane_shift, needs_mask) per 3x3 tap, (dy,dx) row-major order."""
    taps = []
    for dy in (-1, 0, 1):
        for dx in (-1, 0, 1):
            k = dy * W + dx
            taps.append(((-k) % L, not (dy == 0 and dx == 0)))
    return tuple(taps)


def _pick_nb(N, HWp, max_lanes=512):
    """Images per grid step: widest lane-dense slab that still fits the vreg
    budget (register-resident activations), while keeping >= 2 grid steps so
    both v7x TensorCores stay busy (neutral on single-TC v5e/v6e)."""
    best = 1
    for nb in range(2, N + 1):
        if N % nb == 0 and nb * HWp <= max_lanes and N // nb >= 2:
            best = nb
    return best


def rblock_forward(x_nchw, params, *, nb=None):
    """x_nchw: (N, Cin, H, W) float32, PyTorch layout. Returns same layout."""
    N, Cin, H, W = x_nchw.shape
    Cmid = params["w1"].shape[-1]
    Cout = params["w2"].shape[-1]
    if Cout != Cin:
        raise ValueError("RBlock residual add requires out_plane == in_plane "
                         f"(got in_plane={Cin}, out_plane={Cout})")
    HW = H * W
    HWp = _round_up(HW, 128)             # lane-dense stores for any H, W
    k1 = _round_up(Cin, 8)               # 8-aligned matmul K dims
    k2 = _round_up(Cmid, 8)
    if nb is None:
        nb = _pick_nb(N, HWp)
    if N % nb:
        raise ValueError(f"batch {N} not divisible by images-per-step {nb}")
    L = nb * HWp

    # Channel-major, spatially flat input: (k1, N*HWp); zero pad lanes/channels.
    x = x_nchw.reshape(N, Cin, HW)
    if HWp != HW:
        x = jnp.pad(x, ((0, 0), (0, 0), (0, HWp - HW)))
    x_cm = jnp.transpose(x, (1, 0, 2)).reshape(Cin, N * HWp)
    if k1 != Cin:
        x_cm = jnp.pad(x_cm, ((0, k1 - Cin), (0, 0)))

    # Fold BatchNorm (eval mode) into per-channel scale/shift; fold conv1 bias
    # into the bn2 shift: t2' = t2 + s2 * b1.  Pad rows are zero so padded
    # channels stay exactly 0 through the affine+relu.
    s1 = params["bn1_gamma"] / jnp.sqrt(params["bn1_var"] + EPS)
    t1 = params["bn1_beta"] - params["bn1_mean"] * s1
    s2 = params["bn2_gamma"] / jnp.sqrt(params["bn2_var"] + EPS)
    t2 = params["bn2_beta"] - params["bn2_mean"] * s2 + s2 * params["b1"]
    s1c = jnp.pad(s1, (0, k1 - Cin))[:, None]
    t1c = jnp.pad(t1, (0, k1 - Cin))[:, None]
    s2c = jnp.pad(s2, (0, k2 - Cmid))[:, None]
    t2c = jnp.pad(t2, (0, k2 - Cmid))[:, None]
    b2c = params["b2"][:, None]

    w1p = _pack_taps(params["w1"], k1, k2)      # (9, k2, k1)
    w2p = _pack_taps(params["w2"], k2, Cout)    # (9, Cout, k2)

    masks = _boundary_masks(H, W, HWp, nb)      # (9, 1, L), resident in VMEM
    taps = _make_taps(H, W, L)

    kernel = functools.partial(rblock_kernel, taps=taps, cout=Cout)
    rep2 = lambda n: (0, 0)
    rep3 = lambda n: (0, 0, 0)

    # TODO(synk): for large images (channel slab approaching VMEM size,
    # especially v7x's 64 MiB), tile H with a 1-row halo instead of whole-image
    # slabs and set vmem_limit_bytes explicitly.
    out_cm = pl.pallas_call(
        kernel,
        out_shape=jax.ShapeDtypeStruct((Cout, N * HWp), jnp.float32),
        grid_spec=pltpu.PrefetchScalarGridSpec(
            num_scalar_prefetch=0,
            grid=(N // nb,),                                   # >= 2 steps
            in_specs=[
                pl.BlockSpec((k1, L), lambda n: (0, n)),       # x slab
                pl.BlockSpec((k1, 1), rep2),                   # bn1 scale
                pl.BlockSpec((k1, 1), rep2),                   # bn1 shift
                pl.BlockSpec((9, k2, k1), rep3),               # conv1 taps
                pl.BlockSpec((k2, 1), rep2),                   # bn2 scale
                pl.BlockSpec((k2, 1), rep2),                   # bn2 shift (+b1)
                pl.BlockSpec((9, Cout, k2), rep3),             # conv2 taps
                pl.BlockSpec((Cout, 1), rep2),                 # conv2 bias
                pl.BlockSpec((9, 1, L), rep3),                 # boundary masks
            ],
            out_specs=pl.BlockSpec((Cout, L), lambda n: (0, n)),
        ),
        compiler_params=pltpu.CompilerParams(
            dimension_semantics=("parallel",)),
    )(x_cm, s1c, t1c, w1p, s2c, t2c, w2p, b2c, masks)

    out = out_cm.reshape(Cout, N, HWp)[:, :, :HW]
    return jnp.transpose(out, (1, 0, 2)).reshape(N, Cout, H, W)


def rblock_reference(x_nchw, params):
    """Pure-JAX reference (eval-mode BN, lax conv) for correctness check."""
    x = jnp.transpose(x_nchw, (0, 2, 3, 1))
    s1 = params["bn1_gamma"] / jnp.sqrt(params["bn1_var"] + EPS)
    t1 = params["bn1_beta"] - params["bn1_mean"] * s1
    s2 = params["bn2_gamma"] / jnp.sqrt(params["bn2_var"] + EPS)
    t2 = params["bn2_beta"] - params["bn2_mean"] * s2
    dn = ("NHWC", "HWIO", "NHWC")

    y = jnp.maximum(x * s1 + t1, 0.0)
    y = lax.conv_general_dilated(y, params["w1"], (1, 1), "SAME",
                                 dimension_numbers=dn) + params["b1"]
    z = jnp.maximum(y * s2 + t2, 0.0)
    z = lax.conv_general_dilated(z, params["w2"], (1, 1), "SAME",
                                 dimension_numbers=dn) + params["b2"]
    out = z + x
    return jnp.transpose(out, (0, 3, 1, 2))


def make_params(key, in_plane, out_plane):
    ks = jax.random.split(key, 12)
    p = {
        # BN1 (over in_plane channels)
        "bn1_gamma": 1.0 + 0.1 * jax.random.normal(ks[0], (in_plane,)),
        "bn1_beta": 0.1 * jax.random.normal(ks[1], (in_plane,)),
        "bn1_mean": 0.05 * jax.random.normal(ks[2], (in_plane,)),
        "bn1_var": jnp.abs(1.0 + 0.1 * jax.random.normal(ks[3], (in_plane,))),
        # conv1: HWIO (3, 3, in_plane, MIDDLE)
        "w1": 0.1 * jax.random.normal(ks[4], (3, 3, in_plane, MIDDLE)),
        "b1": 0.05 * jax.random.normal(ks[5], (MIDDLE,)),
        # BN2 (over MIDDLE channels)
        "bn2_gamma": 1.0 + 0.1 * jax.random.normal(ks[6], (MIDDLE,)),
        "bn2_beta": 0.1 * jax.random.normal(ks[7], (MIDDLE,)),
        "bn2_mean": 0.05 * jax.random.normal(ks[8], (MIDDLE,)),
        "bn2_var": jnp.abs(1.0 + 0.1 * jax.random.normal(ks[9], (MIDDLE,))),
        # conv2: HWIO (3, 3, MIDDLE, out_plane)
        "w2": 0.1 * jax.random.normal(ks[10], (3, 3, MIDDLE, out_plane)),
        "b2": 0.05 * jax.random.normal(ks[11], (out_plane,)),
    }
    return jax.tree.map(lambda a: a.astype(jnp.float32), p)


if __name__ == "__main__":
    # batch=4 so the batched path (nb=2 images per grid step, grid of 2) is
    # exercised and validated against the reference.
    N, C, H, W = 4, 4, 16, 16          # residual requires out_plane == in_plane
    key = jax.random.PRNGKey(0)
    kx, kp = jax.random.split(key)
    x = jax.random.normal(kx, (N, C, H, W), jnp.float32)
    params = make_params(kp, in_plane=C, out_plane=C)

    out = rblock_forward(x, params)
    out = jax.block_until_ready(out)

    ref = rblock_reference(x, params)
    assert out.shape == (N, C, H, W)
    assert jnp.allclose(out, ref, rtol=1e-4, atol=1e-4), (
        f"max abs err {jnp.max(jnp.abs(out - ref))}")
    print("KERNEL_OK")
</pallas_src>

<mosaic_0001>
module attributes {stable_mosaic.version = 11 : i64} {
  func.func @rblock_kernel(%arg0: i32, %arg1: memref<8x512xf32, #tpu.memory_space<vmem>>, %arg2: memref<8x1xf32, #tpu.memory_space<vmem>>, %arg3: memref<8x1xf32, #tpu.memory_space<vmem>>, %arg4: memref<9x24x8xf32, #tpu.memory_space<vmem>>, %arg5: memref<24x1xf32, #tpu.memory_space<vmem>>, %arg6: memref<24x1xf32, #tpu.memory_space<vmem>>, %arg7: memref<9x4x24xf32, #tpu.memory_space<vmem>>, %arg8: memref<4x1xf32, #tpu.memory_space<vmem>>, %arg9: memref<9x1x512xf32, #tpu.memory_space<vmem>>, %arg10: memref<4x512xf32, #tpu.memory_space<vmem>>) attributes {dimension_semantics = [#tpu.dimension_semantics<parallel>], iteration_bounds = array<i64: 2>, scalar_prefetch = 0 : i64, scratch_operands = 0 : i64, tpu.core_type = #tpu.core_type<tc>, window_params = [{transform_indices = @transform_0, window_bounds = array<i64: 8, 512>}, {pipeline_mode = #tpu.pipeline_mode<synchronous>, transform_indices = @transform_1, window_bounds = array<i64: 8, 1>}, {pipeline_mode = #tpu.pipeline_mode<synchronous>, transform_indices = @transform_2, window_bounds = array<i64: 8, 1>}, {pipeline_mode = #tpu.pipeline_mode<synchronous>, transform_indices = @transform_3, window_bounds = array<i64: 9, 24, 8>}, {pipeline_mode = #tpu.pipeline_mode<synchronous>, transform_indices = @transform_4, window_bounds = array<i64: 24, 1>}, {pipeline_mode = #tpu.pipeline_mode<synchronous>, transform_indices = @transform_5, window_bounds = array<i64: 24, 1>}, {pipeline_mode = #tpu.pipeline_mode<synchronous>, transform_indices = @transform_6, window_bounds = array<i64: 9, 4, 24>}, {pipeline_mode = #tpu.pipeline_mode<synchronous>, transform_indices = @transform_7, window_bounds = array<i64: 4, 1>}, {pipeline_mode = #tpu.pipeline_mode<synchronous>, transform_indices = @transform_8, window_bounds = array<i64: 9, 1, 512>}, {transform_indices = @transform_9, window_bounds = array<i64: 4, 512>}]} {
    %c0 = arith.constant 0 : index
    %c0_0 = arith.constant 0 : index
    %0 = vector.load %arg1[%c0, %c0_0] : memref<8x512xf32, #tpu.memory_space<vmem>>, vector<8x512xf32>
    %c0_1 = arith.constant 0 : index
    %c0_2 = arith.constant 0 : index
    %1 = vector.load %arg2[%c0_1, %c0_2] : memref<8x1xf32, #tpu.memory_space<vmem>>, vector<8x1xf32>
    %2 = vector.broadcast %1 : vector<8x1xf32> to vector<8x512xf32>
    %3 = arith.mulf %0, %2 : vector<8x512xf32>
    %c0_3 = arith.constant 0 : index
    %c0_4 = arith.constant 0 : index
    %4 = vector.load %arg3[%c0_3, %c0_4] : memref<8x1xf32, #tpu.memory_space<vmem>>, vector<8x1xf32>
    %5 = vector.broadcast %4 : vector<8x1xf32> to vector<8x512xf32>
    %6 = arith.addf %3, %5 : vector<8x512xf32>
    %cst = arith.constant 0.000000e+00 : f32
    %7 = vector.broadcast %cst : f32 to vector<8x512xf32>
    %8 = arith.maximumf %6, %7 : vector<8x512xf32>
    %c17_i32 = arith.constant 17 : i32
    %9 = tpu.dynamic_rotate %8 by %c17_i32 dim 1 : vector<8x512xf32>, i32 -> vector<8x512xf32>
    %c0_5 = arith.constant 0 : index
    %c0_6 = arith.constant 0 : index
    %c0_7 = arith.constant 0 : index
    %10 = vector.load %arg9[%c0_5, %c0_6, %c0_7] : memref<9x1x512xf32, #tpu.memory_space<vmem>>, vector<1x1x512xf32>
    %11 = vector.shape_cast %10 : vector<1x1x512xf32> to vector<1x512xf32>
    %12 = vector.broadcast %11 : vector<1x512xf32> to vector<8x512xf32>
    %13 = arith.mulf %9, %12 : vector<8x512xf32>
    %c0_8 = arith.constant 0 : index
    %c0_9 = arith.constant 0 : index
    %c0_10 = arith.constant 0 : index
    %14 = vector.load %arg4[%c0_8, %c0_9, %c0_10] : memref<9x24x8xf32, #tpu.memory_space<vmem>>, vector<1x24x8xf32>
    %15 = vector.shape_cast %14 : vector<1x24x8xf32> to vector<24x8xf32>
    %cst_11 = arith.constant dense<0.000000e+00> : vector<24x512xf32>
    %16 = tpu.matmul %15, %13, %cst_11 {dimension_numbers = #tpu.dot_dimension_numbers<[1], [0], [0], [1], [0, 0, 1, 1], [], []>} : vector<24x8xf32>, vector<8x512xf32>, vector<24x512xf32> -> vector<24x512xf32>
    %c16_i32 = arith.constant 16 : i32
    %17 = tpu.dynamic_rotate %8 by %c16_i32 dim 1 : vector<8x512xf32>, i32 -> vector<8x512xf32>
    %c1 = arith.constant 1 : index
    %c0_12 = arith.constant 0 : index
    %c0_13 = arith.constant 0 : index
    %18 = vector.load %arg9[%c1, %c0_12, %c0_13] : memref<9x1x512xf32, #tpu.memory_space<vmem>>, vector<1x1x512xf32>
    %19 = vector.shape_cast %18 : vector<1x1x512xf32> to vector<1x512xf32>
    %20 = vector.broadcast %19 : vector<1x512xf32> to vector<8x512xf32>
    %21 = arith.mulf %17, %20 : vector<8x512xf32>
    %c1_14 = arith.constant 1 : index
    %c0_15 = arith.constant 0 : index
    %c0_16 = arith.constant 0 : index
    %22 = vector.load %arg4[%c1_14, %c0_15, %c0_16] : memref<9x24x8xf32, #tpu.memory_space<vmem>>, vector<1x24x8xf32>
    %23 = vector.shape_cast %22 : vector<1x24x8xf32> to vector<24x8xf32>
    %cst_17 = arith.constant dense<0.000000e+00> : vector<24x512xf32>
    %24 = tpu.matmul %23, %21, %cst_17 {dimension_numbers = #tpu.dot_dimension_numbers<[1], [0], [0], [1], [0, 0, 1, 1], [], []>} : vector<24x8xf32>, vector<8x512xf32>, vector<24x512xf32> -> vector<24x512xf32>
    %25 = arith.addf %16, %24 : vector<24x512xf32>
    %c15_i32 = arith.constant 15 : i32
    %26 = tpu.dynamic_rotate %8 by %c15_i32 dim 1 : vector<8x512xf32>, i32 -> vector<8x512xf32>
    %c2 = arith.constant 2 : index
    %c0_18 = arith.constant 0 : index
    %c0_19 = arith.constant 0 : index
    %27 = vector.load %arg9[%c2, %c0_18, %c0_19] : memref<9x1x512xf32, #tpu.memory_space<vmem>>, vector<1x1x512xf32>
    %28 = vector.shape_cast %27 : vector<1x1x512xf32> to vector<1x512xf32>
    %29 = vector.broadcast %28 : vector<1x512xf32> to vector<8x512xf32>
    %30 = arith.mulf %26, %29 : vector<8x512xf32>
    %c2_20 = arith.constant 2 : index
    %c0_21 = arith.constant 0 : index
    %c0_22 = arith.constant 0 : index
    %31 = vector.load %arg4[%c2_20, %c0_21, %c0_22] : memref<9x24x8xf32, #tpu.memory_space<vmem>>, vector<1x24x8xf32>
    %32 = vector.shape_cast %31 : vector<1x24x8xf32> to vector<24x8xf32>
    %cst_23 = arith.constant dense<0.000000e+00> : vector<24x512xf32>
    %33 = tpu.matmul %32, %30, %cst_23 {dimension_numbers = #tpu.dot_dimension_numbers<[1], [0], [0], [1], [0, 0, 1, 1], [], []>} : vector<24x8xf32>, vector<8x512xf32>, vector<24x512xf32> -> vector<24x512xf32>
    %34 = arith.addf %25, %33 : vector<24x512xf32>
    %c1_i32 = arith.constant 1 : i32
    %35 = tpu.dynamic_rotate %8 by %c1_i32 dim 1 : vector<8x512xf32>, i32 -> vector<8x512xf32>
    %c3 = arith.constant 3 : index
    %c0_24 = arith.constant 0 : index
    %c0_25 = arith.constant 0 : index
    %36 = vector.load %arg9[%c3, %c0_24, %c0_25] : memref<9x1x512xf32, #tpu.memory_space<vmem>>, vector<1x1x512xf32>
    %37 = vector.shape_cast %36 : vector<1x1x512xf32> to vector<1x512xf32>
    %38 = vector.broadcast %37 : vector<1x512xf32> to vector<8x512xf32>
    %39 = arith.mulf %35, %38 : vector<8x512xf32>
    %c3_26 = arith.constant 3 : index
    %c0_27 = arith.constant 0 : index
    %c0_28 = arith.constant 0 : index
    %40 = vector.load %arg4[%c3_26, %c0_27, %c0_28] : memref<9x24x8xf32, #tpu.memory_space<vmem>>, vector<1x24x8xf32>
    %41 = vector.shape_cast %40 : vector<1x24x8xf32> to vector<24x8xf32>
    %cst_29 = arith.constant dense<0.000000e+00> : vector<24x512xf32>
    %42 = tpu.matmul %41, %39, %cst_29 {dimension_numbers = #tpu.dot_dimension_numbers<[1], [0], [0], [1], [0, 0, 1, 1], [], []>} : vector<24x8xf32>, vector<8x512xf32>, vector<24x512xf32> -> vector<24x512xf32>
    %43 = arith.addf %34, %42 : vector<24x512xf32>
    %c4 = arith.constant 4 : index
    %c0_30 = arith.constant 0 : index
    %c0_31 = arith.constant 0 : index
    %44 = vector.load %arg4[%c4, %c0_30, %c0_31] : memref<9x24x8xf32, #tpu.memory_space<vmem>>, vector<1x24x8xf32>
    %45 = vector.shape_cast %44 : vector<1x24x8xf32> to vector<24x8xf32>
    %cst_32 = arith.constant dense<0.000000e+00> : vector<24x512xf32>
    %46 = tpu.matmul %45, %8, %cst_32 {dimension_numbers = #tpu.dot_dimension_numbers<[1], [0], [0], [1], [0, 0, 1, 1], [], []>} : vector<24x8xf32>, vector<8x512xf32>, vector<24x512xf32> -> vector<24x512xf32>
    %47 = arith.addf %43, %46 : vector<24x512xf32>
    %c511_i32 = arith.constant 511 : i32
    %48 = tpu.dynamic_rotate %8 by %c511_i32 dim 1 : vector<8x512xf32>, i32 -> vector<8x512xf32>
    %c5 = arith.constant 5 : index
    %c0_33 = arith.constant 0 : index
    %c0_34 = arith.constant 0 : index
    %49 = vector.load %arg9[%c5, %c0_33, %c0_34] : memref<9x1x512xf32, #tpu.memory_space<vmem>>, vector<1x1x512xf32>
    %50 = vector.shape_cast %49 : vector<1x1x512xf32> to vector<1x512xf32>
    %51 = vector.broadcast %50 : vector<1x512xf32> to vector<8x512xf32>
    %52 = arith.mulf %48, %51 : vector<8x512xf32>
    %c5_35 = arith.constant 5 : index
    %c0_36 = arith.constant 0 : index
    %c0_37 = arith.constant 0 : index
    %53 = vector.load %arg4[%c5_35, %c0_36, %c0_37] : memref<9x24x8xf32, #tpu.memory_space<vmem>>, vector<1x24x8xf32>
    %54 = vector.shape_cast %53 : vector<1x24x8xf32> to vector<24x8xf32>
    %cst_38 = arith.constant dense<0.000000e+00> : vector<24x512xf32>
    %55 = tpu.matmul %54, %52, %cst_38 {dimension_numbers = #tpu.dot_dimension_numbers<[1], [0], [0], [1], [0, 0, 1, 1], [], []>} : vector<24x8xf32>, vector<8x512xf32>, vector<24x512xf32> -> vector<24x512xf32>
    %56 = arith.addf %47, %55 : vector<24x512xf32>
    %c497_i32 = arith.constant 497 : i32
    %57 = tpu.dynamic_rotate %8 by %c497_i32 dim 1 : vector<8x512xf32>, i32 -> vector<8x512xf32>
    %c6 = arith.constant 6 : index
    %c0_39 = arith.constant 0 : index
    %c0_40 = arith.constant 0 : index
    %58 = vector.load %arg9[%c6, %c0_39, %c0_40] : memref<9x1x512xf32, #tpu.memory_space<vmem>>, vector<1x1x512xf32>
    %59 = vector.shape_cast %58 : vector<1x1x512xf32> to vector<1x512xf32>
    %60 = vector.broadcast %59 : vector<1x512xf32> to vector<8x512xf32>
    %61 = arith.mulf %57, %60 : vector<8x512xf32>
    %c6_41 = arith.constant 6 : index
    %c0_42 = arith.constant 0 : index
    %c0_43 = arith.constant 0 : index
    %62 = vector.load %arg4[%c6_41, %c0_42, %c0_43] : memref<9x24x8xf32, #tpu.memory_space<vmem>>, vector<1x24x8xf32>
    %63 = vector.shape_cast %62 : vector<1x24x8xf32> to vector<24x8xf32>
    %cst_44 = arith.constant dense<0.000000e+00> : vector<24x512xf32>
    %64 = tpu.matmul %63, %61, %cst_44 {dimension_numbers = #tpu.dot_dimension_numbers<[1], [0], [0], [1], [0, 0, 1, 1], [], []>} : vector<24x8xf32>, vector<8x512xf32>, vector<24x512xf32> -> vector<24x512xf32>
    %65 = arith.addf %56, %64 : vector<24x512xf32>
    %c496_i32 = arith.constant 496 : i32
    %66 = tpu.dynamic_rotate %8 by %c496_i32 dim 1 : vector<8x512xf32>, i32 -> vector<8x512xf32>
    %c7 = arith.constant 7 : index
    %c0_45 = arith.constant 0 : index
    %c0_46 = arith.constant 0 : index
    %67 = vector.load %arg9[%c7, %c0_45, %c0_46] : memref<9x1x512xf32, #tpu.memory_space<vmem>>, vector<1x1x512xf32>
    %68 = vector.shape_cast %67 : vector<1x1x512xf32> to vector<1x512xf32>
    %69 = vector.broadcast %68 : vector<1x512xf32> to vector<8x512xf32>
    %70 = arith.mulf %66, %69 : vector<8x512xf32>
    %c7_47 = arith.constant 7 : index
    %c0_48 = arith.constant 0 : index
    %c0_49 = arith.constant 0 : index
    %71 = vector.load %arg4[%c7_47, %c0_48, %c0_49] : memref<9x24x8xf32, #tpu.memory_space<vmem>>, vector<1x24x8xf32>
    %72 = vector.shape_cast %71 : vector<1x24x8xf32> to vector<24x8xf32>
    %cst_50 = arith.constant dense<0.000000e+00> : vector<24x512xf32>
    %73 = tpu.matmul %72, %70, %cst_50 {dimension_numbers = #tpu.dot_dimension_numbers<[1], [0], [0], [1], [0, 0, 1, 1], [], []>} : vector<24x8xf32>, vector<8x512xf32>, vector<24x512xf32> -> vector<24x512xf32>
    %74 = arith.addf %65, %73 : vector<24x512xf32>
    %c495_i32 = arith.constant 495 : i32
    %75 = tpu.dynamic_rotate %8 by %c495_i32 dim 1 : vector<8x512xf32>, i32 -> vector<8x512xf32>
    %c8 = arith.constant 8 : index
    %c0_51 = arith.constant 0 : index
    %c0_52 = arith.constant 0 : index
    %76 = vector.load %arg9[%c8, %c0_51, %c0_52] : memref<9x1x512xf32, #tpu.memory_space<vmem>>, vector<1x1x512xf32>
    %77 = vector.shape_cast %76 : vector<1x1x512xf32> to vector<1x512xf32>
    %78 = vector.broadcast %77 : vector<1x512xf32> to vector<8x512xf32>
    %79 = arith.mulf %75, %78 : vector<8x512xf32>
    %c8_53 = arith.constant 8 : index
    %c0_54 = arith.constant 0 : index
    %c0_55 = arith.constant 0 : index
    %80 = vector.load %arg4[%c8_53, %c0_54, %c0_55] : memref<9x24x8xf32, #tpu.memory_space<vmem>>, vector<1x24x8xf32>
    %81 = vector.shape_cast %80 : vector<1x24x8xf32> to vector<24x8xf32>
    %cst_56 = arith.constant dense<0.000000e+00> : vector<24x512xf32>
    %82 = tpu.matmul %81, %79, %cst_56 {dimension_numbers = #tpu.dot_dimension_numbers<[1], [0], [0], [1], [0, 0, 1, 1], [], []>} : vector<24x8xf32>, vector<8x512xf32>, vector<24x512xf32> -> vector<24x512xf32>
    %83 = arith.addf %74, %82 : vector<24x512xf32>
    %c0_57 = arith.constant 0 : index
    %c0_58 = arith.constant 0 : index
    %84 = vector.load %arg5[%c0_57, %c0_58] : memref<24x1xf32, #tpu.memory_space<vmem>>, vector<24x1xf32>
    %85 = vector.broadcast %84 : vector<24x1xf32> to vector<24x512xf32>
    %86 = arith.mulf %83, %85 : vector<24x512xf32>
    %c0_59 = arith.constant 0 : index
    %c0_60 = arith.constant 0 : index
    %87 = vector.load %arg6[%c0_59, %c0_60] : memref<24x1xf32, #tpu.memory_space<vmem>>, vector<24x1xf32>
    %88 = vector.broadcast %87 : vector<24x1xf32> to vector<24x512xf32>
    %89 = arith.addf %86, %88 : vector<24x512xf32>
    %cst_61 = arith.constant 0.000000e+00 : f32
    %90 = vector.broadcast %cst_61 : f32 to vector<24x512xf32>
    %91 = arith.maximumf %89, %90 : vector<24x512xf32>
    %c17_i32_62 = arith.constant 17 : i32
    %92 = tpu.dynamic_rotate %91 by %c17_i32_62 dim 1 : vector<24x512xf32>, i32 -> vector<24x512xf32>
    %c0_63 = arith.constant 0 : index
    %c0_64 = arith.constant 0 : index
    %c0_65 = arith.constant 0 : index
    %93 = vector.load %arg7[%c0_63, %c0_64, %c0_65] : memref<9x4x24xf32, #tpu.memory_space<vmem>>, vector<1x4x24xf32>
    %94 = vector.shape_cast %93 : vector<1x4x24xf32> to vector<4x24xf32>
    %cst_66 = arith.constant dense<0.000000e+00> : vector<4x512xf32>
    %95 = tpu.matmul %94, %92, %cst_66 {dimension_numbers = #tpu.dot_dimension_numbers<[1], [0], [0], [1], [0, 0, 1, 1], [], []>} : vector<4x24xf32>, vector<24x512xf32>, vector<4x512xf32> -> vector<4x512xf32>
    %c0_67 = arith.constant 0 : index
    %c0_68 = arith.constant 0 : index
    %c0_69 = arith.constant 0 : index
    %96 = vector.load %arg9[%c0_67, %c0_68, %c0_69] : memref<9x1x512xf32, #tpu.memory_space<vmem>>, vector<1x1x512xf32>
    %97 = vector.shape_cast %96 : vector<1x1x512xf32> to vector<1x512xf32>
    %98 = vector.broadcast %97 : vector<1x512xf32> to vector<4x512xf32>
    %99 = arith.mulf %95, %98 : vector<4x512xf32>
    %c16_i32_70 = arith.constant 16 : i32
    %100 = tpu.dynamic_rotate %91 by %c16_i32_70 dim 1 : vector<24x512xf32>, i32 -> vector<24x512xf32>
    %c1_71 = arith.constant 1 : index
    %c0_72 = arith.constant 0 : index
    %c0_73 = arith.constant 0 : index
    %101 = vector.load %arg7[%c1_71, %c0_72, %c0_73] : memref<9x4x24xf32, #tpu.memory_space<vmem>>, vector<1x4x24xf32>
    %102 = vector.shape_cast %101 : vector<1x4x24xf32> to vector<4x24xf32>
    %cst_74 = arith.constant dense<0.000000e+00> : vector<4x512xf32>
    %103 = tpu.matmul %102, %100, %cst_74 {dimension_numbers = #tpu.dot_dimension_numbers<[1], [0], [0], [1], [0, 0, 1, 1], [], []>} : vector<4x24xf32>, vector<24x512xf32>, vector<4x512xf32> -> vector<4x512xf32>
    %c1_75 = arith.constant 1 : index
    %c0_76 = arith.constant 0 : index
    %c0_77 = arith.constant 0 : index
    %104 = vector.load %arg9[%c1_75, %c0_76, %c0_77] : memref<9x1x512xf32, #tpu.memory_space<vmem>>, vector<1x1x512xf32>
    %105 = vector.shape_cast %104 : vector<1x1x512xf32> to vector<1x512xf32>
    %106 = vector.broadcast %105 : vector<1x512xf32> to vector<4x512xf32>
    %107 = arith.mulf %103, %106 : vector<4x512xf32>
    %108 = arith.addf %99, %107 : vector<4x512xf32>
    %c15_i32_78 = arith.constant 15 : i32
    %109 = tpu.dynamic_rotate %91 by %c15_i32_78 dim 1 : vector<24x512xf32>, i32 -> vector<24x512xf32>
    %c2_79 = arith.constant 2 : index
    %c0_80 = arith.constant 0 : index
    %c0_81 = arith.constant 0 : index
    %110 = vector.load %arg7[%c2_79, %c0_80, %c0_81] : memref<9x4x24xf32, #tpu.memory_space<vmem>>, vector<1x4x24xf32>
    %111 = vector.shape_cast %110 : vector<1x4x24xf32> to vector<4x24xf32>
    %cst_82 = arith.constant dense<0.000000e+00> : vector<4x512xf32>
    %112 = tpu.matmul %111, %109, %cst_82 {dimension_numbers = #tpu.dot_dimension_numbers<[1], [0], [0], [1], [0, 0, 1, 1], [], []>} : vector<4x24xf32>, vector<24x512xf32>, vector<4x512xf32> -> vector<4x512xf32>
    %c2_83 = arith.constant 2 : index
    %c0_84 = arith.constant 0 : index
    %c0_85 = arith.constant 0 : index
    %113 = vector.load %arg9[%c2_83, %c0_84, %c0_85] : memref<9x1x512xf32, #tpu.memory_space<vmem>>, vector<1x1x512xf32>
    %114 = vector.shape_cast %113 : vector<1x1x512xf32> to vector<1x512xf32>
    %115 = vector.broadcast %114 : vector<1x512xf32> to vector<4x512xf32>
    %116 = arith.mulf %112, %115 : vector<4x512xf32>
    %117 = arith.addf %108, %116 : vector<4x512xf32>
    %c1_i32_86 = arith.constant 1 : i32
    %118 = tpu.dynamic_rotate %91 by %c1_i32_86 dim 1 : vector<24x512xf32>, i32 -> vector<24x512xf32>
    %c3_87 = arith.constant 3 : index
    %c0_88 = arith.constant 0 : index
    %c0_89 = arith.constant 0 : index
    %119 = vector.load %arg7[%c3_87, %c0_88, %c0_89] : memref<9x4x24xf32, #tpu.memory_space<vmem>>, vector<1x4x24xf32>
    %120 = vector.shape_cast %119 : vector<1x4x24xf32> to vector<4x24xf32>
    %cst_90 = arith.constant dense<0.000000e+00> : vector<4x512xf32>
    %121 = tpu.matmul %120, %118, %cst_90 {dimension_numbers = #tpu.dot_dimension_numbers<[1], [0], [0], [1], [0, 0, 1, 1], [], []>} : vector<4x24xf32>, vector<24x512xf32>, vector<4x512xf32> -> vector<4x512xf32>
    %c3_91 = arith.constant 3 : index
    %c0_92 = arith.constant 0 : index
    %c0_93 = arith.constant 0 : index
    %122 = vector.load %arg9[%c3_91, %c0_92, %c0_93] : memref<9x1x512xf32, #tpu.memory_space<vmem>>, vector<1x1x512xf32>
    %123 = vector.shape_cast %122 : vector<1x1x512xf32> to vector<1x512xf32>
    %124 = vector.broadcast %123 : vector<1x512xf32> to vector<4x512xf32>
    %125 = arith.mulf %121, %124 : vector<4x512xf32>
    %126 = arith.addf %117, %125 : vector<4x512xf32>
    %c4_94 = arith.constant 4 : index
    %c0_95 = arith.constant 0 : index
    %c0_96 = arith.constant 0 : index
    %127 = vector.load %arg7[%c4_94, %c0_95, %c0_96] : memref<9x4x24xf32, #tpu.memory_space<vmem>>, vector<1x4x24xf32>
    %128 = vector.shape_cast %127 : vector<1x4x24xf32> to vector<4x24xf32>
    %cst_97 = arith.constant dense<0.000000e+00> : vector<4x512xf32>
    %129 = tpu.matmul %128, %91, %cst_97 {dimension_numbers = #tpu.dot_dimension_numbers<[1], [0], [0], [1], [0, 0, 1, 1], [], []>} : vector<4x24xf32>, vector<24x512xf32>, vector<4x512xf32> -> vector<4x512xf32>
    %130 = arith.addf %126, %129 : vector<4x512xf32>
    %c511_i32_98 = arith.constant 511 : i32
    %131 = tpu.dynamic_rotate %91 by %c511_i32_98 dim 1 : vector<24x512xf32>, i32 -> vector<24x512xf32>
    %c5_99 = arith.constant 5 : index
    %c0_100 = arith.constant 0 : index
    %c0_101 = arith.constant 0 : index
    %132 = vector.load %arg7[%c5_99, %c0_100, %c0_101] : memref<9x4x24xf32, #tpu.memory_space<vmem>>, vector<1x4x24xf32>
    %133 = vector.shape_cast %132 : vector<1x4x24xf32> to vector<4x24xf32>
    %cst_102 = arith.constant dense<0.000000e+00> : vector<4x512xf32>
    %134 = tpu.matmul %133, %131, %cst_102 {dimension_numbers = #tpu.dot_dimension_numbers<[1], [0], [0], [1], [0, 0, 1, 1], [], []>} : vector<4x24xf32>, vector<24x512xf32>, vector<4x512xf32> -> vector<4x512xf32>
    %c5_103 = arith.constant 5 : index
    %c0_104 = arith.constant 0 : index
    %c0_105 = arith.constant 0 : index
    %135 = vector.load %arg9[%c5_103, %c0_104, %c0_105] : memref<9x1x512xf32, #tpu.memory_space<vmem>>, vector<1x1x512xf32>
    %136 = vector.shape_cast %135 : vector<1x1x512xf32> to vector<1x512xf32>
    %137 = vector.broadcast %136 : vector<1x512xf32> to vector<4x512xf32>
    %138 = arith.mulf %134, %137 : vector<4x512xf32>
    %139 = arith.addf %130, %138 : vector<4x512xf32>
    %c497_i32_106 = arith.constant 497 : i32
    %140 = tpu.dynamic_rotate %91 by %c497_i32_106 dim 1 : vector<24x512xf32>, i32 -> vector<24x512xf32>
    %c6_107 = arith.constant 6 : index
    %c0_108 = arith.constant 0 : index
    %c0_109 = arith.constant 0 : index
    %141 = vector.load %arg7[%c6_107, %c0_108, %c0_109] : memref<9x4x24xf32, #tpu.memory_space<vmem>>, vector<1x4x24xf32>
    %142 = vector.shape_cast %141 : vector<1x4x24xf32> to vector<4x24xf32>
    %cst_110 = arith.constant dense<0.000000e+00> : vector<4x512xf32>
    %143 = tpu.matmul %142, %140, %cst_110 {dimension_numbers = #tpu.dot_dimension_numbers<[1], [0], [0], [1], [0, 0, 1, 1], [], []>} : vector<4x24xf32>, vector<24x512xf32>, vector<4x512xf32> -> vector<4x512xf32>
    %c6_111 = arith.constant 6 : index
    %c0_112 = arith.constant 0 : index
    %c0_113 = arith.constant 0 : index
    %144 = vector.load %arg9[%c6_111, %c0_112, %c0_113] : memref<9x1x512xf32, #tpu.memory_space<vmem>>, vector<1x1x512xf32>
    %145 = vector.shape_cast %144 : vector<1x1x512xf32> to vector<1x512xf32>
    %146 = vector.broadcast %145 : vector<1x512xf32> to vector<4x512xf32>
    %147 = arith.mulf %143, %146 : vector<4x512xf32>
    %148 = arith.addf %139, %147 : vector<4x512xf32>
    %c496_i32_114 = arith.constant 496 : i32
    %149 = tpu.dynamic_rotate %91 by %c496_i32_114 dim 1 : vector<24x512xf32>, i32 -> vector<24x512xf32>
    %c7_115 = arith.constant 7 : index
    %c0_116 = arith.constant 0 : index
    %c0_117 = arith.constant 0 : index
    %150 = vector.load %arg7[%c7_115, %c0_116, %c0_117] : memref<9x4x24xf32, #tpu.memory_space<vmem>>, vector<1x4x24xf32>
    %151 = vector.shape_cast %150 : vector<1x4x24xf32> to vector<4x24xf32>
    %cst_118 = arith.constant dense<0.000000e+00> : vector<4x512xf32>
    %152 = tpu.matmul %151, %149, %cst_118 {dimension_numbers = #tpu.dot_dimension_numbers<[1], [0], [0], [1], [0, 0, 1, 1], [], []>} : vector<4x24xf32>, vector<24x512xf32>, vector<4x512xf32> -> vector<4x512xf32>
    %c7_119 = arith.constant 7 : index
    %c0_120 = arith.constant 0 : index
    %c0_121 = arith.constant 0 : index
    %153 = vector.load %arg9[%c7_119, %c0_120, %c0_121] : memref<9x1x512xf32, #tpu.memory_space<vmem>>, vector<1x1x512xf32>
    %154 = vector.shape_cast %153 : vector<1x1x512xf32> to vector<1x512xf32>
    %155 = vector.broadcast %154 : vector<1x512xf32> to vector<4x512xf32>
    %156 = arith.mulf %152, %155 : vector<4x512xf32>
    %157 = arith.addf %148, %156 : vector<4x512xf32>
    %c495_i32_122 = arith.constant 495 : i32
    %158 = tpu.dynamic_rotate %91 by %c495_i32_122 dim 1 : vector<24x512xf32>, i32 -> vector<24x512xf32>
    %c8_123 = arith.constant 8 : index
    %c0_124 = arith.constant 0 : index
    %c0_125 = arith.constant 0 : index
    %159 = vector.load %arg7[%c8_123, %c0_124, %c0_125] : memref<9x4x24xf32, #tpu.memory_space<vmem>>, vector<1x4x24xf32>
    %160 = vector.shape_cast %159 : vector<1x4x24xf32> to vector<4x24xf32>
    %cst_126 = arith.constant dense<0.000000e+00> : vector<4x512xf32>
    %161 = tpu.matmul %160, %158, %cst_126 {dimension_numbers = #tpu.dot_dimension_numbers<[1], [0], [0], [1], [0, 0, 1, 1], [], []>} : vector<4x24xf32>, vector<24x512xf32>, vector<4x512xf32> -> vector<4x512xf32>
    %c8_127 = arith.constant 8 : index
    %c0_128 = arith.constant 0 : index
    %c0_129 = arith.constant 0 : index
    %162 = vector.load %arg9[%c8_127, %c0_128, %c0_129] : memref<9x1x512xf32, #tpu.memory_space<vmem>>, vector<1x1x512xf32>
    %163 = vector.shape_cast %162 : vector<1x1x512xf32> to vector<1x512xf32>
    %164 = vector.broadcast %163 : vector<1x512xf32> to vector<4x512xf32>
    %165 = arith.mulf %161, %164 : vector<4x512xf32>
    %166 = arith.addf %157, %165 : vector<4x512xf32>
    %c0_130 = arith.constant 0 : index
    %c0_131 = arith.constant 0 : index
    %167 = vector.load %arg8[%c0_130, %c0_131] : memref<4x1xf32, #tpu.memory_space<vmem>>, vector<4x1xf32>
    %168 = vector.broadcast %167 : vector<4x1xf32> to vector<4x512xf32>
    %169 = arith.addf %166, %168 : vector<4x512xf32>
    %170 = vector.extract_strided_slice %0 {offsets = [0, 0], sizes = [4, 512], strides = [1, 1]} : vector<8x512xf32> to vector<4x512xf32>
    %171 = arith.addf %169, %170 : vector<4x512xf32>
    %c0_132 = arith.constant 0 : index
    %c0_133 = arith.constant 0 : index
    %172 = vector.load %arg10[%c0_132, %c0_133] : memref<4x512xf32, #tpu.memory_space<vmem>>, vector<4x512xf32>
    tpu.vector_store %arg10[%c0_132, %c0_133], %171 {strides = array<i32>} : memref<4x512xf32, #tpu.memory_space<vmem>>, vector<4x512xf32>,
    return
  }
  func.func @transform_0(%arg0: i32) -> (i32, i32) {
    %c0_i32 = arith.constant 0 : i32
    %c0_i32_0 = arith.constant 0 : i32
    return %c0_i32, %arg0 : i32, i32
  }
  func.func @transform_1(%arg0: i32) -> (i32, i32) {
    %c0_i32 = arith.constant 0 : i32
    %c0_i32_0 = arith.constant 0 : i32
    %c0_i32_1 = arith.constant 0 : i32
    return %c0_i32, %c0_i32_0 : i32, i32
  }
  func.func @transform_2(%arg0: i32) -> (i32, i32) {
    %c0_i32 = arith.constant 0 : i32
    %c0_i32_0 = arith.constant 0 : i32
    %c0_i32_1 = arith.constant 0 : i32
    return %c0_i32, %c0_i32_0 : i32, i32
  }
  func.func @transform_3(%arg0: i32) -> (i32, i32, i32) {
    %c0_i32 = arith.constant 0 : i32
    %c0_i32_0 = arith.constant 0 : i32
    %c0_i32_1 = arith.constant 0 : i32
    %c0_i32_2 = arith.constant 0 : i32
    return %c0_i32, %c0_i32_0, %c0_i32_1 : i32, i32, i32
  }
  func.func @transform_4(%arg0: i32) -> (i32, i32) {
    %c0_i32 = arith.constant 0 : i32
    %c0_i32_0 = arith.constant 0 : i32
    %c0_i32_1 = arith.constant 0 : i32
    return %c0_i32, %c0_i32_0 : i32, i32
  }
  func.func @transform_5(%arg0: i32) -> (i32, i32) {
    %c0_i32 = arith.constant 0 : i32
    %c0_i32_0 = arith.constant 0 : i32
    %c0_i32_1 = arith.constant 0 : i32
    return %c0_i32, %c0_i32_0 : i32, i32
  }
  func.func @transform_6(%arg0: i32) -> (i32, i32, i32) {
    %c0_i32 = arith.constant 0 : i32
    %c0_i32_0 = arith.constant 0 : i32
    %c0_i32_1 = arith.constant 0 : i32
    %c0_i32_2 = arith.constant 0 : i32
    return %c0_i32, %c0_i32_0, %c0_i32_1 : i32, i32, i32
  }
  func.func @transform_7(%arg0: i32) -> (i32, i32) {
    %c0_i32 = arith.constant 0 : i32
    %c0_i32_0 = arith.constant 0 : i32
    %c0_i32_1 = arith.constant 0 : i32
    return %c0_i32, %c0_i32_0 : i32, i32
  }
  func.func @transform_8(%arg0: i32) -> (i32, i32, i32) {
    %c0_i32 = arith.constant 0 : i32
    %c0_i32_0 = arith.constant 0 : i32
    %c0_i32_1 = arith.constant 0 : i32
    %c0_i32_2 = arith.constant 0 : i32
    return %c0_i32, %c0_i32_0, %c0_i32_1 : i32, i32, i32
  }
  func.func @transform_9(%arg0: i32) -> (i32, i32) {
    %c0_i32 = arith.constant 0 : i32
    %c0_i32_0 = arith.constant 0 : i32
    return %c0_i32, %arg0 : i32, i32
  }
}

</mosaic_0001>

<llo_original>
// kernel: tpu_custom_call.1
$region0: #{tpu_custom_call.1}
  #allocation0 [shape = 'u32[]', space=smem, size = 0x4, offset = 0x4, fixed_abs, tag = 'smem constant byte address 0x4 - core index']
  #allocation1 [shape = 'u32[144,128]{1,0:T(1,128)}', space=vmem, size = 0x12000, scoped, tag = 'internal scratch']
  %s0 = inlined_call_operand.vmem [shape: f32[8,1024], index: 0, kind: input, shape index: {}]
  %s1 = inlined_call_operand.vmem [shape: f32[8,1], index: 1, kind: input, shape index: {}]
  %s2 = inlined_call_operand.vmem [shape: f32[8,1], index: 2, kind: input, shape index: {}]
  %s3 = inlined_call_operand.vmem [shape: f32[9,24,8], index: 3, kind: input, shape index: {}]
  %s4 = inlined_call_operand.vmem [shape: f32[24,1], index: 4, kind: input, shape index: {}]
  %s5 = inlined_call_operand.vmem [shape: f32[24,1], index: 5, kind: input, shape index: {}]
  %s6 = inlined_call_operand.vmem [shape: f32[9,4,24], index: 6, kind: input, shape index: {}]
  %s7 = inlined_call_operand.vmem [shape: f32[4,1], index: 7, kind: input, shape index: {}]
  %s8 = inlined_call_operand.vmem [shape: f32[9,1,512], index: 8, kind: input, shape index: {}]
  %s9 = inlined_call_operand.hbm [shape: f32[4,1024], index: 9, kind: output, shape index: {}]
  %s10 = sld [smem:[#allocation0]]
  $region69: #{tpu_custom_call.1} parent=0
    _
  %s12 = ssub.s32 1, %s10
  %s13 = scalar_select 0, %s12, %s10
  $region1: #{tpu_custom_call.1} parent=0
    #allocation2 [shape = 'u8[16384]{0}', space=vmem, size = 0x4000, scoped, tag = 'output window, operand 0']
    #allocation3 [shape = 's32[2]{0}', space=sflag, size = 0x8, scoped, tag = 'scoped memory for tpu_custom_call.1']
    %14 = vsyncpa [#allocation3], 0
    %s15 = scalar_lea.sflag [#allocation3], 1
    %16 = vsyncpa %s15, 0
    loop: start=0, step=1, limit=4
    $region2: #{tpu_custom_call.1} parent=1 // loop_pre_header
      _
    $region3: #{tpu_custom_call.1} parent=1 // loop_header
      %s18 = sphi 0, %s22
      %p19 = scmp.ge.s32.totalorder %s18, 4
      %s28 = sphi 0, %s30
      %s31 = sphi 0, %s28
      %s32 = sphi 0, %s31
      %s48 = sphi 0, %s32
      %s52 = sphi 0, %s52
      %s54 = sphi 0, %s52
      %s55 = sphi 0, %s54
      %s69 = sphi 0, %s55
      %s73 = sphi 0, %s73
      %s75 = sphi 0, %s73
      %s76 = sphi 0, %s75
      %s90 = sphi 0, %s76
      %s94 = sphi 0, %s94
      %s96 = sphi 0, %s94
      %s97 = sphi 0, %s96
      %s111 = sphi 0, %s97
      %s115 = sphi 0, %s115
      %s117 = sphi 0, %s115
      %s118 = sphi 0, %s117
      %s132 = sphi 0, %s118
      %s136 = sphi 0, %s136
      %s138 = sphi 0, %s136
      %s139 = sphi 0, %s138
      %s153 = sphi 0, %s139
      %s157 = sphi 0, %s157
      %s159 = sphi 0, %s157
      %s160 = sphi 0, %s159
      %s174 = sphi 0, %s160
      %s178 = sphi 0, %s178
      %s180 = sphi 0, %s178
      %s181 = sphi 0, %s180
      %s195 = sphi 0, %s181
      %s199 = sphi 0, %s199
      %s201 = sphi 0, %s199
      %s202 = sphi 0, %s201
      %s216 = sphi 0, %s202
      %s222 = sphi 0, %s224
      %s225 = sphi 0, %s222
      %s226 = sphi 0, %s225
      %s242 = sphi 0, %s226
    $region4: #{tpu_custom_call.1} parent=1 // loop_header_branch
      %21 = sbr.rel (%p19) target = $region8
    $region5: #{tpu_custom_call.1} parent=1 // loop_body
      %s23 = ssub.s32 %s18, 1
      %s24 = ssub.s32 %s18, 2
      %s25 = sadd.s32 %s18, 1
      %s26 = ssub.s32 %s18, %s25
      %p27 = scmp.eq.s32.totalorder %s26, 0
      %s29 = sadd.s32 %s28, 1
      %s30 = scalar_select %p27, %s28, %s29
      %p33 = pneg %p27
      %p34 = scmp.eq.s32.totalorder %s18, 1
      %p35 = por %p33, %p34
      %p36 = scmp.ne.s32.totalorder %s28, %s31
      %p37 = scmp.eq.s32.totalorder %s18, 0
      %p38 = por %p36, %p37
      %p39 = scmp.ne.s32.totalorder %s28, %s31
      %p40 = scmp.eq.s32.totalorder %s23, 1
      %p41 = por %p39, %p40
      %p42 = scmp.ne.s32.totalorder %s31, %s32
      %p43 = scmp.eq.s32.totalorder %s23, 0
      %p44 = por %p42, %p43
      %p45 = scmp.ne.s32.totalorder %s31, %s32
      %p46 = scmp.eq.s32.totalorder %s24, 1
      %p47 = por %p45, %p46
      %p49 = scmp.ne.s32.totalorder %s32, %s48
      %p50 = scmp.eq.s32.totalorder %s24, 0
      %p51 = por %p49, %p50
      %s53 = sadd.s32 %s52, 1
      %p56 = scmp.eq.s32.totalorder %s18, 1
      %p57 = scmp.ne.s32.totalorder %s52, %s54
      %p58 = scmp.eq.s32.totalorder %s18, 0
      %p59 = por %p57, %p58
      %p60 = scmp.ne.s32.totalorder %s52, %s54
      %p61 = scmp.eq.s32.totalorder %s23, 1
      %p62 = por %p60, %p61
      %p63 = scmp.ne.s32.totalorder %s54, %s55
      %p64 = scmp.eq.s32.totalorder %s23, 0
      %p65 = por %p63, %p64
      %p66 = scmp.ne.s32.totalorder %s54, %s55
      %p67 = scmp.eq.s32.totalorder %s24, 1
      %p68 = por %p66, %p67
      %p70 = scmp.ne.s32.totalorder %s55, %s69
      %p71 = scmp.eq.s32.totalorder %s24, 0
      %p72 = por %p70, %p71
      %s74 = sadd.s32 %s73, 1
      %p77 = scmp.eq.s32.totalorder %s18, 1
      %p78 = scmp.ne.s32.totalorder %s73, %s75
      %p79 = scmp.eq.s32.totalorder %s18, 0
      %p80 = por %p78, %p79
      %p81 = scmp.ne.s32.totalorder %s73, %s75
      %p82 = scmp.eq.s32.totalorder %s23, 1
      %p83 = por %p81, %p82
      %p84 = scmp.ne.s32.totalorder %s75, %s76
      %p85 = scmp.eq.s32.totalorder %s23, 0
      %p86 = por %p84, %p85
      %p87 = scmp.ne.s32.totalorder %s75, %s76
      %p88 = scmp.eq.s32.totalorder %s24, 1
      %p89 = por %p87, %p88
      %p91 = scmp.ne.s32.totalorder %s76, %s90
      %p92 = scmp.eq.s32.totalorder %s24, 0
      %p93 = por %p91, %p92
      %s95 = sadd.s32 %s94, 1
      %p98 = scmp.eq.s32.totalorder %s18, 1
      %p99 = scmp.ne.s32.totalorder %s94, %s96
      %p100 = scmp.eq.s32.totalorder %s18, 0
      %p101 = por %p99, %p100
      %p102 = scmp.ne.s32.totalorder %s94, %s96
      %p103 = scmp.eq.s32.totalorder %s23, 1
      %p104 = por %p102, %p103
      %p105 = scmp.ne.s32.totalorder %s96, %s97
      %p106 = scmp.eq.s32.totalorder %s23, 0
      %p107 = por %p105, %p106
      %p108 = scmp.ne.s32.totalorder %s96, %s97
      %p109 = scmp.eq.s32.totalorder %s24, 1
      %p110 = por %p108, %p109
      %p112 = scmp.ne.s32.totalorder %s97, %s111
      %p113 = scmp.eq.s32.totalorder %s24, 0
      %p114 = por %p112, %p113
      %s116 = sadd.s32 %s115, 1
      %p119 = scmp.eq.s32.totalorder %s18, 1
      %p120 = scmp.ne.s32.totalorder %s115, %s117
      %p121 = scmp.eq.s32.totalorder %s18, 0
      %p122 = por %p120, %p121
      %p123 = scmp.ne.s32.totalorder %s115, %s117
      %p124 = scmp.eq.s32.totalorder %s23, 1
      %p125 = por %p123, %p124
      %p126 = scmp.ne.s32.totalorder %s117, %s118
      %p127 = scmp.eq.s32.totalorder %s23, 0
      %p128 = por %p126, %p127
      %p129 = scmp.ne.s32.totalorder %s117, %s118
      %p130 = scmp.eq.s32.totalorder %s24, 1
      %p131 = por %p129, %p130
      %p133 = scmp.ne.s32.totalorder %s118, %s132
      %p134 = scmp.eq.s32.totalorder %s24, 0
      %p135 = por %p133, %p134
      %s137 = sadd.s32 %s136, 1
      %p140 = scmp.eq.s32.totalorder %s18, 1
      %p141 = scmp.ne.s32.totalorder %s136, %s138
      %p142 = scmp.eq.s32.totalorder %s18, 0
      %p143 = por %p141, %p142
      %p144 = scmp.ne.s32.totalorder %s136, %s138
      %p145 = scmp.eq.s32.totalorder %s23, 1
      %p146 = por %p144, %p145
      %p147 = scmp.ne.s32.totalorder %s138, %s139
      %p148 = scmp.eq.s32.totalorder %s23, 0
      %p149 = por %p147, %p148
      %p150 = scmp.ne.s32.totalorder %s138, %s139
      %p151 = scmp.eq.s32.totalorder %s24, 1
      %p152 = por %p150, %p151
      %p154 = scmp.ne.s32.totalorder %s139, %s153
      %p155 = scmp.eq.s32.totalorder %s24, 0
      %p156 = por %p154, %p155
      %s158 = sadd.s32 %s157, 1
      %p161 = scmp.eq.s32.totalorder %s18, 1
      %p162 = scmp.ne.s32.totalorder %s157, %s159
      %p163 = scmp.eq.s32.totalorder %s18, 0
      %p164 = por %p162, %p163
      %p165 = scmp.ne.s32.totalorder %s157, %s159
      %p166 = scmp.eq.s32.totalorder %s23, 1
      %p167 = por %p165, %p166
      %p168 = scmp.ne.s32.totalorder %s159, %s160
      %p169 = scmp.eq.s32.totalorder %s23, 0
      %p170 = por %p168, %p169
      %p171 = scmp.ne.s32.totalorder %s159, %s160
      %p172 = scmp.eq.s32.totalorder %s24, 1
      %p173 = por %p171, %p172
      %p175 = scmp.ne.s32.totalorder %s160, %s174
      %p176 = scmp.eq.s32.totalorder %s24, 0
      %p177 = por %p175, %p176
      %s179 = sadd.s32 %s178, 1
      %p182 = scmp.eq.s32.totalorder %s18, 1
      %p183 = scmp.ne.s32.totalorder %s178, %s180
      %p184 = scmp.eq.s32.totalorder %s18, 0
      %p185 = por %p183, %p184
      %p186 = scmp.ne.s32.totalorder %s178, %s180
      %p187 = scmp.eq.s32.totalorder %s23, 1
      %p188 = por %p186, %p187
      %p189 = scmp.ne.s32.totalorder %s180, %s181
      %p190 = scmp.eq.s32.totalorder %s23, 0
      %p191 = por %p189, %p190
      %p192 = scmp.ne.s32.totalorder %s180, %s181
      %p193 = scmp.eq.s32.totalorder %s24, 1
      %p194 = por %p192, %p193
      %p196 = scmp.ne.s32.totalorder %s181, %s195
      %p197 = scmp.eq.s32.totalorder %s24, 0
      %p198 = por %p196, %p197
      %s200 = sadd.s32 %s199, 1
      %p203 = scmp.eq.s32.totalorder %s18, 1
      %p204 = scmp.ne.s32.totalorder %s199, %s201
      %p205 = scmp.eq.s32.totalorder %s18, 0
      %p206 = por %p204, %p205
      %p207 = scmp.ne.s32.totalorder %s199, %s201
      %p208 = scmp.eq.s32.totalorder %s23, 1
      %p209 = por %p207, %p208
      %p210 = scmp.ne.s32.totalorder %s201, %s202
      %p211 = scmp.eq.s32.totalorder %s23, 0
      %p212 = por %p210, %p211
      %p213 = scmp.ne.s32.totalorder %s201, %s202
      %p214 = scmp.eq.s32.totalorder %s24, 1
      %p215 = por %p213, %p214
      %p217 = scmp.ne.s32.totalorder %s202, %s216
      %p218 = scmp.eq.s32.totalorder %s24, 0
      %p219 = por %p217, %p218
      %s220 = ssub.s32 %s18, %s25
      %p221 = scmp.eq.s32.totalorder %s220, 0
      %s223 = sadd.s32 %s222, 1
      %s224 = scalar_select %p221, %s222, %s223
      %p227 = pneg %p221
      %p228 = scmp.eq.s32.totalorder %s18, 1
      %p229 = por %p227, %p228
      %p230 = scmp.ne.s32.totalorder %s222, %s225
      %p231 = scmp.eq.s32.totalorder %s18, 0
      %p232 = por %p230, %p231
      %p233 = scmp.ne.s32.totalorder %s222, %s225
      %p234 = scmp.eq.s32.totalorder %s23, 1
      %p235 = por %p233, %p234
      %p236 = scmp.ne.s32.totalorder %s225, %s226
      %p237 = scmp.eq.s32.totalorder %s23, 0
      %p238 = por %p236, %p237
      %p239 = scmp.ne.s32.totalorder %s225, %s226
      %p240 = scmp.eq.s32.totalorder %s24, 1
      %p241 = por %p239, %p240
      %p243 = scmp.ne.s32.totalorder %s226, %s242
      %p244 = scmp.eq.s32.totalorder %s24, 0
      %p245 = por %p243, %p244
      %p246 = scmp.le.s32.totalorder 1, %s18
      %p247 = scmp.lt.s32.totalorder %s18, 3
      %p248 = pnand %p246, %p247
      %p249 = pneg %p248
      // Predicated region
      $region9: #{tpu_custom_call.1} parent=5 // pred_check
        _
      $region10: #{tpu_custom_call.1} parent=5 // pred_check_branch
        %251 = sbr.rel (%p248) target = $region12
      $region11: #{tpu_custom_call.1} parent=5 // pred_region
        %s252 = ssub.s32 %s18, 1
        // Predicated region
        $region13: #{tpu_custom_call.1} parent=11 // pred_check
          %p253 = pneg %p65
        $region14: #{tpu_custom_call.1} parent=11 // pred_check_branch
          %255 = sbr.rel (%p253) target = $region16
        $region15: #{tpu_custom_call.1} parent=11 // pred_region
          _
        $region16: #{tpu_custom_call.1} parent=11 // pred_fallthru
          _
        // Predicated region
        $region17: #{tpu_custom_call.1} parent=11 // pred_check
          %p256 = pneg %p86
        $region18: #{tpu_custom_call.1} parent=11 // pred_check_branch
          %258 = sbr.rel (%p256) target = $region20
        $region19: #{tpu_custom_call.1} parent=11 // pred_region
          _
        $region20: #{tpu_custom_call.1} parent=11 // pred_fallthru
          _
        // Predicated region
        $region21: #{tpu_custom_call.1} parent=11 // pred_check
          %p259 = pneg %p107
        $region22: #{tpu_custom_call.1} parent=11 // pred_check_branch
          %261 = sbr.rel (%p259) target = $region24
        $region23: #{tpu_custom_call.1} parent=11 // pred_region
          _
        $region24: #{tpu_custom_call.1} parent=11 // pred_fallthru
          _
        // Predicated region
        $region25: #{tpu_custom_call.1} parent=11 // pred_check
          %p262 = pneg %p128
        $region26: #{tpu_custom_call.1} parent=11 // pred_check_branch
          %264 = sbr.rel (%p262) target = $region28
        $region27: #{tpu_custom_call.1} parent=11 // pred_region
          _
        $region28: #{tpu_custom_call.1} parent=11 // pred_fallthru
          _
        // Predicated region
        $region29: #{tpu_custom_call.1} parent=11 // pred_check
          %p265 = pneg %p149
        $region30: #{tpu_custom_call.1} parent=11 // pred_check_branch
          %267 = sbr.rel (%p265) target = $region32
        $region31: #{tpu_custom_call.1} parent=11 // pred_region
          _
        $region32: #{tpu_custom_call.1} parent=11 // pred_fallthru
          _
        // Predicated region
        $region33: #{tpu_custom_call.1} parent=11 // pred_check
          %p268 = pneg %p170
        $region34: #{tpu_custom_call.1} parent=11 // pred_check_branch
          %270 = sbr.rel (%p268) target = $region36
        $region35: #{tpu_custom_call.1} parent=11 // pred_region
          _
        $region36: #{tpu_custom_call.1} parent=11 // pred_fallthru
          _
        // Predicated region
        $region37: #{tpu_custom_call.1} parent=11 // pred_check
          %p271 = pneg %p191
        $region38: #{tpu_custom_call.1} parent=11 // pred_check_branch
          %273 = sbr.rel (%p271) target = $region40
        $region39: #{tpu_custom_call.1} parent=11 // pred_region
          _
        $region40: #{tpu_custom_call.1} parent=11 // pred_fallthru
          _
        // Predicated region
        $region41: #{tpu_custom_call.1} parent=11 // pred_check
          %p274 = pneg %p212
        $region42: #{tpu_custom_call.1} parent=11 // pred_check_branch
          %276 = sbr.rel (%p274) target = $region44
        $region43: #{tpu_custom_call.1} parent=11 // pred_region
          _
        $region44: #{tpu_custom_call.1} parent=11 // pred_fallthru
          _
      $region12: #{tpu_custom_call.1} parent=5 // pred_fallthru
        _
      %p277 = scmp.lt.s32.totalorder %s18, 2
      // Predicated region
      $region45: #{tpu_custom_call.1} parent=5 // pred_check
        %p278 = pneg %p277
      $region46: #{tpu_custom_call.1} parent=5 // pred_check_branch
        %280 = sbr.rel (%p278) target = $region48
      $region47: #{tpu_custom_call.1} parent=5 // pred_region
        // Predicated region
        $region49: #{tpu_custom_call.1} parent=47 // pred_check
          %p281 = pneg %p38
        $region50: #{tpu_custom_call.1} parent=47 // pred_check_branch
          %283 = sbr.rel (%p281) target = $region52
        $region51: #{tpu_custom_call.1} parent=47 // pred_region
          %s284 = smul.u32 4, %s18
          %p285 = scmp.lt.s32.totalorder %s284, 7
          %s286 = scalar_select %p285, %s284, 7
          %s287 = smul.addr %s286, 8
          %s288 = scalar_lea.vmem %s0, %s287
          %s289 = smul.u32 4, %s18
        $region52: #{tpu_custom_call.1} parent=47 // pred_fallthru
          _
      $region48: #{tpu_custom_call.1} parent=5 // pred_fallthru
        _
      %p290 = scmp.le.s32.totalorder 1, %s18
      %p291 = scmp.lt.s32.totalorder %s18, 3
      %p292 = pnand %p290, %p291
      %p293 = pneg %p292
      // Predicated region
      $region53: #{tpu_custom_call.1} parent=5 // pred_check
        _
      $region54: #{tpu_custom_call.1} parent=5 // pred_check_branch
        %295 = sbr.rel (%p292) target = $region56
      $region55: #{tpu_custom_call.1} parent=5 // pred_region
        %s296 = ssub.s32 %s18, 1
        %s297 = smul.u32 4, %s23
        %p298 = scmp.lt.s32.totalorder %s297, 7
        %s299 = scalar_select %p298, %s297, 7
        %s300 = smul.addr %s299, 8
        %s301 = scalar_lea.vmem %s0, %s300
        %p302 = pneg %p44
        %p303 = pneg %p41
        %p304 = pneg %p65
        %p305 = pneg %p62
        %p306 = pneg %p86
        %p307 = pneg %p83
        %p308 = pneg %p107
        %p309 = pneg %p104
        %p310 = pneg %p128
        %p311 = pneg %p125
        %p312 = pneg %p149
        %p313 = pneg %p146
        %p314 = pneg %p170
        %p315 = pneg %p167
        %p316 = pneg %p191
        %p317 = pneg %p188
        %p318 = pneg %p212
        %p319 = pneg %p209
        %p320 = pneg %p238
        %p321 = pneg %p235
        %s322 = sand.u32 %s225, 1
        %s323 = scalar_lea.sflag [#allocation3], %s322
        %s324 = sand.u32 %s225, 1
        %s325 = smul.addr %s324, 16
        %s326 = scalar_lea.vmem [#allocation2], %s325
        %s327 = smul.u32 4, %s23
        %p328 = scmp.lt.s32.totalorder %s327, 7
        %s329 = scalar_select %p328, %s327, 7
        %s330 = smul.addr %s329, 8
        %s331 = scalar_lea.vmem %s0, %s330
        %s332 = smul.u32 4, %s23
        %s333 = smul.u32 4, %s23
        %v334 = vld [vmem:[%s331] sm:$0xff]
        %v335 = vld [vmem:[%s331 + $0x8] sm:$0xff]
        %v336 = vld [vmem:[%s331 + $0x10] sm:$0xff]
        %v337 = vld [vmem:[%s331 + $0x18] sm:$0xff]
        %v338 = vld [vmem:[%s1] sm:$0xff]
        %340 = vset.pattern.permute.xlu0 0
        %341 = vperm.xlu0 %340, %v338
        %v342 = vpop.permute.xlu0 %341
        %v344 = vmul.f32 %v334, %v342
        %v345 = vmul.f32 %v335, %v342
        %v346 = vmul.f32 %v336, %v342
        %v347 = vmul.f32 %v337, %v342
        %v348 = vld [vmem:[%s2] sm:$0xff]
        %350 = vset.pattern.permute.xlu0 0
        %351 = vperm.xlu0 %350, %v348
        %v352 = vpop.permute.xlu0 %351
        %v354 = vadd.f32 %v344, %v352
        %v355 = vadd.f32 %v345, %v352
        %v356 = vadd.f32 %v346, %v352
        %v357 = vadd.f32 %v347, %v352
        %v358 = vmax.f32 %v354, 0.0
        %v359 = vmax.f32 %v355, 0.0
        %v360 = vmax.f32 %v356, 0.0
        %v361 = vmax.f32 %v357, 0.0
        %362 = vrot.lane.b32.xlu0 %v358, 17
        %v363 = vpop.permute.xlu0 %362
        %364 = vrot.lane.b32.xlu0 %v359, 17
        %v365 = vpop.permute.xlu0 %364
        %366 = vrot.lane.b32.xlu0 %v360, 17
        %v367 = vpop.permute.xlu0 %366
        %368 = vrot.lane.b32.xlu0 %v361, 17
        %v369 = vpop.permute.xlu0 %368
        %v370 = vlaneseq
        %v371 = vand.u32 %v370, 127
        %vm372 = vcmp.lt.s32.totalorder %v371, 17
        %v373 = vsel %vm372, %v367, %v369
        %v374 = vsel %vm372, %v365, %v367
        %v375 = vsel %vm372, %v363, %v365
        %v376 = vsel %vm372, %v369, %v363
        %v377 = vld [vmem:[%s8] sm:$0xf]
        %v379 = vlaneseq
        %v380 = vshrl.u32 %v379, 7
        %v381 = vsub.s32 0, %v380
        %v382 = vrot.slane %v377, %v381
        %v383 = vlaneseq
        %v384 = vshrl.u32 %v383, 7
        %v385 = vsub.s32 1, %v384
        %v386 = vrot.slane %v377, %v385
        %v387 = vlaneseq
        %v388 = vshrl.u32 %v387, 7
        %v389 = vsub.s32 2, %v388
        %v390 = vrot.slane %v377, %v389
        %v391 = vlaneseq
        %v392 = vshrl.u32 %v391, 7
        %v393 = vsub.s32 3, %v392
        %v394 = vrot.slane %v377, %v393
        %v399 = vmul.f32 %v376, %v382
        %v400 = vmul.f32 %v375, %v386
        %v401 = vmul.f32 %v374, %v390
        %v402 = vmul.f32 %v373, %v394
        %v403 = vld [vmem:[%s3] sm:$0xff]
        %v404 = vld [vmem:[%s3 + $0x8] sm:$0xff]
        %v405 = vld [vmem:[%s3 + $0x10] sm:$0xff]
        %406 = vrot.lane.b32.xlu0 %v358, 16
        %v407 = vpop.permute.xlu0 %406
        %408 = vrot.lane.b32.xlu0 %v359, 16
        %v409 = vpop.permute.xlu0 %408
        %410 = vrot.lane.b32.xlu0 %v360, 16
        %v411 = vpop.permute.xlu0 %410
        %412 = vrot.lane.b32.xlu0 %v361, 16
        %v413 = vpop.permute.xlu0 %412
        %vm414 = vcmp.lt.s32.totalorder %v371, 16
        %v415 = vsel %vm414, %v411, %v413
        %v416 = vsel %vm414, %v409, %v411
        %v417 = vsel %vm414, %v407, %v409
        %v418 = vsel %vm414, %v413, %v407
        %s419 = scalar_lea.vmem %s8, 4
        %v420 = vld [vmem:[%s419] sm:$0xf]
        %v422 = vlaneseq
        %v423 = vshrl.u32 %v422, 7
        %v424 = vsub.s32 0, %v423
        %v425 = vrot.slane %v420, %v424
        %v426 = vlaneseq
        %v427 = vshrl.u32 %v426, 7
        %v428 = vsub.s32 1, %v427
        %v429 = vrot.slane %v420, %v428
        %v430 = vlaneseq
        %v431 = vshrl.u32 %v430, 7
        %v432 = vsub.s32 2, %v431
        %v433 = vrot.slane %v420, %v432
        %v434 = vlaneseq
        %v435 = vshrl.u32 %v434, 7
        %v436 = vsub.s32 3, %v435
        %v437 = vrot.slane %v420, %v436
        %v442 = vmul.f32 %v418, %v425
        %v443 = vmul.f32 %v417, %v429
        %v444 = vmul.f32 %v416, %v433
        %v445 = vmul.f32 %v415, %v437
        %s446 = scalar_lea.vmem %s3, 24
        %v447 = vld [vmem:[%s446] sm:$0xff]
        %v448 = vld [vmem:[%s446 + $0x8] sm:$0xff]
        %v449 = vld [vmem:[%s446 + $0x10] sm:$0xff]
        %vm450 = vcmask 64512
        %v452 = vsel %vm450, %v447, 0
        %v455 = vsel %vm450, %v448, 0
        %v458 = vsel %vm450, %v449, 0
        %460 = vmatprep.subr.mxu0 0.0
        %461 = vmatpush1.msra.mxu0 0.0
        %462 = vmatprep.subr.mxu0 0.0
        %463 = vmatpush1.msra.mxu0 0.0
        %464 = vmatprep.subr.mxu0 0.0
        %465 = vmatpush1.msra.mxu0 0.0
        %466 = vmatprep.subr.mxu0 0.0
        %467 = vmatpush1.msra.mxu0 0.0
        %468 = vmatprep.subr.mxu0 0.0
        %469 = vmatpush1.msra.mxu0 0.0
        %470 = vmatprep.subr.mxu0 0.0
        %471 = vmatpush1.msra.mxu0 0.0
        %472 = vmatprep.subr.mxu0 0.0
        %473 = vmatpush1.msra.mxu0 0.0
        %474 = vmatprep.subr.mxu0 0.0
        %475 = vmatpush1.msra.mxu0 0.0
        %476 = vmatprep.subr.mxu0 0.0
        %477 = vmatpush1.msra.mxu0 0.0
        %478 = vmatprep.subr.mxu0 0.0
        %479 = vmatpush1.msra.mxu0 0.0
        %480 = vmatprep.subr.mxu0 0.0
        %481 = vmatpush1.msra.mxu0 0.0
        %482 = vmatprep.subr.mxu0 0.0
        %483 = vmatpush1.msra.mxu0 0.0
        %484 = vmatprep.subr.mxu0 0.0
        %485 = vmatpush1.msra.mxu0 0.0
        %486 = vmatprep.subr.mxu0 0.0
        %487 = vmatpush1.msra.mxu0 0.0
        %488 = vmatprep.subr.mxu0 0.0
        %489 = vmatpush1.msra.mxu0 0.0
        %490 = vmatprep.subr.mxu0 %v443
        %491 = vmatpush1.msra.mxu0 %v442
        %492 = vmatprep.subr.mxu0 0.0
        %493 = vmatpush2.msra.mxu0 0.0
        %494 = vmatprep.subr.mxu0 0.0
        %495 = vmatpush2.msra.mxu0 0.0
        %496 = vmatprep.subr.mxu0 0.0
        %497 = vmatpush2.msra.mxu0 0.0
        %498 = vmatprep.subr.mxu0 0.0
        %499 = vmatpush2.msra.mxu0 0.0
        %500 = vmatprep.subr.mxu0 0.0
        %501 = vmatpush2.msra.mxu0 0.0
        %502 = vmatprep.subr.mxu0 0.0
        %503 = vmatpush2.msra.mxu0 0.0
        %504 = vmatprep.subr.mxu0 0.0
        %505 = vmatpush2.msra.mxu0 0.0
        %506 = vmatprep.subr.mxu0 0.0
        %507 = vmatpush2.msra.mxu0 0.0
        %508 = vmatprep.subr.mxu0 0.0
        %509 = vmatpush2.msra.mxu0 0.0
        %510 = vmatprep.subr.mxu0 0.0
        %511 = vmatpush2.msra.mxu0 0.0
        %512 = vmatprep.subr.mxu0 0.0
        %513 = vmatpush2.msra.mxu0 0.0
        %514 = vmatprep.subr.mxu0 0.0
        %515 = vmatpush2.msra.mxu0 0.0
        %516 = vmatprep.subr.mxu0 0.0
        %517 = vmatpush2.msra.mxu0 0.0
        %518 = vmatprep.subr.mxu0 0.0
        %519 = vmatpush2.msra.mxu0 0.0
        %520 = vmatprep.subr.mxu0 0.0
        %521 = vmatpush2.msra.mxu0 0.0
        %522 = vmatprep.subr.mxu0 0.0
        %523 = vmatpush2.msra.mxu0 0.0
        %524 = vmatprep.mubr.f32.mxu0 0.0
        %525 = vmatmul.mubr.f32.gmra.mxu0 %v452
        %v526 = vpop.f32.mrf.mxu0
        %v527 = vadd.f32 0.0, %v526
        %v528 = vpop.f32.mrf.mxu0
        %v529 = vadd.f32 0.0, %v528
        %530 = vmatprep.mubr.f32.mxu0 0.0
        %531 = vmatmul.mubr.f32.gmra.mxu0 %v455
        %v532 = vpop.f32.mrf.mxu0
        %v533 = vadd.f32 0.0, %v532
        %v534 = vpop.f32.mrf.mxu0
        %v535 = vadd.f32 0.0, %v534
        %536 = vmatprep.mubr.f32.mxu0 0.0
        %537 = vmatmul.mubr.f32.gmra.mxu0 %v458
        %v538 = vpop.f32.mrf.mxu0
        %v539 = vadd.f32 0.0, %v538
        %v540 = vpop.f32.mrf.mxu0
        %v541 = vadd.f32 0.0, %v540
        %542 = vdwg.mxu0
        %543 = vmatprep.subr.mxu0 0.0
        %544 = vmatpush1.msra.mxu0 0.0
        %545 = vmatprep.subr.mxu0 0.0
        %546 = vmatpush1.msra.mxu0 0.0
        %547 = vmatprep.subr.mxu0 0.0
        %548 = vmatpush1.msra.mxu0 0.0
        %549 = vmatprep.subr.mxu0 0.0
        %550 = vmatpush1.msra.mxu0 0.0
        %551 = vmatprep.subr.mxu0 0.0
        %552 = vmatpush1.msra.mxu0 0.0
        %553 = vmatprep.subr.mxu0 0.0
        %554 = vmatpush1.msra.mxu0 0.0
        %555 = vmatprep.subr.mxu0 0.0
        %556 = vmatpush1.msra.mxu0 0.0
        %557 = vmatprep.subr.mxu0 0.0
        %558 = vmatpush1.msra.mxu0 0.0
        %559 = vmatprep.subr.mxu0 0.0
        %560 = vmatpush1.msra.mxu0 0.0
        %561 = vmatprep.subr.mxu0 0.0
        %562 = vmatpush1.msra.mxu0 0.0
        %563 = vmatprep.subr.mxu0 0.0
        %564 = vmatpush1.msra.mxu0 0.0
        %565 = vmatprep.subr.mxu0 0.0
        %566 = vmatpush1.msra.mxu0 0.0
        %567 = vmatprep.subr.mxu0 0.0
        %568 = vmatpush1.msra.mxu0 0.0
        %569 = vmatprep.subr.mxu0 0.0
        %570 = vmatpush1.msra.mxu0 0.0
        %571 = vmatprep.subr.mxu0 0.0
        %572 = vmatpush1.msra.mxu0 0.0
        %573 = vmatprep.subr.mxu0 %v445
        %574 = vmatpush1.msra.mxu0 %v444
        %575 = vmatprep.subr.mxu0 0.0
        %576 = vmatpush2.msra.mxu0 0.0
        %577 = vmatprep.subr.mxu0 0.0
        %578 = vmatpush2.msra.mxu0 0.0
        %579 = vmatprep.subr.mxu0 0.0
        %580 = vmatpush2.msra.mxu0 0.0
        %581 = vmatprep.subr.mxu0 0.0
        %582 = vmatpush2.msra.mxu0 0.0
        %583 = vmatprep.subr.mxu0 0.0
        %584 = vmatpush2.msra.mxu0 0.0
        %585 = vmatprep.subr.mxu0 0.0
        %586 = vmatpush2.msra.mxu0 0.0
        %587 = vmatprep.subr.mxu0 0.0
        %588 = vmatpush2.msra.mxu0 0.0
        %589 = vmatprep.subr.mxu0 0.0
        %590 = vmatpush2.msra.mxu0 0.0
        %591 = vmatprep.subr.mxu0 0.0
        %592 = vmatpush2.msra.mxu0 0.0
        %593 = vmatprep.subr.mxu0 0.0
        %594 = vmatpush2.msra.mxu0 0.0
        %595 = vmatprep.subr.mxu0 0.0
        %596 = vmatpush2.msra.mxu0 0.0
        %597 = vmatprep.subr.mxu0 0.0
        %598 = vmatpush2.msra.mxu0 0.0
        %599 = vmatprep.subr.mxu0 0.0
        %600 = vmatpush2.msra.mxu0 0.0
        %601 = vmatprep.subr.mxu0 0.0
        %602 = vmatpush2.msra.mxu0 0.0
        %603 = vmatprep.subr.mxu0 0.0
        %604 = vmatpush2.msra.mxu0 0.0
        %605 = vmatprep.subr.mxu0 0.0
        %606 = vmatpush2.msra.mxu0 0.0
        %607 = vmatprep.mubr.f32.mxu0 0.0
        %608 = vmatmul.mubr.f32.gmra.mxu0 %v452
        %v609 = vpop.f32.mrf.mxu0
        %v610 = vadd.f32 0.0, %v609
        %v611 = vpop.f32.mrf.mxu0
        %v612 = vadd.f32 0.0, %v611
        %613 = vmatprep.mubr.f32.mxu0 0.0
        %614 = vmatmul.mubr.f32.gmra.mxu0 %v455
        %v615 = vpop.f32.mrf.mxu0
        %v616 = vadd.f32 0.0, %v615
        %v617 = vpop.f32.mrf.mxu0
        %v618 = vadd.f32 0.0, %v617
        %619 = vmatprep.mubr.f32.mxu0 0.0
        %620 = vmatmul.mubr.f32.gmra.mxu0 %v458
        %v621 = vpop.f32.mrf.mxu0
        %v622 = vadd.f32 0.0, %v621
        %v623 = vpop.f32.mrf.mxu0
        %v624 = vadd.f32 0.0, %v623
        %625 = vdwg.mxu0
        %v627 = vsel %vm450, %v403, 0
        %v630 = vsel %vm450, %v404, 0
        %v633 = vsel %vm450, %v405, 0
        %635 = vmatprep.subr.mxu0 0.0
        %636 = vmatpush1.msra.mxu0 0.0
        %637 = vmatprep.subr.mxu0 0.0
        %638 = vmatpush1.msra.mxu0 0.0
        %639 = vmatprep.subr.mxu0 0.0
        %640 = vmatpush1.msra.mxu0 0.0
        %641 = vmatprep.subr.mxu0 0.0
        %642 = vmatpush1.msra.mxu0 0.0
        %643 = vmatprep.subr.mxu0 0.0
        %644 = vmatpush1.msra.mxu0 0.0
        %645 = vmatprep.subr.mxu0 0.0
        %646 = vmatpush1.msra.mxu0 0.0
        %647 = vmatprep.subr.mxu0 0.0
        %648 = vmatpush1.msra.mxu0 0.0
        %649 = vmatprep.subr.mxu0 0.0
        %650 = vmatpush1.msra.mxu0 0.0
        %651 = vmatprep.subr.mxu0 0.0
        %652 = vmatpush1.msra.mxu0 0.0
        %653 = vmatprep.subr.mxu0 0.0
        %654 = vmatpush1.msra.mxu0 0.0
        %655 = vmatprep.subr.mxu0 0.0
        %656 = vmatpush1.msra.mxu0 0.0
        %657 = vmatprep.subr.mxu0 0.0
        %658 = vmatpush1.msra.mxu0 0.0
        %659 = vmatprep.subr.mxu0 0.0
        %660 = vmatpush1.msra.mxu0 0.0
        %661 = vmatprep.subr.mxu0 0.0
        %662 = vmatpush1.msra.mxu0 0.0
        %663 = vmatprep.subr.mxu0 0.0
        %664 = vmatpush1.msra.mxu0 0.0
        %665 = vmatprep.subr.mxu0 %v400
        %666 = vmatpush1.msra.mxu0 %v399
        %667 = vmatprep.subr.mxu0 0.0
        %668 = vmatpush2.msra.mxu0 0.0
        %669 = vmatprep.subr.mxu0 0.0
        %670 = vmatpush2.msra.mxu0 0.0
        %671 = vmatprep.subr.mxu0 0.0
        %672 = vmatpush2.msra.mxu0 0.0
        %673 = vmatprep.subr.mxu0 0.0
        %674 = vmatpush2.msra.mxu0 0.0
        %675 = vmatprep.subr.mxu0 0.0
        %676 = vmatpush2.msra.mxu0 0.0
        %677 = vmatprep.subr.mxu0 0.0
        %678 = vmatpush2.msra.mxu0 0.0
        %679 = vmatprep.subr.mxu0 0.0
        %680 = vmatpush2.msra.mxu0 0.0
        %681 = vmatprep.subr.mxu0 0.0
        %682 = vmatpush2.msra.mxu0 0.0
        %683 = vmatprep.subr.mxu0 0.0
        %684 = vmatpush2.msra.mxu0 0.0
        %685 = vmatprep.subr.mxu0 0.0
        %686 = vmatpush2.msra.mxu0 0.0
        %687 = vmatprep.subr.mxu0 0.0
        %688 = vmatpush2.msra.mxu0 0.0
        %689 = vmatprep.subr.mxu0 0.0
        %690 = vmatpush2.msra.mxu0 0.0
        %691 = vmatprep.subr.mxu0 0.0
        %692 = vmatpush2.msra.mxu0 0.0
        %693 = vmatprep.subr.mxu0 0.0
        %694 = vmatpush2.msra.mxu0 0.0
        %695 = vmatprep.subr.mxu0 0.0
        %696 = vmatpush2.msra.mxu0 0.0
        %697 = vmatprep.subr.mxu0 0.0
        %698 = vmatpush2.msra.mxu0 0.0
        %699 = vmatprep.mubr.f32.mxu0 0.0
        %700 = vmatmul.mubr.f32.gmra.mxu0 %v627
        %v701 = vpop.f32.mrf.mxu0
        %v702 = vadd.f32 %v527, %v701
        %v703 = vpop.f32.mrf.mxu0
        %v704 = vadd.f32 %v529, %v703
        %705 = vmatprep.mubr.f32.mxu0 0.0
        %706 = vmatmul.mubr.f32.gmra.mxu0 %v630
        %v707 = vpop.f32.mrf.mxu0
        %v708 = vadd.f32 %v533, %v707
        %v709 = vpop.f32.mrf.mxu0
        %v710 = vadd.f32 %v535, %v709
        %711 = vmatprep.mubr.f32.mxu0 0.0
        %712 = vmatmul.mubr.f32.gmra.mxu0 %v633
        %v713 = vpop.f32.mrf.mxu0
        %v714 = vadd.f32 %v539, %v713
        %v715 = vpop.f32.mrf.mxu0
        %v716 = vadd.f32 %v541, %v715
        %717 = vdwg.mxu0
        %718 = vmatprep.subr.mxu0 0.0
        %719 = vmatpush1.msra.mxu0 0.0
        %720 = vmatprep.subr.mxu0 0.0
        %721 = vmatpush1.msra.mxu0 0.0
        %722 = vmatprep.subr.mxu0 0.0
        %723 = vmatpush1.msra.mxu0 0.0
        %724 = vmatprep.subr.mxu0 0.0
        %725 = vmatpush1.msra.mxu0 0.0
        %726 = vmatprep.subr.mxu0 0.0
        %727 = vmatpush1.msra.mxu0 0.0
        %728 = vmatprep.subr.mxu0 0.0
        %729 = vmatpush1.msra.mxu0 0.0
        %730 = vmatprep.subr.mxu0 0.0
        %731 = vmatpush1.msra.mxu0 0.0
        %732 = vmatprep.subr.mxu0 0.0
        %733 = vmatpush1.msra.mxu0 0.0
        %734 = vmatprep.subr.mxu0 0.0
        %735 = vmatpush1.msra.mxu0 0.0
        %736 = vmatprep.subr.mxu0 0.0
        %737 = vmatpush1.msra.mxu0 0.0
        %738 = vmatprep.subr.mxu0 0.0
        %739 = vmatpush1.msra.mxu0 0.0
        %740 = vmatprep.subr.mxu0 0.0
        %741 = vmatpush1.msra.mxu0 0.0
        %742 = vmatprep.subr.mxu0 0.0
        %743 = vmatpush1.msra.mxu0 0.0
        %744 = vmatprep.subr.mxu0 0.0
        %745 = vmatpush1.msra.mxu0 0.0
        %746 = vmatprep.subr.mxu0 0.0
        %747 = vmatpush1.msra.mxu0 0.0
        %748 = vmatprep.subr.mxu0 %v402
        %749 = vmatpush1.msra.mxu0 %v401
        %750 = vmatprep.subr.mxu0 0.0
        %751 = vmatpush2.msra.mxu0 0.0
        %752 = vmatprep.subr.mxu0 0.0
        %753 = vmatpush2.msra.mxu0 0.0
        %754 = vmatprep.subr.mxu0 0.0
        %755 = vmatpush2.msra.mxu0 0.0
        %756 = vmatprep.subr.mxu0 0.0
        %757 = vmatpush2.msra.mxu0 0.0
        %758 = vmatprep.subr.mxu0 0.0
        %759 = vmatpush2.msra.mxu0 0.0
        %760 = vmatprep.subr.mxu0 0.0
        %761 = vmatpush2.msra.mxu0 0.0
        %762 = vmatprep.subr.mxu0 0.0
        %763 = vmatpush2.msra.mxu0 0.0
        %764 = vmatprep.subr.mxu0 0.0
        %765 = vmatpush2.msra.mxu0 0.0
        %766 = vmatprep.subr.mxu0 0.0
        %767 = vmatpush2.msra.mxu0 0.0
        %768 = vmatprep.subr.mxu0 0.0
        %769 = vmatpush2.msra.mxu0 0.0
        %770 = vmatprep.subr.mxu0 0.0
        %771 = vmatpush2.msra.mxu0 0.0
        %772 = vmatprep.subr.mxu0 0.0
        %773 = vmatpush2.msra.mxu0 0.0
        %774 = vmatprep.subr.mxu0 0.0
        %775 = vmatpush2.msra.mxu0 0.0
        %776 = vmatprep.subr.mxu0 0.0
        %777 = vmatpush2.msra.mxu0 0.0
        %778 = vmatprep.subr.mxu0 0.0
        %779 = vmatpush2.msra.mxu0 0.0
        %780 = vmatprep.subr.mxu0 0.0
        %781 = vmatpush2.msra.mxu0 0.0
        %782 = vmatprep.mubr.f32.mxu0 0.0
        %783 = vmatmul.mubr.f32.gmra.mxu0 %v627
        %v784 = vpop.f32.mrf.mxu0
        %v785 = vadd.f32 %v610, %v784
        %v786 = vpop.f32.mrf.mxu0
        %v787 = vadd.f32 %v612, %v786
        %788 = vmatprep.mubr.f32.mxu0 0.0
        %789 = vmatmul.mubr.f32.gmra.mxu0 %v630
        %v790 = vpop.f32.mrf.mxu0
        %v791 = vadd.f32 %v616, %v790
        %v792 = vpop.f32.mrf.mxu0
        %v793 = vadd.f32 %v618, %v792
        %794 = vmatprep.mubr.f32.mxu0 0.0
        %795 = vmatmul.mubr.f32.gmra.mxu0 %v633
        %v796 = vpop.f32.mrf.mxu0
        %v797 = vadd.f32 %v622, %v796
        %v798 = vpop.f32.mrf.mxu0
        %v799 = vadd.f32 %v624, %v798
        %800 = vdwg.mxu0
        %801 = vrot.lane.b32.xlu0 %v358, 15
        %v802 = vpop.permute.xlu0 %801
        %803 = vrot.lane.b32.xlu0 %v359, 15
        %v804 = vpop.permute.xlu0 %803
        %805 = vrot.lane.b32.xlu0 %v360, 15
        %v806 = vpop.permute.xlu0 %805
        %807 = vrot.lane.b32.xlu0 %v361, 15
        %v808 = vpop.permute.xlu0 %807
        %vm809 = vcmp.lt.s32.totalorder %v371, 15
        %v810 = vsel %vm809, %v806, %v808
        %v811 = vsel %vm809, %v804, %v806
        %v812 = vsel %vm809, %v802, %v804
        %v813 = vsel %vm809, %v808, %v802
        %s814 = scalar_lea.vmem %s8, 8
        %v815 = vld [vmem:[%s814] sm:$0xf]
        %v817 = vlaneseq
        %v818 = vshrl.u32 %v817, 7
        %v819 = vsub.s32 0, %v818
        %v820 = vrot.slane %v815, %v819
        %v821 = vlaneseq
        %v822 = vshrl.u32 %v821, 7
        %v823 = vsub.s32 1, %v822
        %v824 = vrot.slane %v815, %v823
        %v825 = vlaneseq
        %v826 = vshrl.u32 %v825, 7
        %v827 = vsub.s32 2, %v826
        %v828 = vrot.slane %v815, %v827
        %v829 = vlaneseq
        %v830 = vshrl.u32 %v829, 7
        %v831 = vsub.s32 3, %v830
        %v832 = vrot.slane %v815, %v831
        %v837 = vmul.f32 %v813, %v820
        %v838 = vmul.f32 %v812, %v824
        %v839 = vmul.f32 %v811, %v828
        %v840 = vmul.f32 %v810, %v832
        %s841 = scalar_lea.vmem %s3, 48
        %v842 = vld [vmem:[%s841] sm:$0xff]
        %v843 = vld [vmem:[%s841 + $0x8] sm:$0xff]
        %v844 = vld [vmem:[%s841 + $0x10] sm:$0xff]
        %v846 = vsel %vm450, %v842, 0
        %v849 = vsel %vm450, %v843, 0
        %v852 = vsel %vm450, %v844, 0
        %854 = vmatprep.subr.mxu0 0.0
        %855 = vmatpush1.msra.mxu0 0.0
        %856 = vmatprep.subr.mxu0 0.0
        %857 = vmatpush1.msra.mxu0 0.0
        %858 = vmatprep.subr.mxu0 0.0
        %859 = vmatpush1.msra.mxu0 0.0
        %860 = vmatprep.subr.mxu0 0.0
        %861 = vmatpush1.msra.mxu0 0.0
        %862 = vmatprep.subr.mxu0 0.0
        %863 = vmatpush1.msra.mxu0 0.0
        %864 = vmatprep.subr.mxu0 0.0
        %865 = vmatpush1.msra.mxu0 0.0
        %866 = vmatprep.subr.mxu0 0.0
        %867 = vmatpush1.msra.mxu0 0.0
        %868 = vmatprep.subr.mxu0 0.0
        %869 = vmatpush1.msra.mxu0 0.0
        %870 = vmatprep.subr.mxu0 0.0
        %871 = vmatpush1.msra.mxu0 0.0
        %872 = vmatprep.subr.mxu0 0.0
        %873 = vmatpush1.msra.mxu0 0.0
        %874 = vmatprep.subr.mxu0 0.0
        %875 = vmatpush1.msra.mxu0 0.0
        %876 = vmatprep.subr.mxu0 0.0
        %877 = vmatpush1.msra.mxu0 0.0
        %878 = vmatprep.subr.mxu0 0.0
        %879 = vmatpush1.msra.mxu0 0.0
        %880 = vmatprep.subr.mxu0 0.0
        %881 = vmatpush1.msra.mxu0 0.0
        %882 = vmatprep.subr.mxu0 0.0
        %883 = vmatpush1.msra.mxu0 0.0
        %884 = vmatprep.subr.mxu0 %v838
        %885 = vmatpush1.msra.mxu0 %v837
        %886 = vmatprep.subr.mxu0 0.0
        %887 = vmatpush2.msra.mxu0 0.0
        %888 = vmatprep.subr.mxu0 0.0
        %889 = vmatpush2.msra.mxu0 0.0
        %890 = vmatprep.subr.mxu0 0.0
        %891 = vmatpush2.msra.mxu0 0.0
        %892 = vmatprep.subr.mxu0 0.0
        %893 = vmatpush2.msra.mxu0 0.0
        %894 = vmatprep.subr.mxu0 0.0
        %895 = vmatpush2.msra.mxu0 0.0
        %896 = vmatprep.subr.mxu0 0.0
        %897 = vmatpush2.msra.mxu0 0.0
        %898 = vmatprep.subr.mxu0 0.0
        %899 = vmatpush2.msra.mxu0 0.0
        %900 = vmatprep.subr.mxu0 0.0
        %901 = vmatpush2.msra.mxu0 0.0
        %902 = vmatprep.subr.mxu0 0.0
        %903 = vmatpush2.msra.mxu0 0.0
        %904 = vmatprep.subr.mxu0 0.0
        %905 = vmatpush2.msra.mxu0 0.0
        %906 = vmatprep.subr.mxu0 0.0
        %907 = vmatpush2.msra.mxu0 0.0
        %908 = vmatprep.subr.mxu0 0.0
        %909 = vmatpush2.msra.mxu0 0.0
        %910 = vmatprep.subr.mxu0 0.0
        %911 = vmatpush2.msra.mxu0 0.0
        %912 = vmatprep.subr.mxu0 0.0
        %913 = vmatpush2.msra.mxu0 0.0
        %914 = vmatprep.subr.mxu0 0.0
        %915 = vmatpush2.msra.mxu0 0.0
        %916 = vmatprep.subr.mxu0 0.0
        %917 = vmatpush2.msra.mxu0 0.0
        %918 = vmatprep.mubr.f32.mxu0 0.0
        %919 = vmatmul.mubr.f32.gmra.mxu0 %v846
        %v920 = vpop.f32.mrf.mxu0
        %v921 = vadd.f32 0.0, %v920
        %v922 = vpop.f32.mrf.mxu0
        %v923 = vadd.f32 0.0, %v922
        %924 = vmatprep.mubr.f32.mxu0 0.0
        %925 = vmatmul.mubr.f32.gmra.mxu0 %v849
        %v926 = vpop.f32.mrf.mxu0
        %v927 = vadd.f32 0.0, %v926
        %v928 = vpop.f32.mrf.mxu0
        %v929 = vadd.f32 0.0, %v928
        %930 = vmatprep.mubr.f32.mxu0 0.0
        %931 = vmatmul.mubr.f32.gmra.mxu0 %v852
        %v932 = vpop.f32.mrf.mxu0
        %v933 = vadd.f32 0.0, %v932
        %v934 = vpop.f32.mrf.mxu0
        %v935 = vadd.f32 0.0, %v934
        %936 = vdwg.mxu0
        %937 = vmatprep.subr.mxu0 0.0
        %938 = vmatpush1.msra.mxu0 0.0
        %939 = vmatprep.subr.mxu0 0.0
        %940 = vmatpush1.msra.mxu0 0.0
        %941 = vmatprep.subr.mxu0 0.0
        %942 = vmatpush1.msra.mxu0 0.0
        %943 = vmatprep.subr.mxu0 0.0
        %944 = vmatpush1.msra.mxu0 0.0
        %945 = vmatprep.subr.mxu0 0.0
        %946 = vmatpush1.msra.mxu0 0.0
        %947 = vmatprep.subr.mxu0 0.0
        %948 = vmatpush1.msra.mxu0 0.0
        %949 = vmatprep.subr.mxu0 0.0
        %950 = vmatpush1.msra.mxu0 0.0
        %951 = vmatprep.subr.mxu0 0.0
        %952 = vmatpush1.msra.mxu0 0.0
        %953 = vmatprep.subr.mxu0 0.0
        %954 = vmatpush1.msra.mxu0 0.0
        %955 = vmatprep.subr.mxu0 0.0
        %956 = vmatpush1.msra.mxu0 0.0
        %957 = vmatprep.subr.mxu0 0.0
        %958 = vmatpush1.msra.mxu0 0.0
        %959 = vmatprep.subr.mxu0 0.0
        %960 = vmatpush1.msra.mxu0 0.0
        %961 = vmatprep.subr.mxu0 0.0
        %962 = vmatpush1.msra.mxu0 0.0
        %963 = vmatprep.subr.mxu0 0.0
        %964 = vmatpush1.msra.mxu0 0.0
        %965 = vmatprep.subr.mxu0 0.0
        %966 = vmatpush1.msra.mxu0 0.0
        %967 = vmatprep.subr.mxu0 %v840
        %968 = vmatpush1.msra.mxu0 %v839
        %969 = vmatprep.subr.mxu0 0.0
        %970 = vmatpush2.msra.mxu0 0.0
        %971 = vmatprep.subr.mxu0 0.0
        %972 = vmatpush2.msra.mxu0 0.0
        %973 = vmatprep.subr.mxu0 0.0
        %974 = vmatpush2.msra.mxu0 0.0
        %975 = vmatprep.subr.mxu0 0.0
        %976 = vmatpush2.msra.mxu0 0.0
        %977 = vmatprep.subr.mxu0 0.0
        %978 = vmatpush2.msra.mxu0 0.0
        %979 = vmatprep.subr.mxu0 0.0
        %980 = vmatpush2.msra.mxu0 0.0
        %981 = vmatprep.subr.mxu0 0.0
        %982 = vmatpush2.msra.mxu0 0.0
        %983 = vmatprep.subr.mxu0 0.0
        %984 = vmatpush2.msra.mxu0 0.0
        %985 = vmatprep.subr.mxu0 0.0
        %986 = vmatpush2.msra.mxu0 0.0
        %987 = vmatprep.subr.mxu0 0.0
        %988 = vmatpush2.msra.mxu0 0.0
        %989 = vmatprep.subr.mxu0 0.0
        %990 = vmatpush2.msra.mxu0 0.0
        %991 = vmatprep.subr.mxu0 0.0
        %992 = vmatpush2.msra.mxu0 0.0
        %993 = vmatprep.subr.mxu0 0.0
        %994 = vmatpush2.msra.mxu0 0.0
        %995 = vmatprep.subr.mxu0 0.0
        %996 = vmatpush2.msra.mxu0 0.0
        %997 = vmatprep.subr.mxu0 0.0
        %998 = vmatpush2.msra.mxu0 0.0
        %999 = vmatprep.subr.mxu0 0.0
        %1000 = vmatpush2.msra.mxu0 0.0
        %1001 = vmatprep.mubr.f32.mxu0 0.0
        %1002 = vmatmul.mubr.f32.gmra.mxu0 %v846
        %v1003 = vpop.f32.mrf.mxu0
        %v1004 = vadd.f32 0.0, %v1003
        %v1005 = vpop.f32.mrf.mxu0
        %v1006 = vadd.f32 0.0, %v1005
        %1007 = vmatprep.mubr.f32.mxu0 0.0
        %1008 = vmatmul.mubr.f32.gmra.mxu0 %v849
        %v1009 = vpop.f32.mrf.mxu0
        %v1010 = vadd.f32 0.0, %v1009
        %v1011 = vpop.f32.mrf.mxu0
        %v1012 = vadd.f32 0.0, %v1011
        %1013 = vmatprep.mubr.f32.mxu0 0.0
        %1014 = vmatmul.mubr.f32.gmra.mxu0 %v852
        %v1015 = vpop.f32.mrf.mxu0
        %v1016 = vadd.f32 0.0, %v1015
        %v1017 = vpop.f32.mrf.mxu0
        %v1018 = vadd.f32 0.0, %v1017
        %1019 = vdwg.mxu0
        %v1020 = vadd.f32 %v702, %v921
        %v1021 = vadd.f32 %v704, %v923
        %v1022 = vadd.f32 %v785, %v1004
        %v1023 = vadd.f32 %v787, %v1006
        %v1024 = vadd.f32 %v708, %v927
        %v1025 = vadd.f32 %v710, %v929
        %v1026 = vadd.f32 %v791, %v1010
        %v1027 = vadd.f32 %v793, %v1012
        %v1028 = vadd.f32 %v714, %v933
        %v1029 = vadd.f32 %v716, %v935
        %v1030 = vadd.f32 %v797, %v1016
        %v1031 = vadd.f32 %v799, %v1018
        %1032 = vrot.lane.b32.xlu0 %v358, 1
        %v1033 = vpop.permute.xlu0 %1032
        %1034 = vrot.lane.b32.xlu0 %v359, 1
        %v1035 = vpop.permute.xlu0 %1034
        %1036 = vrot.lane.b32.xlu0 %v360, 1
        %v1037 = vpop.permute.xlu0 %1036
        %1038 = vrot.lane.b32.xlu0 %v361, 1
        %v1039 = vpop.permute.xlu0 %1038
        %vm1040 = vcmp.lt.s32.totalorder %v371, 1
        %v1041 = vsel %vm1040, %v1037, %v1039
        %v1042 = vsel %vm1040, %v1035, %v1037
        %v1043 = vsel %vm1040, %v1033, %v1035
        %v1044 = vsel %vm1040, %v1039, %v1033
        %s1045 = scalar_lea.vmem %s8, 12
        %v1046 = vld [vmem:[%s1045] sm:$0xf]
        %v1048 = vlaneseq
        %v1049 = vshrl.u32 %v1048, 7
        %v1050 = vsub.s32 0, %v1049
        %v1051 = vrot.slane %v1046, %v1050
        %v1052 = vlaneseq
        %v1053 = vshrl.u32 %v1052, 7
        %v1054 = vsub.s32 1, %v1053
        %v1055 = vrot.slane %v1046, %v1054
        %v1056 = vlaneseq
        %v1057 = vshrl.u32 %v1056, 7
        %v1058 = vsub.s32 2, %v1057
        %v1059 = vrot.slane %v1046, %v1058
        %v1060 = vlaneseq
        %v1061 = vshrl.u32 %v1060, 7
        %v1062 = vsub.s32 3, %v1061
        %v1063 = vrot.slane %v1046, %v1062
        %v1068 = vmul.f32 %v1044, %v1051
        %v1069 = vmul.f32 %v1043, %v1055
        %v1070 = vmul.f32 %v1042, %v1059
        %v1071 = vmul.f32 %v1041, %v1063
        %s1072 = scalar_lea.vmem %s3, 72
        %v1073 = vld [vmem:[%s1072] sm:$0xff]
        %v1074 = vld [vmem:[%s1072 + $0x8] sm:$0xff]
        %v1075 = vld [vmem:[%s1072 + $0x10] sm:$0xff]
        %v1077 = vsel %vm450, %v1073, 0
        %v1080 = vsel %vm450, %v1074, 0
        %v1083 = vsel %vm450, %v1075, 0
        %1085 = vmatprep.subr.mxu0 0.0
        %1086 = vmatpush1.msra.mxu0 0.0
        %1087 = vmatprep.subr.mxu0 0.0
        %1088 = vmatpush1.msra.mxu0 0.0
        %1089 = vmatprep.subr.mxu0 0.0
        %1090 = vmatpush1.msra.mxu0 0.0
        %1091 = vmatprep.subr.mxu0 0.0
        %1092 = vmatpush1.msra.mxu0 0.0
        %1093 = vmatprep.subr.mxu0 0.0
        %1094 = vmatpush1.msra.mxu0 0.0
        %1095 = vmatprep.subr.mxu0 0.0
        %1096 = vmatpush1.msra.mxu0 0.0
        %1097 = vmatprep.subr.mxu0 0.0
        %1098 = vmatpush1.msra.mxu0 0.0
        %1099 = vmatprep.subr.mxu0 0.0
        %1100 = vmatpush1.msra.mxu0 0.0
        %1101 = vmatprep.subr.mxu0 0.0
        %1102 = vmatpush1.msra.mxu0 0.0
        %1103 = vmatprep.subr.mxu0 0.0
        %1104 = vmatpush1.msra.mxu0 0.0
        %1105 = vmatprep.subr.mxu0 0.0
        %1106 = vmatpush1.msra.mxu0 0.0
        %1107 = vmatprep.subr.mxu0 0.0
        %1108 = vmatpush1.msra.mxu0 0.0
        %1109 = vmatprep.subr.mxu0 0.0
        %1110 = vmatpush1.msra.mxu0 0.0
        %1111 = vmatprep.subr.mxu0 0.0
        %1112 = vmatpush1.msra.mxu0 0.0
        %1113 = vmatprep.subr.mxu0 0.0
        %1114 = vmatpush1.msra.mxu0 0.0
        %1115 = vmatprep.subr.mxu0 %v1069
        %1116 = vmatpush1.msra.mxu0 %v1068
        %1117 = vmatprep.subr.mxu0 0.0
        %1118 = vmatpush2.msra.mxu0 0.0
        %1119 = vmatprep.subr.mxu0 0.0
        %1120 = vmatpush2.msra.mxu0 0.0
        %1121 = vmatprep.subr.mxu0 0.0
        %1122 = vmatpush2.msra.mxu0 0.0
        %1123 = vmatprep.subr.mxu0 0.0
        %1124 = vmatpush2.msra.mxu0 0.0
        %1125 = vmatprep.subr.mxu0 0.0
        %1126 = vmatpush2.msra.mxu0 0.0
        %1127 = vmatprep.subr.mxu0 0.0
        %1128 = vmatpush2.msra.mxu0 0.0
        %1129 = vmatprep.subr.mxu0 0.0
        %1130 = vmatpush2.msra.mxu0 0.0
        %1131 = vmatprep.subr.mxu0 0.0
        %1132 = vmatpush2.msra.mxu0 0.0
        %1133 = vmatprep.subr.mxu0 0.0
        %1134 = vmatpush2.msra.mxu0 0.0
        %1135 = vmatprep.subr.mxu0 0.0
        %1136 = vmatpush2.msra.mxu0 0.0
        %1137 = vmatprep.subr.mxu0 0.0
        %1138 = vmatpush2.msra.mxu0 0.0
        %1139 = vmatprep.subr.mxu0 0.0
        %1140 = vmatpush2.msra.mxu0 0.0
        %1141 = vmatprep.subr.mxu0 0.0
        %1142 = vmatpush2.msra.mxu0 0.0
        %1143 = vmatprep.subr.mxu0 0.0
        %1144 = vmatpush2.msra.mxu0 0.0
        %1145 = vmatprep.subr.mxu0 0.0
        %1146 = vmatpush2.msra.mxu0 0.0
        %1147 = vmatprep.subr.mxu0 0.0
        %1148 = vmatpush2.msra.mxu0 0.0
        %1149 = vmatprep.mubr.f32.mxu0 0.0
        %1150 = vmatmul.mubr.f32.gmra.mxu0 %v1077
        %v1151 = vpop.f32.mrf.mxu0
        %v1152 = vadd.f32 0.0, %v1151
        %v1153 = vpop.f32.mrf.mxu0
        %v1154 = vadd.f32 0.0, %v1153
        %1155 = vmatprep.mubr.f32.mxu0 0.0
        %1156 = vmatmul.mubr.f32.gmra.mxu0 %v1080
        %v1157 = vpop.f32.mrf.mxu0
        %v1158 = vadd.f32 0.0, %v1157
        %v1159 = vpop.f32.mrf.mxu0
        %v1160 = vadd.f32 0.0, %v1159
        %1161 = vmatprep.mubr.f32.mxu0 0.0
        %1162 = vmatmul.mubr.f32.gmra.mxu0 %v1083
        %v1163 = vpop.f32.mrf.mxu0
        %v1164 = vadd.f32 0.0, %v1163
        %v1165 = vpop.f32.mrf.mxu0
        %v1166 = vadd.f32 0.0, %v1165
        %1167 = vdwg.mxu0
        %1168 = vmatprep.subr.mxu0 0.0
        %1169 = vmatpush1.msra.mxu0 0.0
        %1170 = vmatprep.subr.mxu0 0.0
        %1171 = vmatpush1.msra.mxu0 0.0
        %1172 = vmatprep.subr.mxu0 0.0
        %1173 = vmatpush1.msra.mxu0 0.0
        %1174 = vmatprep.subr.mxu0 0.0
        %1175 = vmatpush1.msra.mxu0 0.0
        %1176 = vmatprep.subr.mxu0 0.0
        %1177 = vmatpush1.msra.mxu0 0.0
        %1178 = vmatprep.subr.mxu0 0.0
        %1179 = vmatpush1.msra.mxu0 0.0
        %1180 = vmatprep.subr.mxu0 0.0
        %1181 = vmatpush1.msra.mxu0 0.0
        %1182 = vmatprep.subr.mxu0 0.0
        %1183 = vmatpush1.msra.mxu0 0.0
        %1184 = vmatprep.subr.mxu0 0.0
        %1185 = vmatpush1.msra.mxu0 0.0
        %1186 = vmatprep.subr.mxu0 0.0
        %1187 = vmatpush1.msra.mxu0 0.0
        %1188 = vmatprep.subr.mxu0 0.0
        %1189 = vmatpush1.msra.mxu0 0.0
        %1190 = vmatprep.subr.mxu0 0.0
        %1191 = vmatpush1.msra.mxu0 0.0
        %1192 = vmatprep.subr.mxu0 0.0
        %1193 = vmatpush1.msra.mxu0 0.0
        %1194 = vmatprep.subr.mxu0 0.0
        %1195 = vmatpush1.msra.mxu0 0.0
        %1196 = vmatprep.subr.mxu0 0.0
        %1197 = vmatpush1.msra.mxu0 0.0
        %1198 = vmatprep.subr.mxu0 %v1071
        %1199 = vmatpush1.msra.mxu0 %v1070
        %1200 = vmatprep.subr.mxu0 0.0
        %1201 = vmatpush2.msra.mxu0 0.0
        %1202 = vmatprep.subr.mxu0 0.0
        %1203 = vmatpush2.msra.mxu0 0.0
        %1204 = vmatprep.subr.mxu0 0.0
        %1205 = vmatpush2.msra.mxu0 0.0
        %1206 = vmatprep.subr.mxu0 0.0
        %1207 = vmatpush2.msra.mxu0 0.0
        %1208 = vmatprep.subr.mxu0 0.0
        %1209 = vmatpush2.msra.mxu0 0.0
        %1210 = vmatprep.subr.mxu0 0.0
        %1211 = vmatpush2.msra.mxu0 0.0
        %1212 = vmatprep.subr.mxu0 0.0
        %1213 = vmatpush2.msra.mxu0 0.0
        %1214 = vmatprep.subr.mxu0 0.0
        %1215 = vmatpush2.msra.mxu0 0.0
        %1216 = vmatprep.subr.mxu0 0.0
        %1217 = vmatpush2.msra.mxu0 0.0
        %1218 = vmatprep.subr.mxu0 0.0
        %1219 = vmatpush2.msra.mxu0 0.0
        %1220 = vmatprep.subr.mxu0 0.0
        %1221 = vmatpush2.msra.mxu0 0.0
        %1222 = vmatprep.subr.mxu0 0.0
        %1223 = vmatpush2.msra.mxu0 0.0
        %1224 = vmatprep.subr.mxu0 0.0
        %1225 = vmatpush2.msra.mxu0 0.0
        %1226 = vmatprep.subr.mxu0 0.0
        %1227 = vmatpush2.msra.mxu0 0.0
        %1228 = vmatprep.subr.mxu0 0.0
        %1229 = vmatpush2.msra.mxu0 0.0
        %1230 = vmatprep.subr.mxu0 0.0
        %1231 = vmatpush2.msra.mxu0 0.0
        %1232 = vmatprep.mubr.f32.mxu0 0.0
        %1233 = vmatmul.mubr.f32.gmra.mxu0 %v1077
        %v1234 = vpop.f32.mrf.mxu0
        %v1235 = vadd.f32 0.0, %v1234
        %v1236 = vpop.f32.mrf.mxu0
        %v1237 = vadd.f32 0.0, %v1236
        %1238 = vmatprep.mubr.f32.mxu0 0.0
        %1239 = vmatmul.mubr.f32.gmra.mxu0 %v1080
        %v1240 = vpop.f32.mrf.mxu0
        %v1241 = vadd.f32 0.0, %v1240
        %v1242 = vpop.f32.mrf.mxu0
        %v1243 = vadd.f32 0.0, %v1242
        %1244 = vmatprep.mubr.f32.mxu0 0.0
        %1245 = vmatmul.mubr.f32.gmra.mxu0 %v1083
        %v1246 = vpop.f32.mrf.mxu0
        %v1247 = vadd.f32 0.0, %v1246
        %v1248 = vpop.f32.mrf.mxu0
        %v1249 = vadd.f32 0.0, %v1248
        %1250 = vdwg.mxu0
        %v1251 = vadd.f32 %v1020, %v1152
        %v1252 = vadd.f32 %v1021, %v1154
        %v1253 = vadd.f32 %v1022, %v1235
        %v1254 = vadd.f32 %v1023, %v1237
        %v1255 = vadd.f32 %v1024, %v1158
        %v1256 = vadd.f32 %v1025, %v1160
        %v1257 = vadd.f32 %v1026, %v1241
        %v1258 = vadd.f32 %v1027, %v1243
        %v1259 = vadd.f32 %v1028, %v1164
        %v1260 = vadd.f32 %v1029, %v1166
        %v1261 = vadd.f32 %v1030, %v1247
        %v1262 = vadd.f32 %v1031, %v1249
        %s1263 = scalar_lea.vmem %s3, 96
        %v1264 = vld [vmem:[%s1263] sm:$0xff]
        %v1265 = vld [vmem:[%s1263 + $0x8] sm:$0xff]
        %v1266 = vld [vmem:[%s1263 + $0x10] sm:$0xff]
        %v1268 = vsel %vm450, %v1264, 0
        %v1271 = vsel %vm450, %v1265, 0
        %v1274 = vsel %vm450, %v1266, 0
        %1276 = vmatprep.subr.mxu0 0.0
        %1277 = vmatpush1.msra.mxu0 0.0
        %1278 = vmatprep.subr.mxu0 0.0
        %1279 = vmatpush1.msra.mxu0 0.0
        %1280 = vmatprep.subr.mxu0 0.0
        %1281 = vmatpush1.msra.mxu0 0.0
        %1282 = vmatprep.subr.mxu0 0.0
        %1283 = vmatpush1.msra.mxu0 0.0
        %1284 = vmatprep.subr.mxu0 0.0
        %1285 = vmatpush1.msra.mxu0 0.0
        %1286 = vmatprep.subr.mxu0 0.0
        %1287 = vmatpush1.msra.mxu0 0.0
        %1288 = vmatprep.subr.mxu0 0.0
        %1289 = vmatpush1.msra.mxu0 0.0
        %1290 = vmatprep.subr.mxu0 0.0
        %1291 = vmatpush1.msra.mxu0 0.0
        %1292 = vmatprep.subr.mxu0 0.0
        %1293 = vmatpush1.msra.mxu0 0.0
        %1294 = vmatprep.subr.mxu0 0.0
        %1295 = vmatpush1.msra.mxu0 0.0
        %1296 = vmatprep.subr.mxu0 0.0
        %1297 = vmatpush1.msra.mxu0 0.0
        %1298 = vmatprep.subr.mxu0 0.0
        %1299 = vmatpush1.msra.mxu0 0.0
        %1300 = vmatprep.subr.mxu0 0.0
        %1301 = vmatpush1.msra.mxu0 0.0
        %1302 = vmatprep.subr.mxu0 0.0
        %1303 = vmatpush1.msra.mxu0 0.0
        %1304 = vmatprep.subr.mxu0 0.0
        %1305 = vmatpush1.msra.mxu0 0.0
        %1306 = vmatprep.subr.mxu0 %v359
        %1307 = vmatpush1.msra.mxu0 %v358
        %1308 = vmatprep.subr.mxu0 0.0
        %1309 = vmatpush2.msra.mxu0 0.0
        %1310 = vmatprep.subr.mxu0 0.0
        %1311 = vmatpush2.msra.mxu0 0.0
        %1312 = vmatprep.subr.mxu0 0.0
        %1313 = vmatpush2.msra.mxu0 0.0
        %1314 = vmatprep.subr.mxu0 0.0
        %1315 = vmatpush2.msra.mxu0 0.0
        %1316 = vmatprep.subr.mxu0 0.0
        %1317 = vmatpush2.msra.mxu0 0.0
        %1318 = vmatprep.subr.mxu0 0.0
        %1319 = vmatpush2.msra.mxu0 0.0
        %1320 = vmatprep.subr.mxu0 0.0
        %1321 = vmatpush2.msra.mxu0 0.0
        %1322 = vmatprep.subr.mxu0 0.0
        %1323 = vmatpush2.msra.mxu0 0.0
        %1324 = vmatprep.subr.mxu0 0.0
        %1325 = vmatpush2.msra.mxu0 0.0
        %1326 = vmatprep.subr.mxu0 0.0
        %1327 = vmatpush2.msra.mxu0 0.0
        %1328 = vmatprep.subr.mxu0 0.0
        %1329 = vmatpush2.msra.mxu0 0.0
        %1330 = vmatprep.subr.mxu0 0.0
        %1331 = vmatpush2.msra.mxu0 0.0
        %1332 = vmatprep.subr.mxu0 0.0
        %1333 = vmatpush2.msra.mxu0 0.0
        %1334 = vmatprep.subr.mxu0 0.0
        %1335 = vmatpush2.msra.mxu0 0.0
        %1336 = vmatprep.subr.mxu0 0.0
        %1337 = vmatpush2.msra.mxu0 0.0
        %1338 = vmatprep.subr.mxu0 0.0
        %1339 = vmatpush2.msra.mxu0 0.0
        %1340 = vmatprep.mubr.f32.mxu0 0.0
        %1341 = vmatmul.mubr.f32.gmra.mxu0 %v1268
        %v1342 = vpop.f32.mrf.mxu0
        %v1343 = vadd.f32 0.0, %v1342
        %v1344 = vpop.f32.mrf.mxu0
        %v1345 = vadd.f32 0.0, %v1344
        %1346 = vmatprep.mubr.f32.mxu0 0.0
        %1347 = vmatmul.mubr.f32.gmra.mxu0 %v1271
        %v1348 = vpop.f32.mrf.mxu0
        %v1349 = vadd.f32 0.0, %v1348
        %v1350 = vpop.f32.mrf.mxu0
        %v1351 = vadd.f32 0.0, %v1350
        %1352 = vmatprep.mubr.f32.mxu0 0.0
        %1353 = vmatmul.mubr.f32.gmra.mxu0 %v1274
        %v1354 = vpop.f32.mrf.mxu0
        %v1355 = vadd.f32 0.0, %v1354
        %v1356 = vpop.f32.mrf.mxu0
        %v1357 = vadd.f32 0.0, %v1356
        %1358 = vdwg.mxu0
        %1359 = vmatprep.subr.mxu0 0.0
        %1360 = vmatpush1.msra.mxu0 0.0
        %1361 = vmatprep.subr.mxu0 0.0
        %1362 = vmatpush1.msra.mxu0 0.0
        %1363 = vmatprep.subr.mxu0 0.0
        %1364 = vmatpush1.msra.mxu0 0.0
        %1365 = vmatprep.subr.mxu0 0.0
        %1366 = vmatpush1.msra.mxu0 0.0
        %1367 = vmatprep.subr.mxu0 0.0
        %1368 = vmatpush1.msra.mxu0 0.0
        %1369 = vmatprep.subr.mxu0 0.0
        %1370 = vmatpush1.msra.mxu0 0.0
        %1371 = vmatprep.subr.mxu0 0.0
        %1372 = vmatpush1.msra.mxu0 0.0
        %1373 = vmatprep.subr.mxu0 0.0
        %1374 = vmatpush1.msra.mxu0 0.0
        %1375 = vmatprep.subr.mxu0 0.0
        %1376 = vmatpush1.msra.mxu0 0.0
        %1377 = vmatprep.subr.mxu0 0.0
        %1378 = vmatpush1.msra.mxu0 0.0
        %1379 = vmatprep.subr.mxu0 0.0
        %1380 = vmatpush1.msra.mxu0 0.0
        %1381 = vmatprep.subr.mxu0 0.0
        %1382 = vmatpush1.msra.mxu0 0.0
        %1383 = vmatprep.subr.mxu0 0.0
        %1384 = vmatpush1.msra.mxu0 0.0
        %1385 = vmatprep.subr.mxu0 0.0
        %1386 = vmatpush1.msra.mxu0 0.0
        %1387 = vmatprep.subr.mxu0 0.0
        %1388 = vmatpush1.msra.mxu0 0.0
        %1389 = vmatprep.subr.mxu0 %v361
        %1390 = vmatpush1.msra.mxu0 %v360
        %1391 = vmatprep.subr.mxu0 0.0
        %1392 = vmatpush2.msra.mxu0 0.0
        %1393 = vmatprep.subr.mxu0 0.0
        %1394 = vmatpush2.msra.mxu0 0.0
        %1395 = vmatprep.subr.mxu0 0.0
        %1396 = vmatpush2.msra.mxu0 0.0
        %1397 = vmatprep.subr.mxu0 0.0
        %1398 = vmatpush2.msra.mxu0 0.0
        %1399 = vmatprep.subr.mxu0 0.0
        %1400 = vmatpush2.msra.mxu0 0.0
        %1401 = vmatprep.subr.mxu0 0.0
        %1402 = vmatpush2.msra.mxu0 0.0
        %1403 = vmatprep.subr.mxu0 0.0
        %1404 = vmatpush2.msra.mxu0 0.0
        %1405 = vmatprep.subr.mxu0 0.0
        %1406 = vmatpush2.msra.mxu0 0.0
        %1407 = vmatprep.subr.mxu0 0.0
        %1408 = vmatpush2.msra.mxu0 0.0
        %1409 = vmatprep.subr.mxu0 0.0
        %1410 = vmatpush2.msra.mxu0 0.0
        %1411 = vmatprep.subr.mxu0 0.0
        %1412 = vmatpush2.msra.mxu0 0.0
        %1413 = vmatprep.subr.mxu0 0.0
        %1414 = vmatpush2.msra.mxu0 0.0
        %1415 = vmatprep.subr.mxu0 0.0
        %1416 = vmatpush2.msra.mxu0 0.0
        %1417 = vmatprep.subr.mxu0 0.0
        %1418 = vmatpush2.msra.mxu0 0.0
        %1419 = vmatprep.subr.mxu0 0.0
        %1420 = vmatpush2.msra.mxu0 0.0
        %1421 = vmatprep.subr.mxu0 0.0
        %1422 = vmatpush2.msra.mxu0 0.0
        %1423 = vmatprep.mubr.f32.mxu0 0.0
        %1424 = vmatmul.mubr.f32.gmra.mxu0 %v1268
        %v1425 = vpop.f32.mrf.mxu0
        %v1426 = vadd.f32 0.0, %v1425
        %v1427 = vpop.f32.mrf.mxu0
        %v1428 = vadd.f32 0.0, %v1427
        %1429 = vmatprep.mubr.f32.mxu0 0.0
        %1430 = vmatmul.mubr.f32.gmra.mxu0 %v1271
        %v1431 = vpop.f32.mrf.mxu0
        %v1432 = vadd.f32 0.0, %v1431
        %v1433 = vpop.f32.mrf.mxu0
        %v1434 = vadd.f32 0.0, %v1433
        %1435 = vmatprep.mubr.f32.mxu0 0.0
        %1436 = vmatmul.mubr.f32.gmra.mxu0 %v1274
        %v1437 = vpop.f32.mrf.mxu0
        %v1438 = vadd.f32 0.0, %v1437
        %v1439 = vpop.f32.mrf.mxu0
        %v1440 = vadd.f32 0.0, %v1439
        %1441 = vdwg.mxu0
        %v1442 = vadd.f32 %v1251, %v1343
        %v1443 = vadd.f32 %v1252, %v1345
        %v1444 = vadd.f32 %v1253, %v1426
        %v1445 = vadd.f32 %v1254, %v1428
        %v1446 = vadd.f32 %v1255, %v1349
        %v1447 = vadd.f32 %v1256, %v1351
        %v1448 = vadd.f32 %v1257, %v1432
        %v1449 = vadd.f32 %v1258, %v1434
        %v1450 = vadd.f32 %v1259, %v1355
        %v1451 = vadd.f32 %v1260, %v1357
        %v1452 = vadd.f32 %v1261, %v1438
        %v1453 = vadd.f32 %v1262, %v1440
        %1454 = vrot.lane.b32.xlu0 %v358, 127
        %v1455 = vpop.permute.xlu0 %1454
        %1456 = vrot.lane.b32.xlu0 %v359, 127
        %v1457 = vpop.permute.xlu0 %1456
        %1458 = vrot.lane.b32.xlu0 %v360, 127
        %v1459 = vpop.permute.xlu0 %1458
        %1460 = vrot.lane.b32.xlu0 %v361, 127
        %v1461 = vpop.permute.xlu0 %1460
        %vm1462 = vcmp.lt.s32.totalorder %v371, 127
        %v1463 = vsel %vm1462, %v1459, %v1461
        %v1464 = vsel %vm1462, %v1457, %v1459
        %v1465 = vsel %vm1462, %v1455, %v1457
        %v1466 = vsel %vm1462, %v1461, %v1455
        %s1467 = scalar_lea.vmem %s8, 20
        %v1468 = vld [vmem:[%s1467] sm:$0xf]
        %v1470 = vlaneseq
        %v1471 = vshrl.u32 %v1470, 7
        %v1472 = vsub.s32 0, %v1471
        %v1473 = vrot.slane %v1468, %v1472
        %v1474 = vlaneseq
        %v1475 = vshrl.u32 %v1474, 7
        %v1476 = vsub.s32 1, %v1475
        %v1477 = vrot.slane %v1468, %v1476
        %v1478 = vlaneseq
        %v1479 = vshrl.u32 %v1478, 7
        %v1480 = vsub.s32 2, %v1479
        %v1481 = vrot.slane %v1468, %v1480
        %v1482 = vlaneseq
        %v1483 = vshrl.u32 %v1482, 7
        %v1484 = vsub.s32 3, %v1483
        %v1485 = vrot.slane %v1468, %v1484
        %v1490 = vmul.f32 %v1465, %v1473
        %v1491 = vmul.f32 %v1464, %v1477
        %v1492 = vmul.f32 %v1463, %v1481
        %v1493 = vmul.f32 %v1466, %v1485
        %s1494 = scalar_lea.vmem %s3, 120
        %v1495 = vld [vmem:[%s1494] sm:$0xff]
        %v1496 = vld [vmem:[%s1494 + $0x8] sm:$0xff]
        %v1497 = vld [vmem:[%s1494 + $0x10] sm:$0xff]
        %v1499 = vsel %vm450, %v1495, 0
        %v1502 = vsel %vm450, %v1496, 0
        %v1505 = vsel %vm450, %v1497, 0
        %1507 = vmatprep.subr.mxu0 0.0
        %1508 = vmatpush1.msra.mxu0 0.0
        %1509 = vmatprep.subr.mxu0 0.0
        %1510 = vmatpush1.msra.mxu0 0.0
        %1511 = vmatprep.subr.mxu0 0.0
        %1512 = vmatpush1.msra.mxu0 0.0
        %1513 = vmatprep.subr.mxu0 0.0
        %1514 = vmatpush1.msra.mxu0 0.0
        %1515 = vmatprep.subr.mxu0 0.0
        %1516 = vmatpush1.msra.mxu0 0.0
        %1517 = vmatprep.subr.mxu0 0.0
        %1518 = vmatpush1.msra.mxu0 0.0
        %1519 = vmatprep.subr.mxu0 0.0
        %1520 = vmatpush1.msra.mxu0 0.0
        %1521 = vmatprep.subr.mxu0 0.0
        %1522 = vmatpush1.msra.mxu0 0.0
        %1523 = vmatprep.subr.mxu0 0.0
        %1524 = vmatpush1.msra.mxu0 0.0
        %1525 = vmatprep.subr.mxu0 0.0
        %1526 = vmatpush1.msra.mxu0 0.0
        %1527 = vmatprep.subr.mxu0 0.0
        %1528 = vmatpush1.msra.mxu0 0.0
        %1529 = vmatprep.subr.mxu0 0.0
        %1530 = vmatpush1.msra.mxu0 0.0
        %1531 = vmatprep.subr.mxu0 0.0
        %1532 = vmatpush1.msra.mxu0 0.0
        %1533 = vmatprep.subr.mxu0 0.0
        %1534 = vmatpush1.msra.mxu0 0.0
        %1535 = vmatprep.subr.mxu0 0.0
        %1536 = vmatpush1.msra.mxu0 0.0
        %1537 = vmatprep.subr.mxu0 %v1491
        %1538 = vmatpush1.msra.mxu0 %v1490
        %1539 = vmatprep.subr.mxu0 0.0
        %1540 = vmatpush2.msra.mxu0 0.0
        %1541 = vmatprep.subr.mxu0 0.0
        %1542 = vmatpush2.msra.mxu0 0.0
        %1543 = vmatprep.subr.mxu0 0.0
        %1544 = vmatpush2.msra.mxu0 0.0
        %1545 = vmatprep.subr.mxu0 0.0
        %1546 = vmatpush2.msra.mxu0 0.0
        %1547 = vmatprep.subr.mxu0 0.0
        %1548 = vmatpush2.msra.mxu0 0.0
        %1549 = vmatprep.subr.mxu0 0.0
        %1550 = vmatpush2.msra.mxu0 0.0
        %1551 = vmatprep.subr.mxu0 0.0
        %1552 = vmatpush2.msra.mxu0 0.0
        %1553 = vmatprep.subr.mxu0 0.0
        %1554 = vmatpush2.msra.mxu0 0.0
        %1555 = vmatprep.subr.mxu0 0.0
        %1556 = vmatpush2.msra.mxu0 0.0
        %1557 = vmatprep.subr.mxu0 0.0
        %1558 = vmatpush2.msra.mxu0 0.0
        %1559 = vmatprep.subr.mxu0 0.0
        %1560 = vmatpush2.msra.mxu0 0.0
        %1561 = vmatprep.subr.mxu0 0.0
        %1562 = vmatpush2.msra.mxu0 0.0
        %1563 = vmatprep.subr.mxu0 0.0
        %1564 = vmatpush2.msra.mxu0 0.0
        %1565 = vmatprep.subr.mxu0 0.0
        %1566 = vmatpush2.msra.mxu0 0.0
        %1567 = vmatprep.subr.mxu0 0.0
        %1568 = vmatpush2.msra.mxu0 0.0
        %1569 = vmatprep.subr.mxu0 0.0
        %1570 = vmatpush2.msra.mxu0 0.0
        %1571 = vmatprep.mubr.f32.mxu0 0.0
        %1572 = vmatmul.mubr.f32.gmra.mxu0 %v1499
        %v1573 = vpop.f32.mrf.mxu0
        %v1574 = vadd.f32 0.0, %v1573
        %v1575 = vpop.f32.mrf.mxu0
        %v1576 = vadd.f32 0.0, %v1575
        %1577 = vmatprep.mubr.f32.mxu0 0.0
        %1578 = vmatmul.mubr.f32.gmra.mxu0 %v1502
        %v1579 = vpop.f32.mrf.mxu0
        %v1580 = vadd.f32 0.0, %v1579
        %v1581 = vpop.f32.mrf.mxu0
        %v1582 = vadd.f32 0.0, %v1581
        %1583 = vmatprep.mubr.f32.mxu0 0.0
        %1584 = vmatmul.mubr.f32.gmra.mxu0 %v1505
        %v1585 = vpop.f32.mrf.mxu0
        %v1586 = vadd.f32 0.0, %v1585
        %v1587 = vpop.f32.mrf.mxu0
        %v1588 = vadd.f32 0.0, %v1587
        %1589 = vdwg.mxu0
        %1590 = vmatprep.subr.mxu0 0.0
        %1591 = vmatpush1.msra.mxu0 0.0
        %1592 = vmatprep.subr.mxu0 0.0
        %1593 = vmatpush1.msra.mxu0 0.0
        %1594 = vmatprep.subr.mxu0 0.0
        %1595 = vmatpush1.msra.mxu0 0.0
        %1596 = vmatprep.subr.mxu0 0.0
        %1597 = vmatpush1.msra.mxu0 0.0
        %1598 = vmatprep.subr.mxu0 0.0
        %1599 = vmatpush1.msra.mxu0 0.0
        %1600 = vmatprep.subr.mxu0 0.0
        %1601 = vmatpush1.msra.mxu0 0.0
        %1602 = vmatprep.subr.mxu0 0.0
        %1603 = vmatpush1.msra.mxu0 0.0
        %1604 = vmatprep.subr.mxu0 0.0
        %1605 = vmatpush1.msra.mxu0 0.0
        %1606 = vmatprep.subr.mxu0 0.0
        %1607 = vmatpush1.msra.mxu0 0.0
        %1608 = vmatprep.subr.mxu0 0.0
        %1609 = vmatpush1.msra.mxu0 0.0
        %1610 = vmatprep.subr.mxu0 0.0
        %1611 = vmatpush1.msra.mxu0 0.0
        %1612 = vmatprep.subr.mxu0 0.0
        %1613 = vmatpush1.msra.mxu0 0.0
        %1614 = vmatprep.subr.mxu0 0.0
        %1615 = vmatpush1.msra.mxu0 0.0
        %1616 = vmatprep.subr.mxu0 0.0
        %1617 = vmatpush1.msra.mxu0 0.0
        %1618 = vmatprep.subr.mxu0 0.0
        %1619 = vmatpush1.msra.mxu0 0.0
        %1620 = vmatprep.subr.mxu0 %v1493
        %1621 = vmatpush1.msra.mxu0 %v1492
        %1622 = vmatprep.subr.mxu0 0.0
        %1623 = vmatpush2.msra.mxu0 0.0
        %1624 = vmatprep.subr.mxu0 0.0
        %1625 = vmatpush2.msra.mxu0 0.0
        %1626 = vmatprep.subr.mxu0 0.0
        %1627 = vmatpush2.msra.mxu0 0.0
        %1628 = vmatprep.subr.mxu0 0.0
        %1629 = vmatpush2.msra.mxu0 0.0
        %1630 = vmatprep.subr.mxu0 0.0
        %1631 = vmatpush2.msra.mxu0 0.0
        %1632 = vmatprep.subr.mxu0 0.0
        %1633 = vmatpush2.msra.mxu0 0.0
        %1634 = vmatprep.subr.mxu0 0.0
        %1635 = vmatpush2.msra.mxu0 0.0
        %1636 = vmatprep.subr.mxu0 0.0
        %1637 = vmatpush2.msra.mxu0 0.0
        %1638 = vmatprep.subr.mxu0 0.0
        %1639 = vmatpush2.msra.mxu0 0.0
        %1640 = vmatprep.subr.mxu0 0.0
        %1641 = vmatpush2.msra.mxu0 0.0
        %1642 = vmatprep.subr.mxu0 0.0
        %1643 = vmatpush2.msra.mxu0 0.0
        %1644 = vmatprep.subr.mxu0 0.0
        %1645 = vmatpush2.msra.mxu0 0.0
        %1646 = vmatprep.subr.mxu0 0.0
        %1647 = vmatpush2.msra.mxu0 0.0
        %1648 = vmatprep.subr.mxu0 0.0
        %1649 = vmatpush2.msra.mxu0 0.0
        %1650 = vmatprep.subr.mxu0 0.0
        %1651 = vmatpush2.msra.mxu0 0.0
        %1652 = vmatprep.subr.mxu0 0.0
        %1653 = vmatpush2.msra.mxu0 0.0
        %1654 = vmatprep.mubr.f32.mxu0 0.0
        %1655 = vmatmul.mubr.f32.gmra.mxu0 %v1499
        %v1656 = vpop.f32.mrf.mxu0
        %v1657 = vadd.f32 0.0, %v1656
        %v1658 = vpop.f32.mrf.mxu0
        %v1659 = vadd.f32 0.0, %v1658
        %1660 = vmatprep.mubr.f32.mxu0 0.0
        %1661 = vmatmul.mubr.f32.gmra.mxu0 %v1502
        %v1662 = vpop.f32.mrf.mxu0
        %v1663 = vadd.f32 0.0, %v1662
        %v1664 = vpop.f32.mrf.mxu0
        %v1665 = vadd.f32 0.0, %v1664
        %1666 = vmatprep.mubr.f32.mxu0 0.0
        %1667 = vmatmul.mubr.f32.gmra.mxu0 %v1505
        %v1668 = vpop.f32.mrf.mxu0
        %v1669 = vadd.f32 0.0, %v1668
        %v1670 = vpop.f32.mrf.mxu0
        %v1671 = vadd.f32 0.0, %v1670
        %1672 = vdwg.mxu0
        %v1673 = vadd.f32 %v1442, %v1574
        %v1674 = vadd.f32 %v1443, %v1576
        %v1675 = vadd.f32 %v1444, %v1657
        %v1676 = vadd.f32 %v1445, %v1659
        %v1677 = vadd.f32 %v1446, %v1580
        %v1678 = vadd.f32 %v1447, %v1582
        %v1679 = vadd.f32 %v1448, %v1663
        %v1680 = vadd.f32 %v1449, %v1665
        %v1681 = vadd.f32 %v1450, %v1586
        %v1682 = vadd.f32 %v1451, %v1588
        %v1683 = vadd.f32 %v1452, %v1669
        %v1684 = vadd.f32 %v1453, %v1671
        %1685 = vrot.lane.b32.xlu0 %v358, 113
        %v1686 = vpop.permute.xlu0 %1685
        %1687 = vrot.lane.b32.xlu0 %v359, 113
        %v1688 = vpop.permute.xlu0 %1687
        %1689 = vrot.lane.b32.xlu0 %v360, 113
        %v1690 = vpop.permute.xlu0 %1689
        %1691 = vrot.lane.b32.xlu0 %v361, 113
        %v1692 = vpop.permute.xlu0 %1691
        %vm1693 = vcmp.lt.s32.totalorder %v371, 113
        %v1694 = vsel %vm1693, %v1690, %v1692
        %v1695 = vsel %vm1693, %v1688, %v1690
        %v1696 = vsel %vm1693, %v1686, %v1688
        %v1697 = vsel %vm1693, %v1692, %v1686
        %s1698 = scalar_lea.vmem %s8, 24
        %v1699 = vld [vmem:[%s1698] sm:$0xf]
        %v1701 = vlaneseq
        %v1702 = vshrl.u32 %v1701, 7
        %v1703 = vsub.s32 0, %v1702
        %v1704 = vrot.slane %v1699, %v1703
        %v1705 = vlaneseq
        %v1706 = vshrl.u32 %v1705, 7
        %v1707 = vsub.s32 1, %v1706
        %v1708 = vrot.slane %v1699, %v1707
        %v1709 = vlaneseq
        %v1710 = vshrl.u32 %v1709, 7
        %v1711 = vsub.s32 2, %v1710
        %v1712 = vrot.slane %v1699, %v1711
        %v1713 = vlaneseq
        %v1714 = vshrl.u32 %v1713, 7
        %v1715 = vsub.s32 3, %v1714
        %v1716 = vrot.slane %v1699, %v1715
        %v1721 = vmul.f32 %v1696, %v1704
        %v1722 = vmul.f32 %v1695, %v1708
        %v1723 = vmul.f32 %v1694, %v1712
        %v1724 = vmul.f32 %v1697, %v1716
        %s1725 = scalar_lea.vmem %s3, 144
        %v1726 = vld [vmem:[%s1725] sm:$0xff]
        %v1727 = vld [vmem:[%s1725 + $0x8] sm:$0xff]
        %v1728 = vld [vmem:[%s1725 + $0x10] sm:$0xff]
        %v1730 = vsel %vm450, %v1726, 0
        %v1733 = vsel %vm450, %v1727, 0
        %v1736 = vsel %vm450, %v1728, 0
        %1738 = vmatprep.subr.mxu0 0.0
        %1739 = vmatpush1.msra.mxu0 0.0
        %1740 = vmatprep.subr.mxu0 0.0
        %1741 = vmatpush1.msra.mxu0 0.0
        %1742 = vmatprep.subr.mxu0 0.0
        %1743 = vmatpush1.msra.mxu0 0.0
        %1744 = vmatprep.subr.mxu0 0.0
        %1745 = vmatpush1.msra.mxu0 0.0
        %1746 = vmatprep.subr.mxu0 0.0
        %1747 = vmatpush1.msra.mxu0 0.0
        %1748 = vmatprep.subr.mxu0 0.0
        %1749 = vmatpush1.msra.mxu0 0.0
        %1750 = vmatprep.subr.mxu0 0.0
        %1751 = vmatpush1.msra.mxu0 0.0
        %1752 = vmatprep.subr.mxu0 0.0
        %1753 = vmatpush1.msra.mxu0 0.0
        %1754 = vmatprep.subr.mxu0 0.0
        %1755 = vmatpush1.msra.mxu0 0.0
        %1756 = vmatprep.subr.mxu0 0.0
        %1757 = vmatpush1.msra.mxu0 0.0
        %1758 = vmatprep.subr.mxu0 0.0
        %1759 = vmatpush1.msra.mxu0 0.0
        %1760 = vmatprep.subr.mxu0 0.0
        %1761 = vmatpush1.msra.mxu0 0.0
        %1762 = vmatprep.subr.mxu0 0.0
        %1763 = vmatpush1.msra.mxu0 0.0
        %1764 = vmatprep.subr.mxu0 0.0
        %1765 = vmatpush1.msra.mxu0 0.0
        %1766 = vmatprep.subr.mxu0 0.0
        %1767 = vmatpush1.msra.mxu0 0.0
        %1768 = vmatprep.subr.mxu0 %v1722
        %1769 = vmatpush1.msra.mxu0 %v1721
        %1770 = vmatprep.subr.mxu0 0.0
        %1771 = vmatpush2.msra.mxu0 0.0
        %1772 = vmatprep.subr.mxu0 0.0
        %1773 = vmatpush2.msra.mxu0 0.0
        %1774 = vmatprep.subr.mxu0 0.0
        %1775 = vmatpush2.msra.mxu0 0.0
        %1776 = vmatprep.subr.mxu0 0.0
        %1777 = vmatpush2.msra.mxu0 0.0
        %1778 = vmatprep.subr.mxu0 0.0
        %1779 = vmatpush2.msra.mxu0 0.0
        %1780 = vmatprep.subr.mxu0 0.0
        %1781 = vmatpush2.msra.mxu0 0.0
        %1782 = vmatprep.subr.mxu0 0.0
        %1783 = vmatpush2.msra.mxu0 0.0
        %1784 = vmatprep.subr.mxu0 0.0
        %1785 = vmatpush2.msra.mxu0 0.0
        %1786 = vmatprep.subr.mxu0 0.0
        %1787 = vmatpush2.msra.mxu0 0.0
        %1788 = vmatprep.subr.mxu0 0.0
        %1789 = vmatpush2.msra.mxu0 0.0
        %1790 = vmatprep.subr.mxu0 0.0
        %1791 = vmatpush2.msra.mxu0 0.0
        %1792 = vmatprep.subr.mxu0 0.0
        %1793 = vmatpush2.msra.mxu0 0.0
        %1794 = vmatprep.subr.mxu0 0.0
        %1795 = vmatpush2.msra.mxu0 0.0
        %1796 = vmatprep.subr.mxu0 0.0
        %1797 = vmatpush2.msra.mxu0 0.0
        %1798 = vmatprep.subr.mxu0 0.0
        %1799 = vmatpush2.msra.mxu0 0.0
        %1800 = vmatprep.subr.mxu0 0.0
        %1801 = vmatpush2.msra.mxu0 0.0
        %1802 = vmatprep.mubr.f32.mxu0 0.0
        %1803 = vmatmul.mubr.f32.gmra.mxu0 %v1730
        %v1804 = vpop.f32.mrf.mxu0
        %v1805 = vadd.f32 0.0, %v1804
        %v1806 = vpop.f32.mrf.mxu0
        %v1807 = vadd.f32 0.0, %v1806
        %1808 = vmatprep.mubr.f32.mxu0 0.0
        %1809 = vmatmul.mubr.f32.gmra.mxu0 %v1733
        %v1810 = vpop.f32.mrf.mxu0
        %v1811 = vadd.f32 0.0, %v1810
        %v1812 = vpop.f32.mrf.mxu0
        %v1813 = vadd.f32 0.0, %v1812
        %1814 = vmatprep.mubr.f32.mxu0 0.0
        %1815 = vmatmul.mubr.f32.gmra.mxu0 %v1736
        %v1816 = vpop.f32.mrf.mxu0
        %v1817 = vadd.f32 0.0, %v1816
        %v1818 = vpop.f32.mrf.mxu0
        %v1819 = vadd.f32 0.0, %v1818
        %1820 = vdwg.mxu0
        %1821 = vmatprep.subr.mxu0 0.0
        %1822 = vmatpush1.msra.mxu0 0.0
        %1823 = vmatprep.subr.mxu0 0.0
        %1824 = vmatpush1.msra.mxu0 0.0
        %1825 = vmatprep.subr.mxu0 0.0
        %1826 = vmatpush1.msra.mxu0 0.0
        %1827 = vmatprep.subr.mxu0 0.0
        %1828 = vmatpush1.msra.mxu0 0.0
        %1829 = vmatprep.subr.mxu0 0.0
        %1830 = vmatpush1.msra.mxu0 0.0
        %1831 = vmatprep.subr.mxu0 0.0
        %1832 = vmatpush1.msra.mxu0 0.0
        %1833 = vmatprep.subr.mxu0 0.0
        %1834 = vmatpush1.msra.mxu0 0.0
        %1835 = vmatprep.subr.mxu0 0.0
        %1836 = vmatpush1.msra.mxu0 0.0
        %1837 = vmatprep.subr.mxu0 0.0
        %1838 = vmatpush1.msra.mxu0 0.0
        %1839 = vmatprep.subr.mxu0 0.0
        %1840 = vmatpush1.msra.mxu0 0.0
        %1841 = vmatprep.subr.mxu0 0.0
        %1842 = vmatpush1.msra.mxu0 0.0
        %1843 = vmatprep.subr.mxu0 0.0
        %1844 = vmatpush1.msra.mxu0 0.0
        %1845 = vmatprep.subr.mxu0 0.0
        %1846 = vmatpush1.msra.mxu0 0.0
        %1847 = vmatprep.subr.mxu0 0.0
        %1848 = vmatpush1.msra.mxu0 0.0
        %1849 = vmatprep.subr.mxu0 0.0
        %1850 = vmatpush1.msra.mxu0 0.0
        %1851 = vmatprep.subr.mxu0 %v1724
        %1852 = vmatpush1.msra.mxu0 %v1723
        %1853 = vmatprep.subr.mxu0 0.0
        %1854 = vmatpush2.msra.mxu0 0.0
        %1855 = vmatprep.subr.mxu0 0.0
        %1856 = vmatpush2.msra.mxu0 0.0
        %1857 = vmatprep.subr.mxu0 0.0
        %1858 = vmatpush2.msra.mxu0 0.0
        %1859 = vmatprep.subr.mxu0 0.0
        %1860 = vmatpush2.msra.mxu0 0.0
        %1861 = vmatprep.subr.mxu0 0.0
        %1862 = vmatpush2.msra.mxu0 0.0
        %1863 = vmatprep.subr.mxu0 0.0
        %1864 = vmatpush2.msra.mxu0 0.0
        %1865 = vmatprep.subr.mxu0 0.0
        %1866 = vmatpush2.msra.mxu0 0.0
        %1867 = vmatprep.subr.mxu0 0.0
        %1868 = vmatpush2.msra.mxu0 0.0
        %1869 = vmatprep.subr.mxu0 0.0
        %1870 = vmatpush2.msra.mxu0 0.0
        %1871 = vmatprep.subr.mxu0 0.0
        %1872 = vmatpush2.msra.mxu0 0.0
        %1873 = vmatprep.subr.mxu0 0.0
        %1874 = vmatpush2.msra.mxu0 0.0
        %1875 = vmatprep.subr.mxu0 0.0
        %1876 = vmatpush2.msra.mxu0 0.0
        %1877 = vmatprep.subr.mxu0 0.0
        %1878 = vmatpush2.msra.mxu0 0.0
        %1879 = vmatprep.subr.mxu0 0.0
        %1880 = vmatpush2.msra.mxu0 0.0
        %1881 = vmatprep.subr.mxu0 0.0
        %1882 = vmatpush2.msra.mxu0 0.0
        %1883 = vmatprep.subr.mxu0 0.0
        %1884 = vmatpush2.msra.mxu0 0.0
        %1885 = vmatprep.mubr.f32.mxu0 0.0
        %1886 = vmatmul.mubr.f32.gmra.mxu0 %v1730
        %v1887 = vpop.f32.mrf.mxu0
        %v1888 = vadd.f32 0.0, %v1887
        %v1889 = vpop.f32.mrf.mxu0
        %v1890 = vadd.f32 0.0, %v1889
        %1891 = vmatprep.mubr.f32.mxu0 0.0
        %1892 = vmatmul.mubr.f32.gmra.mxu0 %v1733
        %v1893 = vpop.f32.mrf.mxu0
        %v1894 = vadd.f32 0.0, %v1893
        %v1895 = vpop.f32.mrf.mxu0
        %v1896 = vadd.f32 0.0, %v1895
        %1897 = vmatprep.mubr.f32.mxu0 0.0
        %1898 = vmatmul.mubr.f32.gmra.mxu0 %v1736
        %v1899 = vpop.f32.mrf.mxu0
        %v1900 = vadd.f32 0.0, %v1899
        %v1901 = vpop.f32.mrf.mxu0
        %v1902 = vadd.f32 0.0, %v1901
        %1903 = vdwg.mxu0
        %v1904 = vadd.f32 %v1673, %v1805
        %v1905 = vadd.f32 %v1674, %v1807
        %v1906 = vadd.f32 %v1675, %v1888
        %v1907 = vadd.f32 %v1676, %v1890
        %v1908 = vadd.f32 %v1677, %v1811
        %v1909 = vadd.f32 %v1678, %v1813
        %v1910 = vadd.f32 %v1679, %v1894
        %v1911 = vadd.f32 %v1680, %v1896
        %v1912 = vadd.f32 %v1681, %v1817
        %v1913 = vadd.f32 %v1682, %v1819
        %v1914 = vadd.f32 %v1683, %v1900
        %v1915 = vadd.f32 %v1684, %v1902
        %1916 = vrot.lane.b32.xlu0 %v358, 112
        %v1917 = vpop.permute.xlu0 %1916
        %1918 = vrot.lane.b32.xlu0 %v359, 112
        %v1919 = vpop.permute.xlu0 %1918
        %1920 = vrot.lane.b32.xlu0 %v360, 112
        %v1921 = vpop.permute.xlu0 %1920
        %1922 = vrot.lane.b32.xlu0 %v361, 112
        %v1923 = vpop.permute.xlu0 %1922
        %vm1924 = vcmp.lt.s32.totalorder %v371, 112
        %v1925 = vsel %vm1924, %v1921, %v1923
        %v1926 = vsel %vm1924, %v1919, %v1921
        %v1927 = vsel %vm1924, %v1917, %v1919
        %v1928 = vsel %vm1924, %v1923, %v1917
        %s1929 = scalar_lea.vmem %s8, 28
        %v1930 = vld [vmem:[%s1929] sm:$0xf]
        %v1932 = vlaneseq
        %v1933 = vshrl.u32 %v1932, 7
        %v1934 = vsub.s32 0, %v1933
        %v1935 = vrot.slane %v1930, %v1934
        %v1936 = vlaneseq
        %v1937 = vshrl.u32 %v1936, 7
        %v1938 = vsub.s32 1, %v1937
        %v1939 = vrot.slane %v1930, %v1938
        %v1940 = vlaneseq
        %v1941 = vshrl.u32 %v1940, 7
        %v1942 = vsub.s32 2, %v1941
        %v1943 = vrot.slane %v1930, %v1942
        %v1944 = vlaneseq
        %v1945 = vshrl.u32 %v1944, 7
        %v1946 = vsub.s32 3, %v1945
        %v1947 = vrot.slane %v1930, %v1946
        %v1952 = vmul.f32 %v1927, %v1935
        %v1953 = vmul.f32 %v1926, %v1939
        %v1954 = vmul.f32 %v1925, %v1943
        %v1955 = vmul.f32 %v1928, %v1947
        %s1956 = scalar_lea.vmem %s3, 168
        %v1957 = vld [vmem:[%s1956] sm:$0xff]
        %v1958 = vld [vmem:[%s1956 + $0x8] sm:$0xff]
        %v1959 = vld [vmem:[%s1956 + $0x10] sm:$0xff]
        %v1961 = vsel %vm450, %v1957, 0
        %v1964 = vsel %vm450, %v1958, 0
        %v1967 = vsel %vm450, %v1959, 0
        %1969 = vmatprep.subr.mxu0 0.0
        %1970 = vmatpush1.msra.mxu0 0.0
        %1971 = vmatprep.subr.mxu0 0.0
        %1972 = vmatpush1.msra.mxu0 0.0
        %1973 = vmatprep.subr.mxu0 0.0
        %1974 = vmatpush1.msra.mxu0 0.0
        %1975 = vmatprep.subr.mxu0 0.0
        %1976 = vmatpush1.msra.mxu0 0.0
        %1977 = vmatprep.subr.mxu0 0.0
        %1978 = vmatpush1.msra.mxu0 0.0
        %1979 = vmatprep.subr.mxu0 0.0
        %1980 = vmatpush1.msra.mxu0 0.0
        %1981 = vmatprep.subr.mxu0 0.0
        %1982 = vmatpush1.msra.mxu0 0.0
        %1983 = vmatprep.subr.mxu0 0.0
        %1984 = vmatpush1.msra.mxu0 0.0
        %1985 = vmatprep.subr.mxu0 0.0
        %1986 = vmatpush1.msra.mxu0 0.0
        %1987 = vmatprep.subr.mxu0 0.0
        %1988 = vmatpush1.msra.mxu0 0.0
        %1989 = vmatprep.subr.mxu0 0.0
        %1990 = vmatpush1.msra.mxu0 0.0
        %1991 = vmatprep.subr.mxu0 0.0
        %1992 = vmatpush1.msra.mxu0 0.0
        %1993 = vmatprep.subr.mxu0 0.0
        %1994 = vmatpush1.msra.mxu0 0.0
        %1995 = vmatprep.subr.mxu0 0.0
        %1996 = vmatpush1.msra.mxu0 0.0
        %1997 = vmatprep.subr.mxu0 0.0
        %1998 = vmatpush1.msra.mxu0 0.0
        %1999 = vmatprep.subr.mxu0 %v1953
        %2000 = vmatpush1.msra.mxu0 %v1952
        %2001 = vmatprep.subr.mxu0 0.0
        %2002 = vmatpush2.msra.mxu0 0.0
        %2003 = vmatprep.subr.mxu0 0.0
        %2004 = vmatpush2.msra.mxu0 0.0
        %2005 = vmatprep.subr.mxu0 0.0
        %2006 = vmatpush2.msra.mxu0 0.0
        %2007 = vmatprep.subr.mxu0 0.0
        %2008 = vmatpush2.msra.mxu0 0.0
        %2009 = vmatprep.subr.mxu0 0.0
        %2010 = vmatpush2.msra.mxu0 0.0
        %2011 = vmatprep.subr.mxu0 0.0
        %2012 = vmatpush2.msra.mxu0 0.0
        %2013 = vmatprep.subr.mxu0 0.0
        %2014 = vmatpush2.msra.mxu0 0.0
        %2015 = vmatprep.subr.mxu0 0.0
        %2016 = vmatpush2.msra.mxu0 0.0
        %2017 = vmatprep.subr.mxu0 0.0
        %2018 = vmatpush2.msra.mxu0 0.0
        %2019 = vmatprep.subr.mxu0 0.0
        %2020 = vmatpush2.msra.mxu0 0.0
        %2021 = vmatprep.subr.mxu0 0.0
        %2022 = vmatpush2.msra.mxu0 0.0
        %2023 = vmatprep.subr.mxu0 0.0
        %2024 = vmatpush2.msra.mxu0 0.0
        %2025 = vmatprep.subr.mxu0 0.0
        %2026 = vmatpush2.msra.mxu0 0.0
        %2027 = vmatprep.subr.mxu0 0.0
        %2028 = vmatpush2.msra.mxu0 0.0
        %2029 = vmatprep.subr.mxu0 0.0
        %2030 = vmatpush2.msra.mxu0 0.0
        %2031 = vmatprep.subr.mxu0 0.0
        %2032 = vmatpush2.msra.mxu0 0.0
        %2033 = vmatprep.mubr.f32.mxu0 0.0
        %2034 = vmatmul.mubr.f32.gmra.mxu0 %v1961
        %v2035 = vpop.f32.mrf.mxu0
        %v2036 = vadd.f32 0.0, %v2035
        %v2037 = vpop.f32.mrf.mxu0
        %v2038 = vadd.f32 0.0, %v2037
        %2039 = vmatprep.mubr.f32.mxu0 0.0
        %2040 = vmatmul.mubr.f32.gmra.mxu0 %v1964
        %v2041 = vpop.f32.mrf.mxu0
        %v2042 = vadd.f32 0.0, %v2041
        %v2043 = vpop.f32.mrf.mxu0
        %v2044 = vadd.f32 0.0, %v2043
        %2045 = vmatprep.mubr.f32.mxu0 0.0
        %2046 = vmatmul.mubr.f32.gmra.mxu0 %v1967
        %v2047 = vpop.f32.mrf.mxu0
        %v2048 = vadd.f32 0.0, %v2047
        %v2049 = vpop.f32.mrf.mxu0
        %v2050 = vadd.f32 0.0, %v2049
        %2051 = vdwg.mxu0
        %2052 = vmatprep.subr.mxu0 0.0
        %2053 = vmatpush1.msra.mxu0 0.0
        %2054 = vmatprep.subr.mxu0 0.0
        %2055 = vmatpush1.msra.mxu0 0.0
        %2056 = vmatprep.subr.mxu0 0.0
        %2057 = vmatpush1.msra.mxu0 0.0
        %2058 = vmatprep.subr.mxu0 0.0
        %2059 = vmatpush1.msra.mxu0 0.0
        %2060 = vmatprep.subr.mxu0 0.0
        %2061 = vmatpush1.msra.mxu0 0.0
        %2062 = vmatprep.subr.mxu0 0.0
        %2063 = vmatpush1.msra.mxu0 0.0
        %2064 = vmatprep.subr.mxu0 0.0
        %2065 = vmatpush1.msra.mxu0 0.0
        %2066 = vmatprep.subr.mxu0 0.0
        %2067 = vmatpush1.msra.mxu0 0.0
        %2068 = vmatprep.subr.mxu0 0.0
        %2069 = vmatpush1.msra.mxu0 0.0
        %2070 = vmatprep.subr.mxu0 0.0
        %2071 = vmatpush1.msra.mxu0 0.0
        %2072 = vmatprep.subr.mxu0 0.0
        %2073 = vmatpush1.msra.mxu0 0.0
        %2074 = vmatprep.subr.mxu0 0.0
        %2075 = vmatpush1.msra.mxu0 0.0
        %2076 = vmatprep.subr.mxu0 0.0
        %2077 = vmatpush1.msra.mxu0 0.0
        %2078 = vmatprep.subr.mxu0 0.0
        %2079 = vmatpush1.msra.mxu0 0.0
        %2080 = vmatprep.subr.mxu0 0.0
        %2081 = vmatpush1.msra.mxu0 0.0
        %2082 = vmatprep.subr.mxu0 %v1955
        %2083 = vmatpush1.msra.mxu0 %v1954
        %2084 = vmatprep.subr.mxu0 0.0
        %2085 = vmatpush2.msra.mxu0 0.0
        %2086 = vmatprep.subr.mxu0 0.0
        %2087 = vmatpush2.msra.mxu0 0.0
        %2088 = vmatprep.subr.mxu0 0.0
        %2089 = vmatpush2.msra.mxu0 0.0
        %2090 = vmatprep.subr.mxu0 0.0
        %2091 = vmatpush2.msra.mxu0 0.0
        %2092 = vmatprep.subr.mxu0 0.0
        %2093 = vmatpush2.msra.mxu0 0.0
        %2094 = vmatprep.subr.mxu0 0.0
        %2095 = vmatpush2.msra.mxu0 0.0
        %2096 = vmatprep.subr.mxu0 0.0
        %2097 = vmatpush2.msra.mxu0 0.0
        %2098 = vmatprep.subr.mxu0 0.0
        %2099 = vmatpush2.msra.mxu0 0.0
        %2100 = vmatprep.subr.mxu0 0.0
        %2101 = vmatpush2.msra.mxu0 0.0
        %2102 = vmatprep.subr.mxu0 0.0
        %2103 = vmatpush2.msra.mxu0 0.0
        %2104 = vmatprep.subr.mxu0 0.0
        %2105 = vmatpush2.msra.mxu0 0.0
        %2106 = vmatprep.subr.mxu0 0.0
        %2107 = vmatpush2.msra.mxu0 0.0
        %2108 = vmatprep.subr.mxu0 0.0
        %2109 = vmatpush2.msra.mxu0 0.0
        %2110 = vmatprep.subr.mxu0 0.0
        %2111 = vmatpush2.msra.mxu0 0.0
        %2112 = vmatprep.subr.mxu0 0.0
        %2113 = vmatpush2.msra.mxu0 0.0
        %2114 = vmatprep.subr.mxu0 0.0
        %2115 = vmatpush2.msra.mxu0 0.0
        %2116 = vmatprep.mubr.f32.mxu0 0.0
        %2117 = vmatmul.mubr.f32.gmra.mxu0 %v1961
        %v2118 = vpop.f32.mrf.mxu0
        %v2119 = vadd.f32 0.0, %v2118
        %v2120 = vpop.f32.mrf.mxu0
        %v2121 = vadd.f32 0.0, %v2120
        %2122 = vmatprep.mubr.f32.mxu0 0.0
        %2123 = vmatmul.mubr.f32.gmra.mxu0 %v1964
        %v2124 = vpop.f32.mrf.mxu0
        %v2125 = vadd.f32 0.0, %v2124
        %v2126 = vpop.f32.mrf.mxu0
        %v2127 = vadd.f32 0.0, %v2126
        %2128 = vmatprep.mubr.f32.mxu0 0.0
        %2129 = vmatmul.mubr.f32.gmra.mxu0 %v1967
        %v2130 = vpop.f32.mrf.mxu0
        %v2131 = vadd.f32 0.0, %v2130
        %v2132 = vpop.f32.mrf.mxu0
        %v2133 = vadd.f32 0.0, %v2132
        %2134 = vdwg.mxu0
        %v2135 = vadd.f32 %v1904, %v2036
        %v2136 = vadd.f32 %v1905, %v2038
        %v2137 = vadd.f32 %v1906, %v2119
        %v2138 = vadd.f32 %v1907, %v2121
        %v2139 = vadd.f32 %v1908, %v2042
        %v2140 = vadd.f32 %v1909, %v2044
        %v2141 = vadd.f32 %v1910, %v2125
        %v2142 = vadd.f32 %v1911, %v2127
        %v2143 = vadd.f32 %v1912, %v2048
        %v2144 = vadd.f32 %v1913, %v2050
        %v2145 = vadd.f32 %v1914, %v2131
        %v2146 = vadd.f32 %v1915, %v2133
        %2147 = vrot.lane.b32.xlu0 %v358, 111
        %v2148 = vpop.permute.xlu0 %2147
        %2149 = vrot.lane.b32.xlu0 %v359, 111
        %v2150 = vpop.permute.xlu0 %2149
        %2151 = vrot.lane.b32.xlu0 %v360, 111
        %v2152 = vpop.permute.xlu0 %2151
        %2153 = vrot.lane.b32.xlu0 %v361, 111
        %v2154 = vpop.permute.xlu0 %2153
        %vm2155 = vcmp.lt.s32.totalorder %v371, 111
        %v2156 = vsel %vm2155, %v2152, %v2154
        %v2157 = vsel %vm2155, %v2150, %v2152
        %v2158 = vsel %vm2155, %v2148, %v2150
        %v2159 = vsel %vm2155, %v2154, %v2148
        %s2160 = scalar_lea.vmem %s8, 32
        %v2161 = vld [vmem:[%s2160] sm:$0xf]
        %v2163 = vlaneseq
        %v2164 = vshrl.u32 %v2163, 7
        %v2165 = vsub.s32 0, %v2164
        %v2166 = vrot.slane %v2161, %v2165
        %v2167 = vlaneseq
        %v2168 = vshrl.u32 %v2167, 7
        %v2169 = vsub.s32 1, %v2168
        %v2170 = vrot.slane %v2161, %v2169
        %v2171 = vlaneseq
        %v2172 = vshrl.u32 %v2171, 7
        %v2173 = vsub.s32 2, %v2172
        %v2174 = vrot.slane %v2161, %v2173
        %v2175 = vlaneseq
        %v2176 = vshrl.u32 %v2175, 7
        %v2177 = vsub.s32 3, %v2176
        %v2178 = vrot.slane %v2161, %v2177
        %v2183 = vmul.f32 %v2158, %v2166
        %v2184 = vmul.f32 %v2157, %v2170
        %v2185 = vmul.f32 %v2156, %v2174
        %v2186 = vmul.f32 %v2159, %v2178
        %s2187 = scalar_lea.vmem %s3, 192
        %v2188 = vld [vmem:[%s2187] sm:$0xff]
        %v2189 = vld [vmem:[%s2187 + $0x8] sm:$0xff]
        %v2190 = vld [vmem:[%s2187 + $0x10] sm:$0xff]
        %v2192 = vsel %vm450, %v2188, 0
        %v2195 = vsel %vm450, %v2189, 0
        %v2198 = vsel %vm450, %v2190, 0
        %2200 = vmatprep.subr.mxu0 0.0
        %2201 = vmatpush1.msra.mxu0 0.0
        %2202 = vmatprep.subr.mxu0 0.0
        %2203 = vmatpush1.msra.mxu0 0.0
        %2204 = vmatprep.subr.mxu0 0.0
        %2205 = vmatpush1.msra.mxu0 0.0
        %2206 = vmatprep.subr.mxu0 0.0
        %2207 = vmatpush1.msra.mxu0 0.0
        %2208 = vmatprep.subr.mxu0 0.0
        %2209 = vmatpush1.msra.mxu0 0.0
        %2210 = vmatprep.subr.mxu0 0.0
        %2211 = vmatpush1.msra.mxu0 0.0
        %2212 = vmatprep.subr.mxu0 0.0
        %2213 = vmatpush1.msra.mxu0 0.0
        %2214 = vmatprep.subr.mxu0 0.0
        %2215 = vmatpush1.msra.mxu0 0.0
        %2216 = vmatprep.subr.mxu0 0.0
        %2217 = vmatpush1.msra.mxu0 0.0
        %2218 = vmatprep.subr.mxu0 0.0
        %2219 = vmatpush1.msra.mxu0 0.0
        %2220 = vmatprep.subr.mxu0 0.0
        %2221 = vmatpush1.msra.mxu0 0.0
        %2222 = vmatprep.subr.mxu0 0.0
        %2223 = vmatpush1.msra.mxu0 0.0
        %2224 = vmatprep.subr.mxu0 0.0
        %2225 = vmatpush1.msra.mxu0 0.0
        %2226 = vmatprep.subr.mxu0 0.0
        %2227 = vmatpush1.msra.mxu0 0.0
        %2228 = vmatprep.subr.mxu0 0.0
        %2229 = vmatpush1.msra.mxu0 0.0
        %2230 = vmatprep.subr.mxu0 %v2184
        %2231 = vmatpush1.msra.mxu0 %v2183
        %2232 = vmatprep.subr.mxu0 0.0
        %2233 = vmatpush2.msra.mxu0 0.0
        %2234 = vmatprep.subr.mxu0 0.0
        %2235 = vmatpush2.msra.mxu0 0.0
        %2236 = vmatprep.subr.mxu0 0.0
        %2237 = vmatpush2.msra.mxu0 0.0
        %2238 = vmatprep.subr.mxu0 0.0
        %2239 = vmatpush2.msra.mxu0 0.0
        %2240 = vmatprep.subr.mxu0 0.0
        %2241 = vmatpush2.msra.mxu0 0.0
        %2242 = vmatprep.subr.mxu0 0.0
        %2243 = vmatpush2.msra.mxu0 0.0
        %2244 = vmatprep.subr.mxu0 0.0
        %2245 = vmatpush2.msra.mxu0 0.0
        %2246 = vmatprep.subr.mxu0 0.0
        %2247 = vmatpush2.msra.mxu0 0.0
        %2248 = vmatprep.subr.mxu0 0.0
        %2249 = vmatpush2.msra.mxu0 0.0
        %2250 = vmatprep.subr.mxu0 0.0
        %2251 = vmatpush2.msra.mxu0 0.0
        %2252 = vmatprep.subr.mxu0 0.0
        %2253 = vmatpush2.msra.mxu0 0.0
        %2254 = vmatprep.subr.mxu0 0.0
        %2255 = vmatpush2.msra.mxu0 0.0
        %2256 = vmatprep.subr.mxu0 0.0
        %2257 = vmatpush2.msra.mxu0 0.0
        %2258 = vmatprep.subr.mxu0 0.0
        %2259 = vmatpush2.msra.mxu0 0.0
        %2260 = vmatprep.subr.mxu0 0.0
        %2261 = vmatpush2.msra.mxu0 0.0
        %2262 = vmatprep.subr.mxu0 0.0
        %2263 = vmatpush2.msra.mxu0 0.0
        %2264 = vmatprep.mubr.f32.mxu0 0.0
        %2265 = vmatmul.mubr.f32.gmra.mxu0 %v2192
        %v2266 = vpop.f32.mrf.mxu0
        %v2267 = vadd.f32 0.0, %v2266
        %v2268 = vpop.f32.mrf.mxu0
        %v2269 = vadd.f32 0.0, %v2268
        %2270 = vmatprep.mubr.f32.mxu0 0.0
        %2271 = vmatmul.mubr.f32.gmra.mxu0 %v2195
        %v2272 = vpop.f32.mrf.mxu0
        %v2273 = vadd.f32 0.0, %v2272
        %v2274 = vpop.f32.mrf.mxu0
        %v2275 = vadd.f32 0.0, %v2274
        %2276 = vmatprep.mubr.f32.mxu0 0.0
        %2277 = vmatmul.mubr.f32.gmra.mxu0 %v2198
        %v2278 = vpop.f32.mrf.mxu0
        %v2279 = vadd.f32 0.0, %v2278
        %v2280 = vpop.f32.mrf.mxu0
        %v2281 = vadd.f32 0.0, %v2280
        %2282 = vdwg.mxu0
        %2283 = vmatprep.subr.mxu0 0.0
        %2284 = vmatpush1.msra.mxu0 0.0
        %2285 = vmatprep.subr.mxu0 0.0
        %2286 = vmatpush1.msra.mxu0 0.0
        %2287 = vmatprep.subr.mxu0 0.0
        %2288 = vmatpush1.msra.mxu0 0.0
        %2289 = vmatprep.subr.mxu0 0.0
        %2290 = vmatpush1.msra.mxu0 0.0
        %2291 = vmatprep.subr.mxu0 0.0
        %2292 = vmatpush1.msra.mxu0 0.0
        %2293 = vmatprep.subr.mxu0 0.0
        %2294 = vmatpush1.msra.mxu0 0.0
        %2295 = vmatprep.subr.mxu0 0.0
        %2296 = vmatpush1.msra.mxu0 0.0
        %2297 = vmatprep.subr.mxu0 0.0
        %2298 = vmatpush1.msra.mxu0 0.0
        %2299 = vmatprep.subr.mxu0 0.0
        %2300 = vmatpush1.msra.mxu0 0.0
        %2301 = vmatprep.subr.mxu0 0.0
        %2302 = vmatpush1.msra.mxu0 0.0
        %2303 = vmatprep.subr.mxu0 0.0
        %2304 = vmatpush1.msra.mxu0 0.0
        %2305 = vmatprep.subr.mxu0 0.0
        %2306 = vmatpush1.msra.mxu0 0.0
        %2307 = vmatprep.subr.mxu0 0.0
        %2308 = vmatpush1.msra.mxu0 0.0
        %2309 = vmatprep.subr.mxu0 0.0
        %2310 = vmatpush1.msra.mxu0 0.0
        %2311 = vmatprep.subr.mxu0 0.0
        %2312 = vmatpush1.msra.mxu0 0.0
        %2313 = vmatprep.subr.mxu0 %v2186
        %2314 = vmatpush1.msra.mxu0 %v2185
        %2315 = vmatprep.subr.mxu0 0.0
        %2316 = vmatpush2.msra.mxu0 0.0
        %2317 = vmatprep.subr.mxu0 0.0
        %2318 = vmatpush2.msra.mxu0 0.0
        %2319 = vmatprep.subr.mxu0 0.0
        %2320 = vmatpush2.msra.mxu0 0.0
        %2321 = vmatprep.subr.mxu0 0.0
        %2322 = vmatpush2.msra.mxu0 0.0
        %2323 = vmatprep.subr.mxu0 0.0
        %2324 = vmatpush2.msra.mxu0 0.0
        %2325 = vmatprep.subr.mxu0 0.0
        %2326 = vmatpush2.msra.mxu0 0.0
        %2327 = vmatprep.subr.mxu0 0.0
        %2328 = vmatpush2.msra.mxu0 0.0
        %2329 = vmatprep.subr.mxu0 0.0
        %2330 = vmatpush2.msra.mxu0 0.0
        %2331 = vmatprep.subr.mxu0 0.0
        %2332 = vmatpush2.msra.mxu0 0.0
        %2333 = vmatprep.subr.mxu0 0.0
        %2334 = vmatpush2.msra.mxu0 0.0
        %2335 = vmatprep.subr.mxu0 0.0
        %2336 = vmatpush2.msra.mxu0 0.0
        %2337 = vmatprep.subr.mxu0 0.0
        %2338 = vmatpush2.msra.mxu0 0.0
        %2339 = vmatprep.subr.mxu0 0.0
        %2340 = vmatpush2.msra.mxu0 0.0
        %2341 = vmatprep.subr.mxu0 0.0
        %2342 = vmatpush2.msra.mxu0 0.0
        %2343 = vmatprep.subr.mxu0 0.0
        %2344 = vmatpush2.msra.mxu0 0.0
        %2345 = vmatprep.subr.mxu0 0.0
        %2346 = vmatpush2.msra.mxu0 0.0
        %2347 = vmatprep.mubr.f32.mxu0 0.0
        %2348 = vmatmul.mubr.f32.gmra.mxu0 %v2192
        %v2349 = vpop.f32.mrf.mxu0
        %v2350 = vadd.f32 0.0, %v2349
        %v2351 = vpop.f32.mrf.mxu0
        %v2352 = vadd.f32 0.0, %v2351
        %2353 = vmatprep.mubr.f32.mxu0 0.0
        %2354 = vmatmul.mubr.f32.gmra.mxu0 %v2195
        %v2355 = vpop.f32.mrf.mxu0
        %v2356 = vadd.f32 0.0, %v2355
        %v2357 = vpop.f32.mrf.mxu0
        %v2358 = vadd.f32 0.0, %v2357
        %2359 = vmatprep.mubr.f32.mxu0 0.0
        %2360 = vmatmul.mubr.f32.gmra.mxu0 %v2198
        %v2361 = vpop.f32.mrf.mxu0
        %v2362 = vadd.f32 0.0, %v2361
        %v2363 = vpop.f32.mrf.mxu0
        %v2364 = vadd.f32 0.0, %v2363
        %2365 = vdwg.mxu0
        %v2366 = vadd.f32 %v2135, %v2267
        %v2367 = vadd.f32 %v2136, %v2269
        %v2368 = vadd.f32 %v2137, %v2350
        %v2369 = vadd.f32 %v2138, %v2352
        %v2370 = vadd.f32 %v2139, %v2273
        %v2371 = vadd.f32 %v2140, %v2275
        %v2372 = vadd.f32 %v2141, %v2356
        %v2373 = vadd.f32 %v2142, %v2358
        %v2374 = vadd.f32 %v2143, %v2279
        %v2375 = vadd.f32 %v2144, %v2281
        %v2376 = vadd.f32 %v2145, %v2362
        %v2377 = vadd.f32 %v2146, %v2364
        %v2378 = vld [vmem:[%s4] sm:$0xff]
        %v2379 = vld [vmem:[%s4 + $0x8] sm:$0xff]
        %v2380 = vld [vmem:[%s4 + $0x10] sm:$0xff]
        %2382 = vset.pattern.permute.xlu0 0
        %2383 = vperm.xlu0 %2382, %v2378
        %v2384 = vpop.permute.xlu0 %2383
        %2387 = vset.pattern.permute.xlu0 0
        %2388 = vperm.xlu0 %2387, %v2379
        %v2389 = vpop.permute.xlu0 %2388
        %2392 = vset.pattern.permute.xlu0 0
        %2393 = vperm.xlu0 %2392, %v2380
        %v2394 = vpop.permute.xlu0 %2393
        %v2396 = vmul.f32 %v2366, %v2384
        %v2397 = vmul.f32 %v2367, %v2384
        %v2398 = vmul.f32 %v2368, %v2384
        %v2399 = vmul.f32 %v2369, %v2384
        %v2400 = vmul.f32 %v2370, %v2389
        %v2401 = vmul.f32 %v2371, %v2389
        %v2402 = vmul.f32 %v2372, %v2389
        %v2403 = vmul.f32 %v2373, %v2389
        %v2404 = vmul.f32 %v2374, %v2394
        %v2405 = vmul.f32 %v2375, %v2394
        %v2406 = vmul.f32 %v2376, %v2394
        %v2407 = vmul.f32 %v2377, %v2394
        %v2408 = vld [vmem:[%s5] sm:$0xff]
        %v2409 = vld [vmem:[%s5 + $0x8] sm:$0xff]
        %v2410 = vld [vmem:[%s5 + $0x10] sm:$0xff]
        %2412 = vset.pattern.permute.xlu0 0
        %2413 = vperm.xlu0 %2412, %v2408
        %v2414 = vpop.permute.xlu0 %2413
        %2417 = vset.pattern.permute.xlu0 0
        %2418 = vperm.xlu0 %2417, %v2409
        %v2419 = vpop.permute.xlu0 %2418
        %2422 = vset.pattern.permute.xlu0 0
        %2423 = vperm.xlu0 %2422, %v2410
        %v2424 = vpop.permute.xlu0 %2423
        %v2426 = vadd.f32 %v2396, %v2414
        %v2427 = vadd.f32 %v2397, %v2414
        %v2428 = vadd.f32 %v2398, %v2414
        %v2429 = vadd.f32 %v2399, %v2414
        %v2430 = vadd.f32 %v2400, %v2419
        %v2431 = vadd.f32 %v2401, %v2419
        %v2432 = vadd.f32 %v2402, %v2419
        %v2433 = vadd.f32 %v2403, %v2419
        %v2434 = vadd.f32 %v2404, %v2424
        %v2435 = vadd.f32 %v2405, %v2424
        %v2436 = vadd.f32 %v2406, %v2424
        %v2437 = vadd.f32 %v2407, %v2424
        %v2438 = vmax.f32 %v2426, 0.0
        %v2439 = vmax.f32 %v2427, 0.0
        %v2440 = vmax.f32 %v2428, 0.0
        %v2441 = vmax.f32 %v2429, 0.0
        %v2442 = vmax.f32 %v2430, 0.0
        %v2443 = vmax.f32 %v2431, 0.0
        %v2444 = vmax.f32 %v2432, 0.0
        %v2445 = vmax.f32 %v2433, 0.0
        %v2446 = vmax.f32 %v2434, 0.0
        %v2447 = vmax.f32 %v2435, 0.0
        %v2448 = vmax.f32 %v2436, 0.0
        %v2449 = vmax.f32 %v2437, 0.0
        %2450 = vrot.lane.b32.xlu0 %v2438, 17
        %v2451 = vpop.permute.xlu0 %2450
        %2452 = vrot.lane.b32.xlu0 %v2442, 17
        %v2453 = vpop.permute.xlu0 %2452
        %2454 = vrot.lane.b32.xlu0 %v2446, 17
        %v2455 = vpop.permute.xlu0 %2454
        %2456 = vrot.lane.b32.xlu0 %v2439, 17
        %v2457 = vpop.permute.xlu0 %2456
        %2458 = vrot.lane.b32.xlu0 %v2443, 17
        %v2459 = vpop.permute.xlu0 %2458
        %2460 = vrot.lane.b32.xlu0 %v2447, 17
        %v2461 = vpop.permute.xlu0 %2460
        %2462 = vrot.lane.b32.xlu0 %v2440, 17
        %v2463 = vpop.permute.xlu0 %2462
        %2464 = vrot.lane.b32.xlu0 %v2444, 17
        %v2465 = vpop.permute.xlu0 %2464
        %2466 = vrot.lane.b32.xlu0 %v2448, 17
        %v2467 = vpop.permute.xlu0 %2466
        %2468 = vrot.lane.b32.xlu0 %v2441, 17
        %v2469 = vpop.permute.xlu0 %2468
        %2470 = vrot.lane.b32.xlu0 %v2445, 17
        %v2471 = vpop.permute.xlu0 %2470
        %2472 = vrot.lane.b32.xlu0 %v2449, 17
        %v2473 = vpop.permute.xlu0 %2472
        %v2474 = vsel %vm372, %v2463, %v2469
        %v2475 = vsel %vm372, %v2465, %v2471
        %v2476 = vsel %vm372, %v2467, %v2473
        %v2477 = vsel %vm372, %v2457, %v2463
        %v2478 = vsel %vm372, %v2459, %v2465
        %v2479 = vsel %vm372, %v2461, %v2467
        %v2480 = vsel %vm372, %v2451, %v2457
        %v2481 = vsel %vm372, %v2453, %v2459
        %v2482 = vsel %vm372, %v2455, %v2461
        %v2483 = vsel %vm372, %v2469, %v2451
        %v2484 = vsel %vm372, %v2471, %v2453
        %v2485 = vsel %vm372, %v2473, %v2455
        %v2486 = vld [vmem:[%s6] sm:$0xf]
        %vm2487 = vcmask 195584
        %v2489 = vsel %vm2487, %v2486, 0
        %2491 = vmatprep.subr.mxu0 0.0
        %2492 = vmatpush1.msra.mxu0 0.0
        %2493 = vmatprep.subr.mxu0 0.0
        %2494 = vmatpush1.msra.mxu0 0.0
        %2495 = vmatprep.subr.mxu0 0.0
        %2496 = vmatpush1.msra.mxu0 0.0
        %2497 = vmatprep.subr.mxu0 0.0
        %2498 = vmatpush1.msra.mxu0 0.0
        %2499 = vmatprep.subr.mxu0 0.0
        %2500 = vmatpush1.msra.mxu0 0.0
        %2501 = vmatprep.subr.mxu0 0.0
        %2502 = vmatpush1.msra.mxu0 0.0
        %2503 = vmatprep.subr.mxu0 0.0
        %2504 = vmatpush1.msra.mxu0 0.0
        %2505 = vmatprep.subr.mxu0 0.0
        %2506 = vmatpush1.msra.mxu0 0.0
        %2507 = vmatprep.subr.mxu0 0.0
        %2508 = vmatpush1.msra.mxu0 0.0
        %2509 = vmatprep.subr.mxu0 0.0
        %2510 = vmatpush1.msra.mxu0 0.0
        %2511 = vmatprep.subr.mxu0 0.0
        %2512 = vmatpush1.msra.mxu0 0.0
        %2513 = vmatprep.subr.mxu0 0.0
        %2514 = vmatpush1.msra.mxu0 0.0
        %2515 = vmatprep.subr.mxu0 0.0
        %2516 = vmatpush1.msra.mxu0 0.0
        %2517 = vmatprep.subr.mxu0 %v2482
        %2518 = vmatpush1.msra.mxu0 %v2485
        %2519 = vmatprep.subr.mxu0 %v2481
        %2520 = vmatpush1.msra.mxu0 %v2484
        %2521 = vmatprep.subr.mxu0 %v2480
        %2522 = vmatpush1.msra.mxu0 %v2483
        %2523 = vmatprep.subr.mxu0 0.0
        %2524 = vmatpush2.msra.mxu0 0.0
        %2525 = vmatprep.subr.mxu0 0.0
        %2526 = vmatpush2.msra.mxu0 0.0
        %2527 = vmatprep.subr.mxu0 0.0
        %2528 = vmatpush2.msra.mxu0 0.0
        %2529 = vmatprep.subr.mxu0 0.0
        %2530 = vmatpush2.msra.mxu0 0.0
        %2531 = vmatprep.subr.mxu0 0.0
        %2532 = vmatpush2.msra.mxu0 0.0
        %2533 = vmatprep.subr.mxu0 0.0
        %2534 = vmatpush2.msra.mxu0 0.0
        %2535 = vmatprep.subr.mxu0 0.0
        %2536 = vmatpush2.msra.mxu0 0.0
        %2537 = vmatprep.subr.mxu0 0.0
        %2538 = vmatpush2.msra.mxu0 0.0
        %2539 = vmatprep.subr.mxu0 0.0
        %2540 = vmatpush2.msra.mxu0 0.0
        %2541 = vmatprep.subr.mxu0 0.0
        %2542 = vmatpush2.msra.mxu0 0.0
        %2543 = vmatprep.subr.mxu0 0.0
        %2544 = vmatpush2.msra.mxu0 0.0
        %2545 = vmatprep.subr.mxu0 0.0
        %2546 = vmatpush2.msra.mxu0 0.0
        %2547 = vmatprep.subr.mxu0 0.0
        %2548 = vmatpush2.msra.mxu0 0.0
        %2549 = vmatprep.subr.mxu0 0.0
        %2550 = vmatpush2.msra.mxu0 0.0
        %2551 = vmatprep.subr.mxu0 0.0
        %2552 = vmatpush2.msra.mxu0 0.0
        %2553 = vmatprep.subr.mxu0 0.0
        %2554 = vmatpush2.msra.mxu0 0.0
        %2555 = vmatprep.mubr.f32.mxu0 0.0
        %2556 = vmatmul.mubr.f32.gmra.mxu0 %v2489
        %v2557 = vpop.f32.mrf.mxu0
        %v2558 = vadd.f32 0.0, %v2557
        %v2559 = vpop.f32.mrf.mxu0
        %v2560 = vadd.f32 0.0, %v2559
        %2561 = vdwg.mxu0
        %2562 = vmatprep.subr.mxu0 0.0
        %2563 = vmatpush1.msra.mxu0 0.0
        %2564 = vmatprep.subr.mxu0 0.0
        %2565 = vmatpush1.msra.mxu0 0.0
        %2566 = vmatprep.subr.mxu0 0.0
        %2567 = vmatpush1.msra.mxu0 0.0
        %2568 = vmatprep.subr.mxu0 0.0
        %2569 = vmatpush1.msra.mxu0 0.0
        %2570 = vmatprep.subr.mxu0 0.0
        %2571 = vmatpush1.msra.mxu0 0.0
        %2572 = vmatprep.subr.mxu0 0.0
        %2573 = vmatpush1.msra.mxu0 0.0
        %2574 = vmatprep.subr.mxu0 0.0
        %2575 = vmatpush1.msra.mxu0 0.0
        %2576 = vmatprep.subr.mxu0 0.0
        %2577 = vmatpush1.msra.mxu0 0.0
        %2578 = vmatprep.subr.mxu0 0.0
        %2579 = vmatpush1.msra.mxu0 0.0
        %2580 = vmatprep.subr.mxu0 0.0
        %2581 = vmatpush1.msra.mxu0 0.0
        %2582 = vmatprep.subr.mxu0 0.0
        %2583 = vmatpush1.msra.mxu0 0.0
        %2584 = vmatprep.subr.mxu0 0.0
        %2585 = vmatpush1.msra.mxu0 0.0
        %2586 = vmatprep.subr.mxu0 0.0
        %2587 = vmatpush1.msra.mxu0 0.0
        %2588 = vmatprep.subr.mxu0 %v2476
        %2589 = vmatpush1.msra.mxu0 %v2479
        %2590 = vmatprep.subr.mxu0 %v2475
        %2591 = vmatpush1.msra.mxu0 %v2478
        %2592 = vmatprep.subr.mxu0 %v2474
        %2593 = vmatpush1.msra.mxu0 %v2477
        %2594 = vmatprep.subr.mxu0 0.0
        %2595 = vmatpush2.msra.mxu0 0.0
        %2596 = vmatprep.subr.mxu0 0.0
        %2597 = vmatpush2.msra.mxu0 0.0
        %2598 = vmatprep.subr.mxu0 0.0
        %2599 = vmatpush2.msra.mxu0 0.0
        %2600 = vmatprep.subr.mxu0 0.0
        %2601 = vmatpush2.msra.mxu0 0.0
        %2602 = vmatprep.subr.mxu0 0.0
        %2603 = vmatpush2.msra.mxu0 0.0
        %2604 = vmatprep.subr.mxu0 0.0
        %2605 = vmatpush2.msra.mxu0 0.0
        %2606 = vmatprep.subr.mxu0 0.0
        %2607 = vmatpush2.msra.mxu0 0.0
        %2608 = vmatprep.subr.mxu0 0.0
        %2609 = vmatpush2.msra.mxu0 0.0
        %2610 = vmatprep.subr.mxu0 0.0
        %2611 = vmatpush2.msra.mxu0 0.0
        %2612 = vmatprep.subr.mxu0 0.0
        %2613 = vmatpush2.msra.mxu0 0.0
        %2614 = vmatprep.subr.mxu0 0.0
        %2615 = vmatpush2.msra.mxu0 0.0
        %2616 = vmatprep.subr.mxu0 0.0
        %2617 = vmatpush2.msra.mxu0 0.0
        %2618 = vmatprep.subr.mxu0 0.0
        %2619 = vmatpush2.msra.mxu0 0.0
        %2620 = vmatprep.subr.mxu0 0.0
        %2621 = vmatpush2.msra.mxu0 0.0
        %2622 = vmatprep.subr.mxu0 0.0
        %2623 = vmatpush2.msra.mxu0 0.0
        %2624 = vmatprep.subr.mxu0 0.0
        %2625 = vmatpush2.msra.mxu0 0.0
        %2626 = vmatprep.mubr.f32.mxu0 0.0
        %2627 = vmatmul.mubr.f32.gmra.mxu0 %v2489
        %v2628 = vpop.f32.mrf.mxu0
        %v2629 = vadd.f32 0.0, %v2628
        %v2630 = vpop.f32.mrf.mxu0
        %v2631 = vadd.f32 0.0, %v2630
        %2632 = vdwg.mxu0
        %v2633 = vmul.f32 %v2558, %v382
        %v2634 = vmul.f32 %v2560, %v386
        %v2635 = vmul.f32 %v2629, %v390
        %v2636 = vmul.f32 %v2631, %v394
        %2637 = vrot.lane.b32.xlu0 %v2438, 16
        %v2638 = vpop.permute.xlu0 %2637
        %2639 = vrot.lane.b32.xlu0 %v2442, 16
        %v2640 = vpop.permute.xlu0 %2639
        %2641 = vrot.lane.b32.xlu0 %v2446, 16
        %v2642 = vpop.permute.xlu0 %2641
        %2643 = vrot.lane.b32.xlu0 %v2439, 16
        %v2644 = vpop.permute.xlu0 %2643
        %2645 = vrot.lane.b32.xlu0 %v2443, 16
        %v2646 = vpop.permute.xlu0 %2645
        %2647 = vrot.lane.b32.xlu0 %v2447, 16
        %v2648 = vpop.permute.xlu0 %2647
        %2649 = vrot.lane.b32.xlu0 %v2440, 16
        %v2650 = vpop.permute.xlu0 %2649
        %2651 = vrot.lane.b32.xlu0 %v2444, 16
        %v2652 = vpop.permute.xlu0 %2651
        %2653 = vrot.lane.b32.xlu0 %v2448, 16
        %v2654 = vpop.permute.xlu0 %2653
        %2655 = vrot.lane.b32.xlu0 %v2441, 16
        %v2656 = vpop.permute.xlu0 %2655
        %2657 = vrot.lane.b32.xlu0 %v2445, 16
        %v2658 = vpop.permute.xlu0 %2657
        %2659 = vrot.lane.b32.xlu0 %v2449, 16
        %v2660 = vpop.permute.xlu0 %2659
        %v2661 = vsel %vm414, %v2650, %v2656
        %v2662 = vsel %vm414, %v2652, %v2658
        %v2663 = vsel %vm414, %v2654, %v2660
        %v2664 = vsel %vm414, %v2644, %v2650
        %v2665 = vsel %vm414, %v2646, %v2652
        %v2666 = vsel %vm414, %v2648, %v2654
        %v2667 = vsel %vm414, %v2638, %v2644
        %v2668 = vsel %vm414, %v2640, %v2646
        %v2669 = vsel %vm414, %v2642, %v2648
        %v2670 = vsel %vm414, %v2656, %v2638
        %v2671 = vsel %vm414, %v2658, %v2640
        %v2672 = vsel %vm414, %v2660, %v2642
        %s2673 = scalar_lea.vmem %s6, 4
        %v2674 = vld [vmem:[%s2673] sm:$0xf]
        %v2676 = vsel %vm2487, %v2674, 0
        %2678 = vmatprep.subr.mxu0 0.0
        %2679 = vmatpush1.msra.mxu0 0.0
        %2680 = vmatprep.subr.mxu0 0.0
        %2681 = vmatpush1.msra.mxu0 0.0
        %2682 = vmatprep.subr.mxu0 0.0
        %2683 = vmatpush1.msra.mxu0 0.0
        %2684 = vmatprep.subr.mxu0 0.0
        %2685 = vmatpush1.msra.mxu0 0.0
        %2686 = vmatprep.subr.mxu0 0.0
        %2687 = vmatpush1.msra.mxu0 0.0
        %2688 = vmatprep.subr.mxu0 0.0
        %2689 = vmatpush1.msra.mxu0 0.0
        %2690 = vmatprep.subr.mxu0 0.0
        %2691 = vmatpush1.msra.mxu0 0.0
        %2692 = vmatprep.subr.mxu0 0.0
        %2693 = vmatpush1.msra.mxu0 0.0
        %2694 = vmatprep.subr.mxu0 0.0
        %2695 = vmatpush1.msra.mxu0 0.0
        %2696 = vmatprep.subr.mxu0 0.0
        %2697 = vmatpush1.msra.mxu0 0.0
        %2698 = vmatprep.subr.mxu0 0.0
        %2699 = vmatpush1.msra.mxu0 0.0
        %2700 = vmatprep.subr.mxu0 0.0
        %2701 = vmatpush1.msra.mxu0 0.0
        %2702 = vmatprep.subr.mxu0 0.0
        %2703 = vmatpush1.msra.mxu0 0.0
        %2704 = vmatprep.subr.mxu0 %v2669
        %2705 = vmatpush1.msra.mxu0 %v2672
        %2706 = vmatprep.subr.mxu0 %v2668
        %2707 = vmatpush1.msra.mxu0 %v2671
        %2708 = vmatprep.subr.mxu0 %v2667
        %2709 = vmatpush1.msra.mxu0 %v2670
        %2710 = vmatprep.subr.mxu0 0.0
        %2711 = vmatpush2.msra.mxu0 0.0
        %2712 = vmatprep.subr.mxu0 0.0
        %2713 = vmatpush2.msra.mxu0 0.0
        %2714 = vmatprep.subr.mxu0 0.0
        %2715 = vmatpush2.msra.mxu0 0.0
        %2716 = vmatprep.subr.mxu0 0.0
        %2717 = vmatpush2.msra.mxu0 0.0
        %2718 = vmatprep.subr.mxu0 0.0
        %2719 = vmatpush2.msra.mxu0 0.0
        %2720 = vmatprep.subr.mxu0 0.0
        %2721 = vmatpush2.msra.mxu0 0.0
        %2722 = vmatprep.subr.mxu0 0.0
        %2723 = vmatpush2.msra.mxu0 0.0
        %2724 = vmatprep.subr.mxu0 0.0
        %2725 = vmatpush2.msra.mxu0 0.0
        %2726 = vmatprep.subr.mxu0 0.0
        %2727 = vmatpush2.msra.mxu0 0.0
        %2728 = vmatprep.subr.mxu0 0.0
        %2729 = vmatpush2.msra.mxu0 0.0
        %2730 = vmatprep.subr.mxu0 0.0
        %2731 = vmatpush2.msra.mxu0 0.0
        %2732 = vmatprep.subr.mxu0 0.0
        %2733 = vmatpush2.msra.mxu0 0.0
        %2734 = vmatprep.subr.mxu0 0.0
        %2735 = vmatpush2.msra.mxu0 0.0
        %2736 = vmatprep.subr.mxu0 0.0
        %2737 = vmatpush2.msra.mxu0 0.0
        %2738 = vmatprep.subr.mxu0 0.0
        %2739 = vmatpush2.msra.mxu0 0.0
        %2740 = vmatprep.subr.mxu0 0.0
        %2741 = vmatpush2.msra.mxu0 0.0
        %2742 = vmatprep.mubr.f32.mxu0 0.0
        %2743 = vmatmul.mubr.f32.gmra.mxu0 %v2676
        %v2744 = vpop.f32.mrf.mxu0
        %v2745 = vadd.f32 0.0, %v2744
        %v2746 = vpop.f32.mrf.mxu0
        %v2747 = vadd.f32 0.0, %v2746
        %2748 = vdwg.mxu0
        %2749 = vmatprep.subr.mxu0 0.0
        %2750 = vmatpush1.msra.mxu0 0.0
        %2751 = vmatprep.subr.mxu0 0.0
        %2752 = vmatpush1.msra.mxu0 0.0
        %2753 = vmatprep.subr.mxu0 0.0
        %2754 = vmatpush1.msra.mxu0 0.0
        %2755 = vmatprep.subr.mxu0 0.0
        %2756 = vmatpush1.msra.mxu0 0.0
        %2757 = vmatprep.subr.mxu0 0.0
        %2758 = vmatpush1.msra.mxu0 0.0
        %2759 = vmatprep.subr.mxu0 0.0
        %2760 = vmatpush1.msra.mxu0 0.0
        %2761 = vmatprep.subr.mxu0 0.0
        %2762 = vmatpush1.msra.mxu0 0.0
        %2763 = vmatprep.subr.mxu0 0.0
        %2764 = vmatpush1.msra.mxu0 0.0
        %2765 = vmatprep.subr.mxu0 0.0
        %2766 = vmatpush1.msra.mxu0 0.0
        %2767 = vmatprep.subr.mxu0 0.0
        %2768 = vmatpush1.msra.mxu0 0.0
        %2769 = vmatprep.subr.mxu0 0.0
        %2770 = vmatpush1.msra.mxu0 0.0
        %2771 = vmatprep.subr.mxu0 0.0
        %2772 = vmatpush1.msra.mxu0 0.0
        %2773 = vmatprep.subr.mxu0 0.0
        %2774 = vmatpush1.msra.mxu0 0.0
        %2775 = vmatprep.subr.mxu0 %v2663
        %2776 = vmatpush1.msra.mxu0 %v2666
        %2777 = vmatprep.subr.mxu0 %v2662
        %2778 = vmatpush1.msra.mxu0 %v2665
        %2779 = vmatprep.subr.mxu0 %v2661
        %2780 = vmatpush1.msra.mxu0 %v2664
        %2781 = vmatprep.subr.mxu0 0.0
        %2782 = vmatpush2.msra.mxu0 0.0
        %2783 = vmatprep.subr.mxu0 0.0
        %2784 = vmatpush2.msra.mxu0 0.0
        %2785 = vmatprep.subr.mxu0 0.0
        %2786 = vmatpush2.msra.mxu0 0.0
        %2787 = vmatprep.subr.mxu0 0.0
        %2788 = vmatpush2.msra.mxu0 0.0
        %2789 = vmatprep.subr.mxu0 0.0
        %2790 = vmatpush2.msra.mxu0 0.0
        %2791 = vmatprep.subr.mxu0 0.0
        %2792 = vmatpush2.msra.mxu0 0.0
        %2793 = vmatprep.subr.mxu0 0.0
        %2794 = vmatpush2.msra.mxu0 0.0
        %2795 = vmatprep.subr.mxu0 0.0
        %2796 = vmatpush2.msra.mxu0 0.0
        %2797 = vmatprep.subr.mxu0 0.0
        %2798 = vmatpush2.msra.mxu0 0.0
        %2799 = vmatprep.subr.mxu0 0.0
        %2800 = vmatpush2.msra.mxu0 0.0
        %2801 = vmatprep.subr.mxu0 0.0
        %2802 = vmatpush2.msra.mxu0 0.0
        %2803 = vmatprep.subr.mxu0 0.0
        %2804 = vmatpush2.msra.mxu0 0.0
        %2805 = vmatprep.subr.mxu0 0.0
        %2806 = vmatpush2.msra.mxu0 0.0
        %2807 = vmatprep.subr.mxu0 0.0
        %2808 = vmatpush2.msra.mxu0 0.0
        %2809 = vmatprep.subr.mxu0 0.0
        %2810 = vmatpush2.msra.mxu0 0.0
        %2811 = vmatprep.subr.mxu0 0.0
        %2812 = vmatpush2.msra.mxu0 0.0
        %2813 = vmatprep.mubr.f32.mxu0 0.0
        %2814 = vmatmul.mubr.f32.gmra.mxu0 %v2676
        %v2815 = vpop.f32.mrf.mxu0
        %v2816 = vadd.f32 0.0, %v2815
        %v2817 = vpop.f32.mrf.mxu0
        %v2818 = vadd.f32 0.0, %v2817
        %2819 = vdwg.mxu0
        %v2820 = vmul.f32 %v2745, %v425
        %v2821 = vmul.f32 %v2747, %v429
        %v2822 = vmul.f32 %v2816, %v433
        %v2823 = vmul.f32 %v2818, %v437
        %v2824 = vadd.f32 %v2633, %v2820
        %v2825 = vadd.f32 %v2634, %v2821
        %v2826 = vadd.f32 %v2635, %v2822
        %v2827 = vadd.f32 %v2636, %v2823
        %2828 = vrot.lane.b32.xlu0 %v2438, 15
        %v2829 = vpop.permute.xlu0 %2828
        %2830 = vrot.lane.b32.xlu0 %v2442, 15
        %v2831 = vpop.permute.xlu0 %2830
        %2832 = vrot.lane.b32.xlu0 %v2446, 15
        %v2833 = vpop.permute.xlu0 %2832
        %2834 = vrot.lane.b32.xlu0 %v2439, 15
        %v2835 = vpop.permute.xlu0 %2834
        %2836 = vrot.lane.b32.xlu0 %v2443, 15
        %v2837 = vpop.permute.xlu0 %2836
        %2838 = vrot.lane.b32.xlu0 %v2447, 15
        %v2839 = vpop.permute.xlu0 %2838
        %2840 = vrot.lane.b32.xlu0 %v2440, 15
        %v2841 = vpop.permute.xlu0 %2840
        %2842 = vrot.lane.b32.xlu0 %v2444, 15
        %v2843 = vpop.permute.xlu0 %2842
        %2844 = vrot.lane.b32.xlu0 %v2448, 15
        %v2845 = vpop.permute.xlu0 %2844
        %2846 = vrot.lane.b32.xlu0 %v2441, 15
        %v2847 = vpop.permute.xlu0 %2846
        %2848 = vrot.lane.b32.xlu0 %v2445, 15
        %v2849 = vpop.permute.xlu0 %2848
        %2850 = vrot.lane.b32.xlu0 %v2449, 15
        %v2851 = vpop.permute.xlu0 %2850
        %v2852 = vsel %vm809, %v2841, %v2847
        %v2853 = vsel %vm809, %v2843, %v2849
        %v2854 = vsel %vm809, %v2845, %v2851
        %v2855 = vsel %vm809, %v2835, %v2841
        %v2856 = vsel %vm809, %v2837, %v2843
        %v2857 = vsel %vm809, %v2839, %v2845
        %v2858 = vsel %vm809, %v2829, %v2835
        %v2859 = vsel %vm809, %v2831, %v2837
        %v2860 = vsel %vm809, %v2833, %v2839
        %v2861 = vsel %vm809, %v2847, %v2829
        %v2862 = vsel %vm809, %v2849, %v2831
        %v2863 = vsel %vm809, %v2851, %v2833
        %s2864 = scalar_lea.vmem %s6, 8
        %v2865 = vld [vmem:[%s2864] sm:$0xf]
        %v2867 = vsel %vm2487, %v2865, 0
        %2869 = vmatprep.subr.mxu0 0.0
        %2870 = vmatpush1.msra.mxu0 0.0
        %2871 = vmatprep.subr.mxu0 0.0
        %2872 = vmatpush1.msra.mxu0 0.0
        %2873 = vmatprep.subr.mxu0 0.0
        %2874 = vmatpush1.msra.mxu0 0.0
        %2875 = vmatprep.subr.mxu0 0.0
        %2876 = vmatpush1.msra.mxu0 0.0
        %2877 = vmatprep.subr.mxu0 0.0
        %2878 = vmatpush1.msra.mxu0 0.0
        %2879 = vmatprep.subr.mxu0 0.0
        %2880 = vmatpush1.msra.mxu0 0.0
        %2881 = vmatprep.subr.mxu0 0.0
        %2882 = vmatpush1.msra.mxu0 0.0
        %2883 = vmatprep.subr.mxu0 0.0
        %2884 = vmatpush1.msra.mxu0 0.0
        %2885 = vmatprep.subr.mxu0 0.0
        %2886 = vmatpush1.msra.mxu0 0.0
        %2887 = vmatprep.subr.mxu0 0.0
        %2888 = vmatpush1.msra.mxu0 0.0
        %2889 = vmatprep.subr.mxu0 0.0
        %2890 = vmatpush1.msra.mxu0 0.0
        %2891 = vmatprep.subr.mxu0 0.0
        %2892 = vmatpush1.msra.mxu0 0.0
        %2893 = vmatprep.subr.mxu0 0.0
        %2894 = vmatpush1.msra.mxu0 0.0
        %2895 = vmatprep.subr.mxu0 %v2860
        %2896 = vmatpush1.msra.mxu0 %v2863
        %2897 = vmatprep.subr.mxu0 %v2859
        %2898 = vmatpush1.msra.mxu0 %v2862
        %2899 = vmatprep.subr.mxu0 %v2858
        %2900 = vmatpush1.msra.mxu0 %v2861
        %2901 = vmatprep.subr.mxu0 0.0
        %2902 = vmatpush2.msra.mxu0 0.0
        %2903 = vmatprep.subr.mxu0 0.0
        %2904 = vmatpush2.msra.mxu0 0.0
        %2905 = vmatprep.subr.mxu0 0.0
        %2906 = vmatpush2.msra.mxu0 0.0
        %2907 = vmatprep.subr.mxu0 0.0
        %2908 = vmatpush2.msra.mxu0 0.0
        %2909 = vmatprep.subr.mxu0 0.0
        %2910 = vmatpush2.msra.mxu0 0.0
        %2911 = vmatprep.subr.mxu0 0.0
        %2912 = vmatpush2.msra.mxu0 0.0
        %2913 = vmatprep.subr.mxu0 0.0
        %2914 = vmatpush2.msra.mxu0 0.0
        %2915 = vmatprep.subr.mxu0 0.0
        %2916 = vmatpush2.msra.mxu0 0.0
        %2917 = vmatprep.subr.mxu0 0.0
        %2918 = vmatpush2.msra.mxu0 0.0
        %2919 = vmatprep.subr.mxu0 0.0
        %2920 = vmatpush2.msra.mxu0 0.0
        %2921 = vmatprep.subr.mxu0 0.0
        %2922 = vmatpush2.msra.mxu0 0.0
        %2923 = vmatprep.subr.mxu0 0.0
        %2924 = vmatpush2.msra.mxu0 0.0
        %2925 = vmatprep.subr.mxu0 0.0
        %2926 = vmatpush2.msra.mxu0 0.0
        %2927 = vmatprep.subr.mxu0 0.0
        %2928 = vmatpush2.msra.mxu0 0.0
        %2929 = vmatprep.subr.mxu0 0.0
        %2930 = vmatpush2.msra.mxu0 0.0
        %2931 = vmatprep.subr.mxu0 0.0
        %2932 = vmatpush2.msra.mxu0 0.0
        %2933 = vmatprep.mubr.f32.mxu0 0.0
        %2934 = vmatmul.mubr.f32.gmra.mxu0 %v2867
        %v2935 = vpop.f32.mrf.mxu0
        %v2936 = vadd.f32 0.0, %v2935
        %v2937 = vpop.f32.mrf.mxu0
        %v2938 = vadd.f32 0.0, %v2937
        %2939 = vdwg.mxu0
        %2940 = vmatprep.subr.mxu0 0.0
        %2941 = vmatpush1.msra.mxu0 0.0
        %2942 = vmatprep.subr.mxu0 0.0
        %2943 = vmatpush1.msra.mxu0 0.0
        %2944 = vmatprep.subr.mxu0 0.0
        %2945 = vmatpush1.msra.mxu0 0.0
        %2946 = vmatprep.subr.mxu0 0.0
        %2947 = vmatpush1.msra.mxu0 0.0
        %2948 = vmatprep.subr.mxu0 0.0
        %2949 = vmatpush1.msra.mxu0 0.0
        %2950 = vmatprep.subr.mxu0 0.0
        %2951 = vmatpush1.msra.mxu0 0.0
        %2952 = vmatprep.subr.mxu0 0.0
        %2953 = vmatpush1.msra.mxu0 0.0
        %2954 = vmatprep.subr.mxu0 0.0
        %2955 = vmatpush1.msra.mxu0 0.0
        %2956 = vmatprep.subr.mxu0 0.0
        %2957 = vmatpush1.msra.mxu0 0.0
        %2958 = vmatprep.subr.mxu0 0.0
        %2959 = vmatpush1.msra.mxu0 0.0
        %2960 = vmatprep.subr.mxu0 0.0
        %2961 = vmatpush1.msra.mxu0 0.0
        %2962 = vmatprep.subr.mxu0 0.0
        %2963 = vmatpush1.msra.mxu0 0.0
        %2964 = vmatprep.subr.mxu0 0.0
        %2965 = vmatpush1.msra.mxu0 0.0
        %2966 = vmatprep.subr.mxu0 %v2854
        %2967 = vmatpush1.msra.mxu0 %v2857
        %2968 = vmatprep.subr.mxu0 %v2853
        %2969 = vmatpush1.msra.mxu0 %v2856
        %2970 = vmatprep.subr.mxu0 %v2852
        %2971 = vmatpush1.msra.mxu0 %v2855
        %2972 = vmatprep.subr.mxu0 0.0
        %2973 = vmatpush2.msra.mxu0 0.0
        %2974 = vmatprep.subr.mxu0 0.0
        %2975 = vmatpush2.msra.mxu0 0.0
        %2976 = vmatprep.subr.mxu0 0.0
        %2977 = vmatpush2.msra.mxu0 0.0
        %2978 = vmatprep.subr.mxu0 0.0
        %2979 = vmatpush2.msra.mxu0 0.0
        %2980 = vmatprep.subr.mxu0 0.0
        %2981 = vmatpush2.msra.mxu0 0.0
        %2982 = vmatprep.subr.mxu0 0.0
        %2983 = vmatpush2.msra.mxu0 0.0
        %2984 = vmatprep.subr.mxu0 0.0
        %2985 = vmatpush2.msra.mxu0 0.0
        %2986 = vmatprep.subr.mxu0 0.0
        %2987 = vmatpush2.msra.mxu0 0.0
        %2988 = vmatprep.subr.mxu0 0.0
        %2989 = vmatpush2.msra.mxu0 0.0
        %2990 = vmatprep.subr.mxu0 0.0
        %2991 = vmatpush2.msra.mxu0 0.0
        %2992 = vmatprep.subr.mxu0 0.0
        %2993 = vmatpush2.msra.mxu0 0.0
        %2994 = vmatprep.subr.mxu0 0.0
        %2995 = vmatpush2.msra.mxu0 0.0
        %2996 = vmatprep.subr.mxu0 0.0
        %2997 = vmatpush2.msra.mxu0 0.0
        %2998 = vmatprep.subr.mxu0 0.0
        %2999 = vmatpush2.msra.mxu0 0.0
        %3000 = vmatprep.subr.mxu0 0.0
        %3001 = vmatpush2.msra.mxu0 0.0
        %3002 = vmatprep.subr.mxu0 0.0
        %3003 = vmatpush2.msra.mxu0 0.0
        %3004 = vmatprep.mubr.f32.mxu0 0.0
        %3005 = vmatmul.mubr.f32.gmra.mxu0 %v2867
        %v3006 = vpop.f32.mrf.mxu0
        %v3007 = vadd.f32 0.0, %v3006
        %v3008 = vpop.f32.mrf.mxu0
        %v3009 = vadd.f32 0.0, %v3008
        %3010 = vdwg.mxu0
        %v3011 = vmul.f32 %v2936, %v820
        %v3012 = vmul.f32 %v2938, %v824
        %v3013 = vmul.f32 %v3007, %v828
        %v3014 = vmul.f32 %v3009, %v832
        %v3015 = vadd.f32 %v2824, %v3011
        %v3016 = vadd.f32 %v2825, %v3012
        %v3017 = vadd.f32 %v2826, %v3013
        %v3018 = vadd.f32 %v2827, %v3014
        %3019 = vrot.lane.b32.xlu0 %v2438, 1
        %v3020 = vpop.permute.xlu0 %3019
        %3021 = vrot.lane.b32.xlu0 %v2442, 1
        %v3022 = vpop.permute.xlu0 %3021
        %3023 = vrot.lane.b32.xlu0 %v2446, 1
        %v3024 = vpop.permute.xlu0 %3023
        %3025 = vrot.lane.b32.xlu0 %v2439, 1
        %v3026 = vpop.permute.xlu0 %3025
        %3027 = vrot.lane.b32.xlu0 %v2443, 1
        %v3028 = vpop.permute.xlu0 %3027
        %3029 = vrot.lane.b32.xlu0 %v2447, 1
        %v3030 = vpop.permute.xlu0 %3029
        %3031 = vrot.lane.b32.xlu0 %v2440, 1
        %v3032 = vpop.permute.xlu0 %3031
        %3033 = vrot.lane.b32.xlu0 %v2444, 1
        %v3034 = vpop.permute.xlu0 %3033
        %3035 = vrot.lane.b32.xlu0 %v2448, 1
        %v3036 = vpop.permute.xlu0 %3035
        %3037 = vrot.lane.b32.xlu0 %v2441, 1
        %v3038 = vpop.permute.xlu0 %3037
        %3039 = vrot.lane.b32.xlu0 %v2445, 1
        %v3040 = vpop.permute.xlu0 %3039
        %3041 = vrot.lane.b32.xlu0 %v2449, 1
        %v3042 = vpop.permute.xlu0 %3041
        %v3043 = vsel %vm1040, %v3032, %v3038
        %v3044 = vsel %vm1040, %v3034, %v3040
        %v3045 = vsel %vm1040, %v3036, %v3042
        %v3046 = vsel %vm1040, %v3026, %v3032
        %v3047 = vsel %vm1040, %v3028, %v3034
        %v3048 = vsel %vm1040, %v3030, %v3036
        %v3049 = vsel %vm1040, %v3020, %v3026
        %v3050 = vsel %vm1040, %v3022, %v3028
        %v3051 = vsel %vm1040, %v3024, %v3030
        %v3052 = vsel %vm1040, %v3038, %v3020
        %v3053 = vsel %vm1040, %v3040, %v3022
        %v3054 = vsel %vm1040, %v3042, %v3024
        %s3055 = scalar_lea.vmem %s6, 12
        %v3056 = vld [vmem:[%s3055] sm:$0xf]
        %v3058 = vsel %vm2487, %v3056, 0
        %3060 = vmatprep.subr.mxu0 0.0
        %3061 = vmatpush1.msra.mxu0 0.0
        %3062 = vmatprep.subr.mxu0 0.0
        %3063 = vmatpush1.msra.mxu0 0.0
        %3064 = vmatprep.subr.mxu0 0.0
        %3065 = vmatpush1.msra.mxu0 0.0
        %3066 = vmatprep.subr.mxu0 0.0
        %3067 = vmatpush1.msra.mxu0 0.0
        %3068 = vmatprep.subr.mxu0 0.0
        %3069 = vmatpush1.msra.mxu0 0.0
        %3070 = vmatprep.subr.mxu0 0.0
        %3071 = vmatpush1.msra.mxu0 0.0
        %3072 = vmatprep.subr.mxu0 0.0
        %3073 = vmatpush1.msra.mxu0 0.0
        %3074 = vmatprep.subr.mxu0 0.0
        %3075 = vmatpush1.msra.mxu0 0.0
        %3076 = vmatprep.subr.mxu0 0.0
        %3077 = vmatpush1.msra.mxu0 0.0
        %3078 = vmatprep.subr.mxu0 0.0
        %3079 = vmatpush1.msra.mxu0 0.0
        %3080 = vmatprep.subr.mxu0 0.0
        %3081 = vmatpush1.msra.mxu0 0.0
        %3082 = vmatprep.subr.mxu0 0.0
        %3083 = vmatpush1.msra.mxu0 0.0
        %3084 = vmatprep.subr.mxu0 0.0
        %3085 = vmatpush1.msra.mxu0 0.0
        %3086 = vmatprep.subr.mxu0 %v3051
        %3087 = vmatpush1.msra.mxu0 %v3054
        %3088 = vmatprep.subr.mxu0 %v3050
        %3089 = vmatpush1.msra.mxu0 %v3053
        %3090 = vmatprep.subr.mxu0 %v3049
        %3091 = vmatpush1.msra.mxu0 %v3052
        %3092 = vmatprep.subr.mxu0 0.0
        %3093 = vmatpush2.msra.mxu0 0.0
        %3094 = vmatprep.subr.mxu0 0.0
        %3095 = vmatpush2.msra.mxu0 0.0
        %3096 = vmatprep.subr.mxu0 0.0
        %3097 = vmatpush2.msra.mxu0 0.0
        %3098 = vmatprep.subr.mxu0 0.0
        %3099 = vmatpush2.msra.mxu0 0.0
        %3100 = vmatprep.subr.mxu0 0.0
        %3101 = vmatpush2.msra.mxu0 0.0
        %3102 = vmatprep.subr.mxu0 0.0
        %3103 = vmatpush2.msra.mxu0 0.0
        %3104 = vmatprep.subr.mxu0 0.0
        %3105 = vmatpush2.msra.mxu0 0.0
        %3106 = vmatprep.subr.mxu0 0.0
        %3107 = vmatpush2.msra.mxu0 0.0
        %3108 = vmatprep.subr.mxu0 0.0
        %3109 = vmatpush2.msra.mxu0 0.0
        %3110 = vmatprep.subr.mxu0 0.0
        %3111 = vmatpush2.msra.mxu0 0.0
        %3112 = vmatprep.subr.mxu0 0.0
        %3113 = vmatpush2.msra.mxu0 0.0
        %3114 = vmatprep.subr.mxu0 0.0
        %3115 = vmatpush2.msra.mxu0 0.0
        %3116 = vmatprep.subr.mxu0 0.0
        %3117 = vmatpush2.msra.mxu0 0.0
        %3118 = vmatprep.subr.mxu0 0.0
        %3119 = vmatpush2.msra.mxu0 0.0
        %3120 = vmatprep.subr.mxu0 0.0
        %3121 = vmatpush2.msra.mxu0 0.0
        %3122 = vmatprep.subr.mxu0 0.0
        %3123 = vmatpush2.msra.mxu0 0.0
        %3124 = vmatprep.mubr.f32.mxu0 0.0
        %3125 = vmatmul.mubr.f32.gmra.mxu0 %v3058
        %v3126 = vpop.f32.mrf.mxu0
        %v3127 = vadd.f32 0.0, %v3126
        %v3128 = vpop.f32.mrf.mxu0
        %v3129 = vadd.f32 0.0, %v3128
        %3130 = vdwg.mxu0
        %3131 = vmatprep.subr.mxu0 0.0
        %3132 = vmatpush1.msra.mxu0 0.0
        %3133 = vmatprep.subr.mxu0 0.0
        %3134 = vmatpush1.msra.mxu0 0.0
        %3135 = vmatprep.subr.mxu0 0.0
        %3136 = vmatpush1.msra.mxu0 0.0
        %3137 = vmatprep.subr.mxu0 0.0
        %3138 = vmatpush1.msra.mxu0 0.0
        %3139 = vmatprep.subr.mxu0 0.0
        %3140 = vmatpush1.msra.mxu0 0.0
        %3141 = vmatprep.subr.mxu0 0.0
        %3142 = vmatpush1.msra.mxu0 0.0
        %3143 = vmatprep.subr.mxu0 0.0
        %3144 = vmatpush1.msra.mxu0 0.0
        %3145 = vmatprep.subr.mxu0 0.0
        %3146 = vmatpush1.msra.mxu0 0.0
        %3147 = vmatprep.subr.mxu0 0.0
        %3148 = vmatpush1.msra.mxu0 0.0
        %3149 = vmatprep.subr.mxu0 0.0
        %3150 = vmatpush1.msra.mxu0 0.0
        %3151 = vmatprep.subr.mxu0 0.0
        %3152 = vmatpush1.msra.mxu0 0.0
        %3153 = vmatprep.subr.mxu0 0.0
        %3154 = vmatpush1.msra.mxu0 0.0
        %3155 = vmatprep.subr.mxu0 0.0
        %3156 = vmatpush1.msra.mxu0 0.0
        %3157 = vmatprep.subr.mxu0 %v3045
        %3158 = vmatpush1.msra.mxu0 %v3048
        %3159 = vmatprep.subr.mxu0 %v3044
        %3160 = vmatpush1.msra.mxu0 %v3047
        %3161 = vmatprep.subr.mxu0 %v3043
        %3162 = vmatpush1.msra.mxu0 %v3046
        %3163 = vmatprep.subr.mxu0 0.0
        %3164 = vmatpush2.msra.mxu0 0.0
        %3165 = vmatprep.subr.mxu0 0.0
        %3166 = vmatpush2.msra.mxu0 0.0
        %3167 = vmatprep.subr.mxu0 0.0
        %3168 = vmatpush2.msra.mxu0 0.0
        %3169 = vmatprep.subr.mxu0 0.0
        %3170 = vmatpush2.msra.mxu0 0.0
        %3171 = vmatprep.subr.mxu0 0.0
        %3172 = vmatpush2.msra.mxu0 0.0
        %3173 = vmatprep.subr.mxu0 0.0
        %3174 = vmatpush2.msra.mxu0 0.0
        %3175 = vmatprep.subr.mxu0 0.0
        %3176 = vmatpush2.msra.mxu0 0.0
        %3177 = vmatprep.subr.mxu0 0.0
        %3178 = vmatpush2.msra.mxu0 0.0
        %3179 = vmatprep.subr.mxu0 0.0
        %3180 = vmatpush2.msra.mxu0 0.0
        %3181 = vmatprep.subr.mxu0 0.0
        %3182 = vmatpush2.msra.mxu0 0.0
        %3183 = vmatprep.subr.mxu0 0.0
        %3184 = vmatpush2.msra.mxu0 0.0
        %3185 = vmatprep.subr.mxu0 0.0
        %3186 = vmatpush2.msra.mxu0 0.0
        %3187 = vmatprep.subr.mxu0 0.0
        %3188 = vmatpush2.msra.mxu0 0.0
        %3189 = vmatprep.subr.mxu0 0.0
        %3190 = vmatpush2.msra.mxu0 0.0
        %3191 = vmatprep.subr.mxu0 0.0
        %3192 = vmatpush2.msra.mxu0 0.0
        %3193 = vmatprep.subr.mxu0 0.0
        %3194 = vmatpush2.msra.mxu0 0.0
        %3195 = vmatprep.mubr.f32.mxu0 0.0
        %3196 = vmatmul.mubr.f32.gmra.mxu0 %v3058
        %v3197 = vpop.f32.mrf.mxu0
        %v3198 = vadd.f32 0.0, %v3197
        %v3199 = vpop.f32.mrf.mxu0
        %v3200 = vadd.f32 0.0, %v3199
        %3201 = vdwg.mxu0
        %v3202 = vmul.f32 %v3127, %v1051
        %v3203 = vmul.f32 %v3129, %v1055
        %v3204 = vmul.f32 %v3198, %v1059
        %v3205 = vmul.f32 %v3200, %v1063
        %v3206 = vadd.f32 %v3015, %v3202
        %v3207 = vadd.f32 %v3016, %v3203
        %v3208 = vadd.f32 %v3017, %v3204
        %v3209 = vadd.f32 %v3018, %v3205
        %s3210 = scalar_lea.vmem %s6, 16
        %v3211 = vld [vmem:[%s3210] sm:$0xf]
        %v3213 = vsel %vm2487, %v3211, 0
        %3215 = vmatprep.subr.mxu0 0.0
        %3216 = vmatpush1.msra.mxu0 0.0
        %3217 = vmatprep.subr.mxu0 0.0
        %3218 = vmatpush1.msra.mxu0 0.0
        %3219 = vmatprep.subr.mxu0 0.0
        %3220 = vmatpush1.msra.mxu0 0.0
        %3221 = vmatprep.subr.mxu0 0.0
        %3222 = vmatpush1.msra.mxu0 0.0
        %3223 = vmatprep.subr.mxu0 0.0
        %3224 = vmatpush1.msra.mxu0 0.0
        %3225 = vmatprep.subr.mxu0 0.0
        %3226 = vmatpush1.msra.mxu0 0.0
        %3227 = vmatprep.subr.mxu0 0.0
        %3228 = vmatpush1.msra.mxu0 0.0
        %3229 = vmatprep.subr.mxu0 0.0
        %3230 = vmatpush1.msra.mxu0 0.0
        %3231 = vmatprep.subr.mxu0 0.0
        %3232 = vmatpush1.msra.mxu0 0.0
        %3233 = vmatprep.subr.mxu0 0.0
        %3234 = vmatpush1.msra.mxu0 0.0
        %3235 = vmatprep.subr.mxu0 0.0
        %3236 = vmatpush1.msra.mxu0 0.0
        %3237 = vmatprep.subr.mxu0 0.0
        %3238 = vmatpush1.msra.mxu0 0.0
        %3239 = vmatprep.subr.mxu0 0.0
        %3240 = vmatpush1.msra.mxu0 0.0
        %3241 = vmatprep.subr.mxu0 %v2447
        %3242 = vmatpush1.msra.mxu0 %v2446
        %3243 = vmatprep.subr.mxu0 %v2443
        %3244 = vmatpush1.msra.mxu0 %v2442
        %3245 = vmatprep.subr.mxu0 %v2439
        %3246 = vmatpush1.msra.mxu0 %v2438
        %3247 = vmatprep.subr.mxu0 0.0
        %3248 = vmatpush2.msra.mxu0 0.0
        %3249 = vmatprep.subr.mxu0 0.0
        %3250 = vmatpush2.msra.mxu0 0.0
        %3251 = vmatprep.subr.mxu0 0.0
        %3252 = vmatpush2.msra.mxu0 0.0
        %3253 = vmatprep.subr.mxu0 0.0
        %3254 = vmatpush2.msra.mxu0 0.0
        %3255 = vmatprep.subr.mxu0 0.0
        %3256 = vmatpush2.msra.mxu0 0.0
        %3257 = vmatprep.subr.mxu0 0.0
        %3258 = vmatpush2.msra.mxu0 0.0
        %3259 = vmatprep.subr.mxu0 0.0
        %3260 = vmatpush2.msra.mxu0 0.0
        %3261 = vmatprep.subr.mxu0 0.0
        %3262 = vmatpush2.msra.mxu0 0.0
        %3263 = vmatprep.subr.mxu0 0.0
        %3264 = vmatpush2.msra.mxu0 0.0
        %3265 = vmatprep.subr.mxu0 0.0
        %3266 = vmatpush2.msra.mxu0 0.0
        %3267 = vmatprep.subr.mxu0 0.0
        %3268 = vmatpush2.msra.mxu0 0.0
        %3269 = vmatprep.subr.mxu0 0.0
        %3270 = vmatpush2.msra.mxu0 0.0
        %3271 = vmatprep.subr.mxu0 0.0
        %3272 = vmatpush2.msra.mxu0 0.0
        %3273 = vmatprep.subr.mxu0 0.0
        %3274 = vmatpush2.msra.mxu0 0.0
        %3275 = vmatprep.subr.mxu0 0.0
        %3276 = vmatpush2.msra.mxu0 0.0
        %3277 = vmatprep.subr.mxu0 0.0
        %3278 = vmatpush2.msra.mxu0 0.0
        %3279 = vmatprep.mubr.f32.mxu0 0.0
        %3280 = vmatmul.mubr.f32.gmra.mxu0 %v3213
        %v3281 = vpop.f32.mrf.mxu0
        %v3282 = vadd.f32 0.0, %v3281
        %v3283 = vpop.f32.mrf.mxu0
        %v3284 = vadd.f32 0.0, %v3283
        %3285 = vdwg.mxu0
        %3286 = vmatprep.subr.mxu0 0.0
        %3287 = vmatpush1.msra.mxu0 0.0
        %3288 = vmatprep.subr.mxu0 0.0
        %3289 = vmatpush1.msra.mxu0 0.0
        %3290 = vmatprep.subr.mxu0 0.0
        %3291 = vmatpush1.msra.mxu0 0.0
        %3292 = vmatprep.subr.mxu0 0.0
        %3293 = vmatpush1.msra.mxu0 0.0
        %3294 = vmatprep.subr.mxu0 0.0
        %3295 = vmatpush1.msra.mxu0 0.0
        %3296 = vmatprep.subr.mxu0 0.0
        %3297 = vmatpush1.msra.mxu0 0.0
        %3298 = vmatprep.subr.mxu0 0.0
        %3299 = vmatpush1.msra.mxu0 0.0
        %3300 = vmatprep.subr.mxu0 0.0
        %3301 = vmatpush1.msra.mxu0 0.0
        %3302 = vmatprep.subr.mxu0 0.0
        %3303 = vmatpush1.msra.mxu0 0.0
        %3304 = vmatprep.subr.mxu0 0.0
        %3305 = vmatpush1.msra.mxu0 0.0
        %3306 = vmatprep.subr.mxu0 0.0
        %3307 = vmatpush1.msra.mxu0 0.0
        %3308 = vmatprep.subr.mxu0 0.0
        %3309 = vmatpush1.msra.mxu0 0.0
        %3310 = vmatprep.subr.mxu0 0.0
        %3311 = vmatpush1.msra.mxu0 0.0
        %3312 = vmatprep.subr.mxu0 %v2449
        %3313 = vmatpush1.msra.mxu0 %v2448
        %3314 = vmatprep.subr.mxu0 %v2445
        %3315 = vmatpush1.msra.mxu0 %v2444
        %3316 = vmatprep.subr.mxu0 %v2441
        %3317 = vmatpush1.msra.mxu0 %v2440
        %3318 = vmatprep.subr.mxu0 0.0
        %3319 = vmatpush2.msra.mxu0 0.0
        %3320 = vmatprep.subr.mxu0 0.0
        %3321 = vmatpush2.msra.mxu0 0.0
        %3322 = vmatprep.subr.mxu0 0.0
        %3323 = vmatpush2.msra.mxu0 0.0
        %3324 = vmatprep.subr.mxu0 0.0
        %3325 = vmatpush2.msra.mxu0 0.0
        %3326 = vmatprep.subr.mxu0 0.0
        %3327 = vmatpush2.msra.mxu0 0.0
        %3328 = vmatprep.subr.mxu0 0.0
        %3329 = vmatpush2.msra.mxu0 0.0
        %3330 = vmatprep.subr.mxu0 0.0
        %3331 = vmatpush2.msra.mxu0 0.0
        %3332 = vmatprep.subr.mxu0 0.0
        %3333 = vmatpush2.msra.mxu0 0.0
        %3334 = vmatprep.subr.mxu0 0.0
        %3335 = vmatpush2.msra.mxu0 0.0
        %3336 = vmatprep.subr.mxu0 0.0
        %3337 = vmatpush2.msra.mxu0 0.0
        %3338 = vmatprep.subr.mxu0 0.0
        %3339 = vmatpush2.msra.mxu0 0.0
        %3340 = vmatprep.subr.mxu0 0.0
        %3341 = vmatpush2.msra.mxu0 0.0
        %3342 = vmatprep.subr.mxu0 0.0
        %3343 = vmatpush2.msra.mxu0 0.0
        %3344 = vmatprep.subr.mxu0 0.0
        %3345 = vmatpush2.msra.mxu0 0.0
        %3346 = vmatprep.subr.mxu0 0.0
        %3347 = vmatpush2.msra.mxu0 0.0
        %3348 = vmatprep.subr.mxu0 0.0
        %3349 = vmatpush2.msra.mxu0 0.0
        %3350 = vmatprep.mubr.f32.mxu0 0.0
        %3351 = vmatmul.mubr.f32.gmra.mxu0 %v3213
        %v3352 = vpop.f32.mrf.mxu0
        %v3353 = vadd.f32 0.0, %v3352
        %v3354 = vpop.f32.mrf.mxu0
        %v3355 = vadd.f32 0.0, %v3354
        %3356 = vdwg.mxu0
        %v3357 = vadd.f32 %v3206, %v3282
        %v3358 = vadd.f32 %v3207, %v3284
        %v3359 = vadd.f32 %v3208, %v3353
        %v3360 = vadd.f32 %v3209, %v3355
        %3361 = vrot.lane.b32.xlu0 %v2438, 127
        %v3362 = vpop.permute.xlu0 %3361
        %3363 = vrot.lane.b32.xlu0 %v2442, 127
        %v3364 = vpop.permute.xlu0 %3363
        %3365 = vrot.lane.b32.xlu0 %v2446, 127
        %v3366 = vpop.permute.xlu0 %3365
        %3367 = vrot.lane.b32.xlu0 %v2439, 127
        %v3368 = vpop.permute.xlu0 %3367
        %3369 = vrot.lane.b32.xlu0 %v2443, 127
        %v3370 = vpop.permute.xlu0 %3369
        %3371 = vrot.lane.b32.xlu0 %v2447, 127
        %v3372 = vpop.permute.xlu0 %3371
        %3373 = vrot.lane.b32.xlu0 %v2440, 127
        %v3374 = vpop.permute.xlu0 %3373
        %3375 = vrot.lane.b32.xlu0 %v2444, 127
        %v3376 = vpop.permute.xlu0 %3375
        %3377 = vrot.lane.b32.xlu0 %v2448, 127
        %v3378 = vpop.permute.xlu0 %3377
        %3379 = vrot.lane.b32.xlu0 %v2441, 127
        %v3380 = vpop.permute.xlu0 %3379
        %3381 = vrot.lane.b32.xlu0 %v2445, 127
        %v3382 = vpop.permute.xlu0 %3381
        %3383 = vrot.lane.b32.xlu0 %v2449, 127
        %v3384 = vpop.permute.xlu0 %3383
        %v3385 = vsel %vm1462, %v3374, %v3380
        %v3386 = vsel %vm1462, %v3376, %v3382
        %v3387 = vsel %vm1462, %v3378, %v3384
        %v3388 = vsel %vm1462, %v3368, %v3374
        %v3389 = vsel %vm1462, %v3370, %v3376
        %v3390 = vsel %vm1462, %v3372, %v3378
        %v3391 = vsel %vm1462, %v3362, %v3368
        %v3392 = vsel %vm1462, %v3364, %v3370
        %v3393 = vsel %vm1462, %v3366, %v3372
        %v3394 = vsel %vm1462, %v3380, %v3362
        %v3395 = vsel %vm1462, %v3382, %v3364
        %v3396 = vsel %vm1462, %v3384, %v3366
        %s3397 = scalar_lea.vmem %s6, 20
        %v3398 = vld [vmem:[%s3397] sm:$0xf]
        %v3400 = vsel %vm2487, %v3398, 0
        %3402 = vmatprep.subr.mxu0 0.0
        %3403 = vmatpush1.msra.mxu0 0.0
        %3404 = vmatprep.subr.mxu0 0.0
        %3405 = vmatpush1.msra.mxu0 0.0
        %3406 = vmatprep.subr.mxu0 0.0
        %3407 = vmatpush1.msra.mxu0 0.0
        %3408 = vmatprep.subr.mxu0 0.0
        %3409 = vmatpush1.msra.mxu0 0.0
        %3410 = vmatprep.subr.mxu0 0.0
        %3411 = vmatpush1.msra.mxu0 0.0
        %3412 = vmatprep.subr.mxu0 0.0
        %3413 = vmatpush1.msra.mxu0 0.0
        %3414 = vmatprep.subr.mxu0 0.0
        %3415 = vmatpush1.msra.mxu0 0.0
        %3416 = vmatprep.subr.mxu0 0.0
        %3417 = vmatpush1.msra.mxu0 0.0
        %3418 = vmatprep.subr.mxu0 0.0
        %3419 = vmatpush1.msra.mxu0 0.0
        %3420 = vmatprep.subr.mxu0 0.0
        %3421 = vmatpush1.msra.mxu0 0.0
        %3422 = vmatprep.subr.mxu0 0.0
        %3423 = vmatpush1.msra.mxu0 0.0
        %3424 = vmatprep.subr.mxu0 0.0
        %3425 = vmatpush1.msra.mxu0 0.0
        %3426 = vmatprep.subr.mxu0 0.0
        %3427 = vmatpush1.msra.mxu0 0.0
        %3428 = vmatprep.subr.mxu0 %v3390
        %3429 = vmatpush1.msra.mxu0 %v3393
        %3430 = vmatprep.subr.mxu0 %v3389
        %3431 = vmatpush1.msra.mxu0 %v3392
        %3432 = vmatprep.subr.mxu0 %v3388
        %3433 = vmatpush1.msra.mxu0 %v3391
        %3434 = vmatprep.subr.mxu0 0.0
        %3435 = vmatpush2.msra.mxu0 0.0
        %3436 = vmatprep.subr.mxu0 0.0
        %3437 = vmatpush2.msra.mxu0 0.0
        %3438 = vmatprep.subr.mxu0 0.0
        %3439 = vmatpush2.msra.mxu0 0.0
        %3440 = vmatprep.subr.mxu0 0.0
        %3441 = vmatpush2.msra.mxu0 0.0
        %3442 = vmatprep.subr.mxu0 0.0
        %3443 = vmatpush2.msra.mxu0 0.0
        %3444 = vmatprep.subr.mxu0 0.0
        %3445 = vmatpush2.msra.mxu0 0.0
        %3446 = vmatprep.subr.mxu0 0.0
        %3447 = vmatpush2.msra.mxu0 0.0
        %3448 = vmatprep.subr.mxu0 0.0
        %3449 = vmatpush2.msra.mxu0 0.0
        %3450 = vmatprep.subr.mxu0 0.0
        %3451 = vmatpush2.msra.mxu0 0.0
        %3452 = vmatprep.subr.mxu0 0.0
        %3453 = vmatpush2.msra.mxu0 0.0
        %3454 = vmatprep.subr.mxu0 0.0
        %3455 = vmatpush2.msra.mxu0 0.0
        %3456 = vmatprep.subr.mxu0 0.0
        %3457 = vmatpush2.msra.mxu0 0.0
        %3458 = vmatprep.subr.mxu0 0.0
        %3459 = vmatpush2.msra.mxu0 0.0
        %3460 = vmatprep.subr.mxu0 0.0
        %3461 = vmatpush2.msra.mxu0 0.0
        %3462 = vmatprep.subr.mxu0 0.0
        %3463 = vmatpush2.msra.mxu0 0.0
        %3464 = vmatprep.subr.mxu0 0.0
        %3465 = vmatpush2.msra.mxu0 0.0
        %3466 = vmatprep.mubr.f32.mxu0 0.0
        %3467 = vmatmul.mubr.f32.gmra.mxu0 %v3400
        %v3468 = vpop.f32.mrf.mxu0
        %v3469 = vadd.f32 0.0, %v3468
        %v3470 = vpop.f32.mrf.mxu0
        %v3471 = vadd.f32 0.0, %v3470
        %3472 = vdwg.mxu0
        %3473 = vmatprep.subr.mxu0 0.0
        %3474 = vmatpush1.msra.mxu0 0.0
        %3475 = vmatprep.subr.mxu0 0.0
        %3476 = vmatpush1.msra.mxu0 0.0
        %3477 = vmatprep.subr.mxu0 0.0
        %3478 = vmatpush1.msra.mxu0 0.0
        %3479 = vmatprep.subr.mxu0 0.0
        %3480 = vmatpush1.msra.mxu0 0.0
        %3481 = vmatprep.subr.mxu0 0.0
        %3482 = vmatpush1.msra.mxu0 0.0
        %3483 = vmatprep.subr.mxu0 0.0
        %3484 = vmatpush1.msra.mxu0 0.0
        %3485 = vmatprep.subr.mxu0 0.0
        %3486 = vmatpush1.msra.mxu0 0.0
        %3487 = vmatprep.subr.mxu0 0.0
        %3488 = vmatpush1.msra.mxu0 0.0
        %3489 = vmatprep.subr.mxu0 0.0
        %3490 = vmatpush1.msra.mxu0 0.0
        %3491 = vmatprep.subr.mxu0 0.0
        %3492 = vmatpush1.msra.mxu0 0.0
        %3493 = vmatprep.subr.mxu0 0.0
        %3494 = vmatpush1.msra.mxu0 0.0
        %3495 = vmatprep.subr.mxu0 0.0
        %3496 = vmatpush1.msra.mxu0 0.0
        %3497 = vmatprep.subr.mxu0 0.0
        %3498 = vmatpush1.msra.mxu0 0.0
        %3499 = vmatprep.subr.mxu0 %v3396
        %3500 = vmatpush1.msra.mxu0 %v3387
        %3501 = vmatprep.subr.mxu0 %v3395
        %3502 = vmatpush1.msra.mxu0 %v3386
        %3503 = vmatprep.subr.mxu0 %v3394
        %3504 = vmatpush1.msra.mxu0 %v3385
        %3505 = vmatprep.subr.mxu0 0.0
        %3506 = vmatpush2.msra.mxu0 0.0
        %3507 = vmatprep.subr.mxu0 0.0
        %3508 = vmatpush2.msra.mxu0 0.0
        %3509 = vmatprep.subr.mxu0 0.0
        %3510 = vmatpush2.msra.mxu0 0.0
        %3511 = vmatprep.subr.mxu0 0.0
        %3512 = vmatpush2.msra.mxu0 0.0
        %3513 = vmatprep.subr.mxu0 0.0
        %3514 = vmatpush2.msra.mxu0 0.0
        %3515 = vmatprep.subr.mxu0 0.0
        %3516 = vmatpush2.msra.mxu0 0.0
        %3517 = vmatprep.subr.mxu0 0.0
        %3518 = vmatpush2.msra.mxu0 0.0
        %3519 = vmatprep.subr.mxu0 0.0
        %3520 = vmatpush2.msra.mxu0 0.0
        %3521 = vmatprep.subr.mxu0 0.0
        %3522 = vmatpush2.msra.mxu0 0.0
        %3523 = vmatprep.subr.mxu0 0.0
        %3524 = vmatpush2.msra.mxu0 0.0
        %3525 = vmatprep.subr.mxu0 0.0
        %3526 = vmatpush2.msra.mxu0 0.0
        %3527 = vmatprep.subr.mxu0 0.0
        %3528 = vmatpush2.msra.mxu0 0.0
        %3529 = vmatprep.subr.mxu0 0.0
        %3530 = vmatpush2.msra.mxu0 0.0
        %3531 = vmatprep.subr.mxu0 0.0
        %3532 = vmatpush2.msra.mxu0 0.0
        %3533 = vmatprep.subr.mxu0 0.0
        %3534 = vmatpush2.msra.mxu0 0.0
        %3535 = vmatprep.subr.mxu0 0.0
        %3536 = vmatpush2.msra.mxu0 0.0
        %3537 = vmatprep.mubr.f32.mxu0 0.0
        %3538 = vmatmul.mubr.f32.gmra.mxu0 %v3400
        %v3539 = vpop.f32.mrf.mxu0
        %v3540 = vadd.f32 0.0, %v3539
        %v3541 = vpop.f32.mrf.mxu0
        %v3542 = vadd.f32 0.0, %v3541
        %3543 = vdwg.mxu0
        %v3544 = vmul.f32 %v3469, %v1473
        %v3545 = vmul.f32 %v3471, %v1477
        %v3546 = vmul.f32 %v3540, %v1481
        %v3547 = vmul.f32 %v3542, %v1485
        %v3548 = vadd.f32 %v3357, %v3544
        %v3549 = vadd.f32 %v3358, %v3545
        %v3550 = vadd.f32 %v3359, %v3546
        %v3551 = vadd.f32 %v3360, %v3547
        %3552 = vrot.lane.b32.xlu0 %v2438, 113
        %v3553 = vpop.permute.xlu0 %3552
        %3554 = vrot.lane.b32.xlu0 %v2442, 113
        %v3555 = vpop.permute.xlu0 %3554
        %3556 = vrot.lane.b32.xlu0 %v2446, 113
        %v3557 = vpop.permute.xlu0 %3556
        %3558 = vrot.lane.b32.xlu0 %v2439, 113
        %v3559 = vpop.permute.xlu0 %3558
        %3560 = vrot.lane.b32.xlu0 %v2443, 113
        %v3561 = vpop.permute.xlu0 %3560
        %3562 = vrot.lane.b32.xlu0 %v2447, 113
        %v3563 = vpop.permute.xlu0 %3562
        %3564 = vrot.lane.b32.xlu0 %v2440, 113
        %v3565 = vpop.permute.xlu0 %3564
        %3566 = vrot.lane.b32.xlu0 %v2444, 113
        %v3567 = vpop.permute.xlu0 %3566
        %3568 = vrot.lane.b32.xlu0 %v2448, 113
        %v3569 = vpop.permute.xlu0 %3568
        %3570 = vrot.lane.b32.xlu0 %v2441, 113
        %v3571 = vpop.permute.xlu0 %3570
        %3572 = vrot.lane.b32.xlu0 %v2445, 113
        %v3573 = vpop.permute.xlu0 %3572
        %3574 = vrot.lane.b32.xlu0 %v2449, 113
        %v3575 = vpop.permute.xlu0 %3574
        %v3576 = vsel %vm1693, %v3565, %v3571
        %v3577 = vsel %vm1693, %v3567, %v3573
        %v3578 = vsel %vm1693, %v3569, %v3575
        %v3579 = vsel %vm1693, %v3559, %v3565
        %v3580 = vsel %vm1693, %v3561, %v3567
        %v3581 = vsel %vm1693, %v3563, %v3569
        %v3582 = vsel %vm1693, %v3553, %v3559
        %v3583 = vsel %vm1693, %v3555, %v3561
        %v3584 = vsel %vm1693, %v3557, %v3563
        %v3585 = vsel %vm1693, %v3571, %v3553
        %v3586 = vsel %vm1693, %v3573, %v3555
        %v3587 = vsel %vm1693, %v3575, %v3557
        %s3588 = scalar_lea.vmem %s6, 24
        %v3589 = vld [vmem:[%s3588] sm:$0xf]
        %v3591 = vsel %vm2487, %v3589, 0
        %3593 = vmatprep.subr.mxu0 0.0
        %3594 = vmatpush1.msra.mxu0 0.0
        %3595 = vmatprep.subr.mxu0 0.0
        %3596 = vmatpush1.msra.mxu0 0.0
        %3597 = vmatprep.subr.mxu0 0.0
        %3598 = vmatpush1.msra.mxu0 0.0
        %3599 = vmatprep.subr.mxu0 0.0
        %3600 = vmatpush1.msra.mxu0 0.0
        %3601 = vmatprep.subr.mxu0 0.0
        %3602 = vmatpush1.msra.mxu0 0.0
        %3603 = vmatprep.subr.mxu0 0.0
        %3604 = vmatpush1.msra.mxu0 0.0
        %3605 = vmatprep.subr.mxu0 0.0
        %3606 = vmatpush1.msra.mxu0 0.0
        %3607 = vmatprep.subr.mxu0 0.0
        %3608 = vmatpush1.msra.mxu0 0.0
        %3609 = vmatprep.subr.mxu0 0.0
        %3610 = vmatpush1.msra.mxu0 0.0
        %3611 = vmatprep.subr.mxu0 0.0
        %3612 = vmatpush1.msra.mxu0 0.0
        %3613 = vmatprep.subr.mxu0 0.0
        %3614 = vmatpush1.msra.mxu0 0.0
        %3615 = vmatprep.subr.mxu0 0.0
        %3616 = vmatpush1.msra.mxu0 0.0
        %3617 = vmatprep.subr.mxu0 0.0
        %3618 = vmatpush1.msra.mxu0 0.0
        %3619 = vmatprep.subr.mxu0 %v3581
        %3620 = vmatpush1.msra.mxu0 %v3584
        %3621 = vmatprep.subr.mxu0 %v3580
        %3622 = vmatpush1.msra.mxu0 %v3583
        %3623 = vmatprep.subr.mxu0 %v3579
        %3624 = vmatpush1.msra.mxu0 %v3582
        %3625 = vmatprep.subr.mxu0 0.0
        %3626 = vmatpush2.msra.mxu0 0.0
        %3627 = vmatprep.subr.mxu0 0.0
        %3628 = vmatpush2.msra.mxu0 0.0
        %3629 = vmatprep.subr.mxu0 0.0
        %3630 = vmatpush2.msra.mxu0 0.0
        %3631 = vmatprep.subr.mxu0 0.0
        %3632 = vmatpush2.msra.mxu0 0.0
        %3633 = vmatprep.subr.mxu0 0.0
        %3634 = vmatpush2.msra.mxu0 0.0
        %3635 = vmatprep.subr.mxu0 0.0
        %3636 = vmatpush2.msra.mxu0 0.0
        %3637 = vmatprep.subr.mxu0 0.0
        %3638 = vmatpush2.msra.mxu0 0.0
        %3639 = vmatprep.subr.mxu0 0.0
        %3640 = vmatpush2.msra.mxu0 0.0
        %3641 = vmatprep.subr.mxu0 0.0
        %3642 = vmatpush2.msra.mxu0 0.0
        %3643 = vmatprep.subr.mxu0 0.0
        %3644 = vmatpush2.msra.mxu0 0.0
        %3645 = vmatprep.subr.mxu0 0.0
        %3646 = vmatpush2.msra.mxu0 0.0
        %3647 = vmatprep.subr.mxu0 0.0
        %3648 = vmatpush2.msra.mxu0 0.0
        %3649 = vmatprep.subr.mxu0 0.0
        %3650 = vmatpush2.msra.mxu0 0.0
        %3651 = vmatprep.subr.mxu0 0.0
        %3652 = vmatpush2.msra.mxu0 0.0
        %3653 = vmatprep.subr.mxu0 0.0
        %3654 = vmatpush2.msra.mxu0 0.0
        %3655 = vmatprep.subr.mxu0 0.0
        %3656 = vmatpush2.msra.mxu0 0.0
        %3657 = vmatprep.mubr.f32.mxu0 0.0
        %3658 = vmatmul.mubr.f32.gmra.mxu0 %v3591
        %v3659 = vpop.f32.mrf.mxu0
        %v3660 = vadd.f32 0.0, %v3659
        %v3661 = vpop.f32.mrf.mxu0
        %v3662 = vadd.f32 0.0, %v3661
        %3663 = vdwg.mxu0
        %3664 = vmatprep.subr.mxu0 0.0
        %3665 = vmatpush1.msra.mxu0 0.0
        %3666 = vmatprep.subr.mxu0 0.0
        %3667 = vmatpush1.msra.mxu0 0.0
        %3668 = vmatprep.subr.mxu0 0.0
        %3669 = vmatpush1.msra.mxu0 0.0
        %3670 = vmatprep.subr.mxu0 0.0
        %3671 = vmatpush1.msra.mxu0 0.0
        %3672 = vmatprep.subr.mxu0 0.0
        %3673 = vmatpush1.msra.mxu0 0.0
        %3674 = vmatprep.subr.mxu0 0.0
        %3675 = vmatpush1.msra.mxu0 0.0
        %3676 = vmatprep.subr.mxu0 0.0
        %3677 = vmatpush1.msra.mxu0 0.0
        %3678 = vmatprep.subr.mxu0 0.0
        %3679 = vmatpush1.msra.mxu0 0.0
        %3680 = vmatprep.subr.mxu0 0.0
        %3681 = vmatpush1.msra.mxu0 0.0
        %3682 = vmatprep.subr.mxu0 0.0
        %3683 = vmatpush1.msra.mxu0 0.0
        %3684 = vmatprep.subr.mxu0 0.0
        %3685 = vmatpush1.msra.mxu0 0.0
        %3686 = vmatprep.subr.mxu0 0.0
        %3687 = vmatpush1.msra.mxu0 0.0
        %3688 = vmatprep.subr.mxu0 0.0
        %3689 = vmatpush1.msra.mxu0 0.0
        %3690 = vmatprep.subr.mxu0 %v3587
        %3691 = vmatpush1.msra.mxu0 %v3578
        %3692 = vmatprep.subr.mxu0 %v3586
        %3693 = vmatpush1.msra.mxu0 %v3577
        %3694 = vmatprep.subr.mxu0 %v3585
        %3695 = vmatpush1.msra.mxu0 %v3576
        %3696 = vmatprep.subr.mxu0 0.0
        %3697 = vmatpush2.msra.mxu0 0.0
        %3698 = vmatprep.subr.mxu0 0.0
        %3699 = vmatpush2.msra.mxu0 0.0
        %3700 = vmatprep.subr.mxu0 0.0
        %3701 = vmatpush2.msra.mxu0 0.0
        %3702 = vmatprep.subr.mxu0 0.0
        %3703 = vmatpush2.msra.mxu0 0.0
        %3704 = vmatprep.subr.mxu0 0.0
        %3705 = vmatpush2.msra.mxu0 0.0
        %3706 = vmatprep.subr.mxu0 0.0
        %3707 = vmatpush2.msra.mxu0 0.0
        %3708 = vmatprep.subr.mxu0 0.0
        %3709 = vmatpush2.msra.mxu0 0.0
        %3710 = vmatprep.subr.mxu0 0.0
        %3711 = vmatpush2.msra.mxu0 0.0
        %3712 = vmatprep.subr.mxu0 0.0
        %3713 = vmatpush2.msra.mxu0 0.0
        %3714 = vmatprep.subr.mxu0 0.0
        %3715 = vmatpush2.msra.mxu0 0.0
        %3716 = vmatprep.subr.mxu0 0.0
        %3717 = vmatpush2.msra.mxu0 0.0
        %3718 = vmatprep.subr.mxu0 0.0
        %3719 = vmatpush2.msra.mxu0 0.0
        %3720 = vmatprep.subr.mxu0 0.0
        %3721 = vmatpush2.msra.mxu0 0.0
        %3722 = vmatprep.subr.mxu0 0.0
        %3723 = vmatpush2.msra.mxu0 0.0
        %3724 = vmatprep.subr.mxu0 0.0
        %3725 = vmatpush2.msra.mxu0 0.0
        %3726 = vmatprep.subr.mxu0 0.0
        %3727 = vmatpush2.msra.mxu0 0.0
        %3728 = vmatprep.mubr.f32.mxu0 0.0
        %3729 = vmatmul.mubr.f32.gmra.mxu0 %v3591
        %v3730 = vpop.f32.mrf.mxu0
        %v3731 = vadd.f32 0.0, %v3730
        %v3732 = vpop.f32.mrf.mxu0
        %v3733 = vadd.f32 0.0, %v3732
        %3734 = vdwg.mxu0
        %v3735 = vmul.f32 %v3660, %v1704
        %v3736 = vmul.f32 %v3662, %v1708
        %v3737 = vmul.f32 %v3731, %v1712
        %v3738 = vmul.f32 %v3733, %v1716
        %v3739 = vadd.f32 %v3548, %v3735
        %v3740 = vadd.f32 %v3549, %v3736
        %v3741 = vadd.f32 %v3550, %v3737
        %v3742 = vadd.f32 %v3551, %v3738
        %3743 = vrot.lane.b32.xlu0 %v2438, 112
        %v3744 = vpop.permute.xlu0 %3743
        %3745 = vrot.lane.b32.xlu0 %v2442, 112
        %v3746 = vpop.permute.xlu0 %3745
        %3747 = vrot.lane.b32.xlu0 %v2446, 112
        %v3748 = vpop.permute.xlu0 %3747
        %3749 = vrot.lane.b32.xlu0 %v2439, 112
        %v3750 = vpop.permute.xlu0 %3749
        %3751 = vrot.lane.b32.xlu0 %v2443, 112
        %v3752 = vpop.permute.xlu0 %3751
        %3753 = vrot.lane.b32.xlu0 %v2447, 112
        %v3754 = vpop.permute.xlu0 %3753
        %3755 = vrot.lane.b32.xlu0 %v2440, 112
        %v3756 = vpop.permute.xlu0 %3755
        %3757 = vrot.lane.b32.xlu0 %v2444, 112
        %v3758 = vpop.permute.xlu0 %3757
        %3759 = vrot.lane.b32.xlu0 %v2448, 112
        %v3760 = vpop.permute.xlu0 %3759
        %3761 = vrot.lane.b32.xlu0 %v2441, 112
        %v3762 = vpop.permute.xlu0 %3761
        %3763 = vrot.lane.b32.xlu0 %v2445, 112
        %v3764 = vpop.permute.xlu0 %3763
        %3765 = vrot.lane.b32.xlu0 %v2449, 112
        %v3766 = vpop.permute.xlu0 %3765
        %v3767 = vsel %vm1924, %v3756, %v3762
        %v3768 = vsel %vm1924, %v3758, %v3764
        %v3769 = vsel %vm1924, %v3760, %v3766
        %v3770 = vsel %vm1924, %v3750, %v3756
        %v3771 = vsel %vm1924, %v3752, %v3758
        %v3772 = vsel %vm1924, %v3754, %v3760
        %v3773 = vsel %vm1924, %v3744, %v3750
        %v3774 = vsel %vm1924, %v3746, %v3752
        %v3775 = vsel %vm1924, %v3748, %v3754
        %v3776 = vsel %vm1924, %v3762, %v3744
        %v3777 = vsel %vm1924, %v3764, %v3746
        %v3778 = vsel %vm1924, %v3766, %v3748
        %s3779 = scalar_lea.vmem %s6, 28
        %v3780 = vld [vmem:[%s3779] sm:$0xf]
        %v3782 = vsel %vm2487, %v3780, 0
        %3784 = vmatprep.subr.mxu0 0.0
        %3785 = vmatpush1.msra.mxu0 0.0
        %3786 = vmatprep.subr.mxu0 0.0
        %3787 = vmatpush1.msra.mxu0 0.0
        %3788 = vmatprep.subr.mxu0 0.0
        %3789 = vmatpush1.msra.mxu0 0.0
        %3790 = vmatprep.subr.mxu0 0.0
        %3791 = vmatpush1.msra.mxu0 0.0
        %3792 = vmatprep.subr.mxu0 0.0
        %3793 = vmatpush1.msra.mxu0 0.0
        %3794 = vmatprep.subr.mxu0 0.0
        %3795 = vmatpush1.msra.mxu0 0.0
        %3796 = vmatprep.subr.mxu0 0.0
        %3797 = vmatpush1.msra.mxu0 0.0
        %3798 = vmatprep.subr.mxu0 0.0
        %3799 = vmatpush1.msra.mxu0 0.0
        %3800 = vmatprep.subr.mxu0 0.0
        %3801 = vmatpush1.msra.mxu0 0.0
        %3802 = vmatprep.subr.mxu0 0.0
        %3803 = vmatpush1.msra.mxu0 0.0
        %3804 = vmatprep.subr.mxu0 0.0
        %3805 = vmatpush1.msra.mxu0 0.0
        %3806 = vmatprep.subr.mxu0 0.0
        %3807 = vmatpush1.msra.mxu0 0.0
        %3808 = vmatprep.subr.mxu0 0.0
        %3809 = vmatpush1.msra.mxu0 0.0
        %3810 = vmatprep.subr.mxu0 %v3772
        %3811 = vmatpush1.msra.mxu0 %v3775
        %3812 = vmatprep.subr.mxu0 %v3771
        %3813 = vmatpush1.msra.mxu0 %v3774
        %3814 = vmatprep.subr.mxu0 %v3770
        %3815 = vmatpush1.msra.mxu0 %v3773
        %3816 = vmatprep.subr.mxu0 0.0
        %3817 = vmatpush2.msra.mxu0 0.0
        %3818 = vmatprep.subr.mxu0 0.0
        %3819 = vmatpush2.msra.mxu0 0.0
        %3820 = vmatprep.subr.mxu0 0.0
        %3821 = vmatpush2.msra.mxu0 0.0
        %3822 = vmatprep.subr.mxu0 0.0
        %3823 = vmatpush2.msra.mxu0 0.0
        %3824 = vmatprep.subr.mxu0 0.0
        %3825 = vmatpush2.msra.mxu0 0.0
        %3826 = vmatprep.subr.mxu0 0.0
        %3827 = vmatpush2.msra.mxu0 0.0
        %3828 = vmatprep.subr.mxu0 0.0
        %3829 = vmatpush2.msra.mxu0 0.0
        %3830 = vmatprep.subr.mxu0 0.0
        %3831 = vmatpush2.msra.mxu0 0.0
        %3832 = vmatprep.subr.mxu0 0.0
        %3833 = vmatpush2.msra.mxu0 0.0
        %3834 = vmatprep.subr.mxu0 0.0
        %3835 = vmatpush2.msra.mxu0 0.0
        %3836 = vmatprep.subr.mxu0 0.0
        %3837 = vmatpush2.msra.mxu0 0.0
        %3838 = vmatprep.subr.mxu0 0.0
        %3839 = vmatpush2.msra.mxu0 0.0
        %3840 = vmatprep.subr.mxu0 0.0
        %3841 = vmatpush2.msra.mxu0 0.0
        %3842 = vmatprep.subr.mxu0 0.0
        %3843 = vmatpush2.msra.mxu0 0.0
        %3844 = vmatprep.subr.mxu0 0.0
        %3845 = vmatpush2.msra.mxu0 0.0
        %3846 = vmatprep.subr.mxu0 0.0
        %3847 = vmatpush2.msra.mxu0 0.0
        %3848 = vmatprep.mubr.f32.mxu0 0.0
        %3849 = vmatmul.mubr.f32.gmra.mxu0 %v3782
        %v3850 = vpop.f32.mrf.mxu0
        %v3851 = vadd.f32 0.0, %v3850
        %v3852 = vpop.f32.mrf.mxu0
        %v3853 = vadd.f32 0.0, %v3852
        %3854 = vdwg.mxu0
        %3855 = vmatprep.subr.mxu0 0.0
        %3856 = vmatpush1.msra.mxu0 0.0
        %3857 = vmatprep.subr.mxu0 0.0
        %3858 = vmatpush1.msra.mxu0 0.0
        %3859 = vmatprep.subr.mxu0 0.0
        %3860 = vmatpush1.msra.mxu0 0.0
        %3861 = vmatprep.subr.mxu0 0.0
        %3862 = vmatpush1.msra.mxu0 0.0
        %3863 = vmatprep.subr.mxu0 0.0
        %3864 = vmatpush1.msra.mxu0 0.0
        %3865 = vmatprep.subr.mxu0 0.0
        %3866 = vmatpush1.msra.mxu0 0.0
        %3867 = vmatprep.subr.mxu0 0.0
        %3868 = vmatpush1.msra.mxu0 0.0
        %3869 = vmatprep.subr.mxu0 0.0
        %3870 = vmatpush1.msra.mxu0 0.0
        %3871 = vmatprep.subr.mxu0 0.0
        %3872 = vmatpush1.msra.mxu0 0.0
        %3873 = vmatprep.subr.mxu0 0.0
        %3874 = vmatpush1.msra.mxu0 0.0
        %3875 = vmatprep.subr.mxu0 0.0
        %3876 = vmatpush1.msra.mxu0 0.0
        %3877 = vmatprep.subr.mxu0 0.0
        %3878 = vmatpush1.msra.mxu0 0.0
        %3879 = vmatprep.subr.mxu0 0.0
        %3880 = vmatpush1.msra.mxu0 0.0
        %3881 = vmatprep.subr.mxu0 %v3778
        %3882 = vmatpush1.msra.mxu0 %v3769
        %3883 = vmatprep.subr.mxu0 %v3777
        %3884 = vmatpush1.msra.mxu0 %v3768
        %3885 = vmatprep.subr.mxu0 %v3776
        %3886 = vmatpush1.msra.mxu0 %v3767
        %3887 = vmatprep.subr.mxu0 0.0
        %3888 = vmatpush2.msra.mxu0 0.0
        %3889 = vmatprep.subr.mxu0 0.0
        %3890 = vmatpush2.msra.mxu0 0.0
        %3891 = vmatprep.subr.mxu0 0.0
        %3892 = vmatpush2.msra.mxu0 0.0
        %3893 = vmatprep.subr.mxu0 0.0
        %3894 = vmatpush2.msra.mxu0 0.0
        %3895 = vmatprep.subr.mxu0 0.0
        %3896 = vmatpush2.msra.mxu0 0.0
        %3897 = vmatprep.subr.mxu0 0.0
        %3898 = vmatpush2.msra.mxu0 0.0
        %3899 = vmatprep.subr.mxu0 0.0
        %3900 = vmatpush2.msra.mxu0 0.0
        %3901 = vmatprep.subr.mxu0 0.0
        %3902 = vmatpush2.msra.mxu0 0.0
        %3903 = vmatprep.subr.mxu0 0.0
        %3904 = vmatpush2.msra.mxu0 0.0
        %3905 = vmatprep.subr.mxu0 0.0
        %3906 = vmatpush2.msra.mxu0 0.0
        %3907 = vmatprep.subr.mxu0 0.0
        %3908 = vmatpush2.msra.mxu0 0.0
        %3909 = vmatprep.subr.mxu0 0.0
        %3910 = vmatpush2.msra.mxu0 0.0
        %3911 = vmatprep.subr.mxu0 0.0
        %3912 = vmatpush2.msra.mxu0 0.0
        %3913 = vmatprep.subr.mxu0 0.0
        %3914 = vmatpush2.msra.mxu0 0.0
        %3915 = vmatprep.subr.mxu0 0.0
        %3916 = vmatpush2.msra.mxu0 0.0
        %3917 = vmatprep.subr.mxu0 0.0
        %3918 = vmatpush2.msra.mxu0 0.0
        %3919 = vmatprep.mubr.f32.mxu0 0.0
        %3920 = vmatmul.mubr.f32.gmra.mxu0 %v3782
        %v3921 = vpop.f32.mrf.mxu0
        %v3922 = vadd.f32 0.0, %v3921
        %v3923 = vpop.f32.mrf.mxu0
        %v3924 = vadd.f32 0.0, %v3923
        %3925 = vdwg.mxu0
        %v3926 = vmul.f32 %v3851, %v1935
        %v3927 = vmul.f32 %v3853, %v1939
        %v3928 = vmul.f32 %v3922, %v1943
        %v3929 = vmul.f32 %v3924, %v1947
        %v3930 = vadd.f32 %v3739, %v3926
        %v3931 = vadd.f32 %v3740, %v3927
        %v3932 = vadd.f32 %v3741, %v3928
        %v3933 = vadd.f32 %v3742, %v3929
        %3934 = vrot.lane.b32.xlu0 %v2438, 111
        %v3935 = vpop.permute.xlu0 %3934
        %3936 = vrot.lane.b32.xlu0 %v2442, 111
        %v3937 = vpop.permute.xlu0 %3936
        %3938 = vrot.lane.b32.xlu0 %v2446, 111
        %v3939 = vpop.permute.xlu0 %3938
        %3940 = vrot.lane.b32.xlu0 %v2439, 111
        %v3941 = vpop.permute.xlu0 %3940
        %3942 = vrot.lane.b32.xlu0 %v2443, 111
        %v3943 = vpop.permute.xlu0 %3942
        %3944 = vrot.lane.b32.xlu0 %v2447, 111
        %v3945 = vpop.permute.xlu0 %3944
        %3946 = vrot.lane.b32.xlu0 %v2440, 111
        %v3947 = vpop.permute.xlu0 %3946
        %3948 = vrot.lane.b32.xlu0 %v2444, 111
        %v3949 = vpop.permute.xlu0 %3948
        %3950 = vrot.lane.b32.xlu0 %v2448, 111
        %v3951 = vpop.permute.xlu0 %3950
        %3952 = vrot.lane.b32.xlu0 %v2441, 111
        %v3953 = vpop.permute.xlu0 %3952
        %3954 = vrot.lane.b32.xlu0 %v2445, 111
        %v3955 = vpop.permute.xlu0 %3954
        %3956 = vrot.lane.b32.xlu0 %v2449, 111
        %v3957 = vpop.permute.xlu0 %3956
        %v3958 = vsel %vm2155, %v3947, %v3953
        %v3959 = vsel %vm2155, %v3949, %v3955
        %v3960 = vsel %vm2155, %v3951, %v3957
        %v3961 = vsel %vm2155, %v3941, %v3947
        %v3962 = vsel %vm2155, %v3943, %v3949
        %v3963 = vsel %vm2155, %v3945, %v3951
        %v3964 = vsel %vm2155, %v3935, %v3941
        %v3965 = vsel %vm2155, %v3937, %v3943
        %v3966 = vsel %vm2155, %v3939, %v3945
        %v3967 = vsel %vm2155, %v3953, %v3935
        %v3968 = vsel %vm2155, %v3955, %v3937
        %v3969 = vsel %vm2155, %v3957, %v3939
        %s3970 = scalar_lea.vmem %s6, 32
        %v3971 = vld [vmem:[%s3970] sm:$0xf]
        %v3973 = vsel %vm2487, %v3971, 0
        %3975 = vmatprep.subr.mxu0 0.0
        %3976 = vmatpush1.msra.mxu0 0.0
        %3977 = vmatprep.subr.mxu0 0.0
        %3978 = vmatpush1.msra.mxu0 0.0
        %3979 = vmatprep.subr.mxu0 0.0
        %3980 = vmatpush1.msra.mxu0 0.0
        %3981 = vmatprep.subr.mxu0 0.0
        %3982 = vmatpush1.msra.mxu0 0.0
        %3983 = vmatprep.subr.mxu0 0.0
        %3984 = vmatpush1.msra.mxu0 0.0
        %3985 = vmatprep.subr.mxu0 0.0
        %3986 = vmatpush1.msra.mxu0 0.0
        %3987 = vmatprep.subr.mxu0 0.0
        %3988 = vmatpush1.msra.mxu0 0.0
        %3989 = vmatprep.subr.mxu0 0.0
        %3990 = vmatpush1.msra.mxu0 0.0
        %3991 = vmatprep.subr.mxu0 0.0
        %3992 = vmatpush1.msra.mxu0 0.0
        %3993 = vmatprep.subr.mxu0 0.0
        %3994 = vmatpush1.msra.mxu0 0.0
        %3995 = vmatprep.subr.mxu0 0.0
        %3996 = vmatpush1.msra.mxu0 0.0
        %3997 = vmatprep.subr.mxu0 0.0
        %3998 = vmatpush1.msra.mxu0 0.0
        %3999 = vmatprep.subr.mxu0 0.0
        %4000 = vmatpush1.msra.mxu0 0.0
        %4001 = vmatprep.subr.mxu0 %v3963
        %4002 = vmatpush1.msra.mxu0 %v3966
        %4003 = vmatprep.subr.mxu0 %v3962
        %4004 = vmatpush1.msra.mxu0 %v3965
        %4005 = vmatprep.subr.mxu0 %v3961
        %4006 = vmatpush1.msra.mxu0 %v3964
        %4007 = vmatprep.subr.mxu0 0.0
        %4008 = vmatpush2.msra.mxu0 0.0
        %4009 = vmatprep.subr.mxu0 0.0
        %4010 = vmatpush2.msra.mxu0 0.0
        %4011 = vmatprep.subr.mxu0 0.0
        %4012 = vmatpush2.msra.mxu0 0.0
        %4013 = vmatprep.subr.mxu0 0.0
        %4014 = vmatpush2.msra.mxu0 0.0
        %4015 = vmatprep.subr.mxu0 0.0
        %4016 = vmatpush2.msra.mxu0 0.0
        %4017 = vmatprep.subr.mxu0 0.0
        %4018 = vmatpush2.msra.mxu0 0.0
        %4019 = vmatprep.subr.mxu0 0.0
        %4020 = vmatpush2.msra.mxu0 0.0
        %4021 = vmatprep.subr.mxu0 0.0
        %4022 = vmatpush2.msra.mxu0 0.0
        %4023 = vmatprep.subr.mxu0 0.0
        %4024 = vmatpush2.msra.mxu0 0.0
        %4025 = vmatprep.subr.mxu0 0.0
        %4026 = vmatpush2.msra.mxu0 0.0
        %4027 = vmatprep.subr.mxu0 0.0
        %4028 = vmatpush2.msra.mxu0 0.0
        %4029 = vmatprep.subr.mxu0 0.0
        %4030 = vmatpush2.msra.mxu0 0.0
        %4031 = vmatprep.subr.mxu0 0.0
        %4032 = vmatpush2.msra.mxu0 0.0
        %4033 = vmatprep.subr.mxu0 0.0
        %4034 = vmatpush2.msra.mxu0 0.0
        %4035 = vmatprep.subr.mxu0 0.0
        %4036 = vmatpush2.msra.mxu0 0.0
        %4037 = vmatprep.subr.mxu0 0.0
        %4038 = vmatpush2.msra.mxu0 0.0
        %4039 = vmatprep.mubr.f32.mxu0 0.0
        %4040 = vmatmul.mubr.f32.gmra.mxu0 %v3973
        %v4041 = vpop.f32.mrf.mxu0
        %v4042 = vadd.f32 0.0, %v4041
        %v4043 = vpop.f32.mrf.mxu0
        %v4044 = vadd.f32 0.0, %v4043
        %4045 = vdwg.mxu0
        %4046 = vmatprep.subr.mxu0 0.0
        %4047 = vmatpush1.msra.mxu0 0.0
        %4048 = vmatprep.subr.mxu0 0.0
        %4049 = vmatpush1.msra.mxu0 0.0
        %4050 = vmatprep.subr.mxu0 0.0
        %4051 = vmatpush1.msra.mxu0 0.0
        %4052 = vmatprep.subr.mxu0 0.0
        %4053 = vmatpush1.msra.mxu0 0.0
        %4054 = vmatprep.subr.mxu0 0.0
        %4055 = vmatpush1.msra.mxu0 0.0
        %4056 = vmatprep.subr.mxu0 0.0
        %4057 = vmatpush1.msra.mxu0 0.0
        %4058 = vmatprep.subr.mxu0 0.0
        %4059 = vmatpush1.msra.mxu0 0.0
        %4060 = vmatprep.subr.mxu0 0.0
        %4061 = vmatpush1.msra.mxu0 0.0
        %4062 = vmatprep.subr.mxu0 0.0
        %4063 = vmatpush1.msra.mxu0 0.0
        %4064 = vmatprep.subr.mxu0 0.0
        %4065 = vmatpush1.msra.mxu0 0.0
        %4066 = vmatprep.subr.mxu0 0.0
        %4067 = vmatpush1.msra.mxu0 0.0
        %4068 = vmatprep.subr.mxu0 0.0
        %4069 = vmatpush1.msra.mxu0 0.0
        %4070 = vmatprep.subr.mxu0 0.0
        %4071 = vmatpush1.msra.mxu0 0.0
        %4072 = vmatprep.subr.mxu0 %v3969
        %4073 = vmatpush1.msra.mxu0 %v3960
        %4074 = vmatprep.subr.mxu0 %v3968
        %4075 = vmatpush1.msra.mxu0 %v3959
        %4076 = vmatprep.subr.mxu0 %v3967
        %4077 = vmatpush1.msra.mxu0 %v3958
        %4078 = vmatprep.subr.mxu0 0.0
        %4079 = vmatpush2.msra.mxu0 0.0
        %4080 = vmatprep.subr.mxu0 0.0
        %4081 = vmatpush2.msra.mxu0 0.0
        %4082 = vmatprep.subr.mxu0 0.0
        %4083 = vmatpush2.msra.mxu0 0.0
        %4084 = vmatprep.subr.mxu0 0.0
        %4085 = vmatpush2.msra.mxu0 0.0
        %4086 = vmatprep.subr.mxu0 0.0
        %4087 = vmatpush2.msra.mxu0 0.0
        %4088 = vmatprep.subr.mxu0 0.0
        %4089 = vmatpush2.msra.mxu0 0.0
        %4090 = vmatprep.subr.mxu0 0.0
        %4091 = vmatpush2.msra.mxu0 0.0
        %4092 = vmatprep.subr.mxu0 0.0
        %4093 = vmatpush2.msra.mxu0 0.0
        %4094 = vmatprep.subr.mxu0 0.0
        %4095 = vmatpush2.msra.mxu0 0.0
        %4096 = vmatprep.subr.mxu0 0.0
        %4097 = vmatpush2.msra.mxu0 0.0
        %4098 = vmatprep.subr.mxu0 0.0
        %4099 = vmatpush2.msra.mxu0 0.0
        %4100 = vmatprep.subr.mxu0 0.0
        %4101 = vmatpush2.msra.mxu0 0.0
        %4102 = vmatprep.subr.mxu0 0.0
        %4103 = vmatpush2.msra.mxu0 0.0
        %4104 = vmatprep.subr.mxu0 0.0
        %4105 = vmatpush2.msra.mxu0 0.0
        %4106 = vmatprep.subr.mxu0 0.0
        %4107 = vmatpush2.msra.mxu0 0.0
        %4108 = vmatprep.subr.mxu0 0.0
        %4109 = vmatpush2.msra.mxu0 0.0
        %4110 = vmatprep.mubr.f32.mxu0 0.0
        %4111 = vmatmul.mubr.f32.gmra.mxu0 %v3973
        %v4112 = vpop.f32.mrf.mxu0
        %v4113 = vadd.f32 0.0, %v4112
        %v4114 = vpop.f32.mrf.mxu0
        %v4115 = vadd.f32 0.0, %v4114
        %4116 = vdwg.mxu0
        %v4117 = vmul.f32 %v4042, %v2166
        %v4118 = vmul.f32 %v4044, %v2170
        %v4119 = vmul.f32 %v4113, %v2174
        %v4120 = vmul.f32 %v4115, %v2178
        %v4121 = vadd.f32 %v3930, %v4117
        %v4122 = vadd.f32 %v3931, %v4118
        %v4123 = vadd.f32 %v3932, %v4119
        %v4124 = vadd.f32 %v3933, %v4120
        %v4125 = vld [vmem:[%s7] sm:$0xf]
        %4127 = vset.pattern.permute.xlu0 0
        %4128 = vperm.xlu0 %4127, %v4125
        %v4129 = vpop.permute.xlu0 %4128
        %v4131 = vadd.f32 %v4121, %v4129
        %v4132 = vadd.f32 %v4122, %v4129
        %v4133 = vadd.f32 %v4123, %v4129
        %v4134 = vadd.f32 %v4124, %v4129
        %v4135 = vadd.f32 %v4131, %v334
        %v4136 = vadd.f32 %v4132, %v335
        %v4137 = vadd.f32 %v4133, %v336
        %v4138 = vadd.f32 %v4134, %v337
        %v4143 = vcombine.low %v4135, %v4136
        %v4144 = vcombine.low %v4137, %v4138
        %4147 = vst [vmem:[%s326] sm:$0xff] %v4143
        %4148 = vst [vmem:[%s326 + $0x8] sm:$0xff] %v4144
        %s4149 = sand.u32 %s225, 1
        %s4150 = scalar_lea.sflag [#allocation3], %s4149
        %s4151 = sand.u32 %s225, 1
        %s4152 = smul.addr %s4151, 16
        %s4153 = scalar_lea.vmem [#allocation2], %s4152
        // Predicated region
        $region57: #{tpu_custom_call.1} parent=55 // pred_check
          %p4154 = pneg %p235
        $region58: #{tpu_custom_call.1} parent=55 // pred_check_branch
          %4156 = sbr.rel (%p4154) target = $region60
        $region59: #{tpu_custom_call.1} parent=55 // pred_region
          %s4157 = smul.u32 4, %s23
          %s4159 = ssub.s32 256, 256
          %4160 = vsyncadd %s4150, %s4159
          %s4161 = smul.addr %s4157, 64
          %s4162 = scalar_lea.hbm %s9, %s4161
          %s4164 = sshll.u32 %s4153, 4
          %s4165 = int_to_ptr.vmem [resolvable:$true] %s4164
          %4167 = dma.vmem_to_hbm [thread:$0]  %s4165, 256, %s4162, %s4150
        $region60: #{tpu_custom_call.1} parent=55 // pred_fallthru
          _
      $region56: #{tpu_custom_call.1} parent=5 // pred_fallthru
        _
      %p4168 = scmp.le.s32.totalorder 2, %s18
      // Predicated region
      $region61: #{tpu_custom_call.1} parent=5 // pred_check
        %p4169 = pneg %p4168
      $region62: #{tpu_custom_call.1} parent=5 // pred_check_branch
        %4171 = sbr.rel (%p4169) target = $region64
      $region63: #{tpu_custom_call.1} parent=5 // pred_region
        %s4172 = ssub.s32 %s18, 2
        // Predicated region
        $region65: #{tpu_custom_call.1} parent=63 // pred_check
          %p4173 = pneg %p241
        $region66: #{tpu_custom_call.1} parent=63 // pred_check_branch
          %4175 = sbr.rel (%p4173) target = $region68
        $region67: #{tpu_custom_call.1} parent=63 // pred_region
          %s4176 = sand.u32 %s226, 1
          %s4177 = scalar_lea.sflag [#allocation3], %s4176
          %s4178 = sand.u32 %s226, 1
          %s4179 = smul.addr %s4178, 16
          %s4180 = scalar_lea.vmem [#allocation2], %s4179
          %4181 = dma.done %s4177, 256
        $region68: #{tpu_custom_call.1} parent=63 // pred_fallthru
          _
      $region64: #{tpu_custom_call.1} parent=5 // pred_fallthru
        _
    $region6: #{tpu_custom_call.1} parent=1 // loop_footer
      %s22 = sadd.s32 1, %s18
    $region7: #{tpu_custom_call.1} parent=1 // loop_footer_branch
      %17 = sbr.rel target = $region3
    $region8: #{tpu_custom_call.1} parent=1 // loop_exit
      _
    %4182 = vsyncpa [#allocation3], 1
    %s4183 = scalar_lea.sflag [#allocation3], 1
    %4184 = vsyncpa %s4183, 1

</llo_original>
